<compile_context>
chip_gen: v7x
topology: tpu7x:2x2x1
jax: 0.10.0
libtpu: 0.0.40
codegen_flags: <defaults>
</compile_context>

<pallas_src>
import numpy as np
import jax
import jax.numpy as jnp
from jax.experimental import pallas as pl
from jax.experimental.pallas import tpu as pltpu

LRELU_SLOPE = 0.2
BN_EPS = 1e-5


# ----------------------- host-side operator preparation ----------------------

def _conv_out(h, k, s, p):
    return (h + 2 * p - k) // s + 1


def _make_sh(n, h_in, h_out, kh, stride, pad):
    """H-direction im2col selection, block-diagonal over batch.

    sh[ki, n*Ho+ho, n*H+hi] = 1  iff  hi == stride*ho + ki - pad.
    Out-of-range hi -> all-zero row == zero padding.
    """
    sh = np.zeros((kh, n * h_out, n * h_in), np.float32)
    for ki in range(kh):
        for b in range(n):
            for ho in range(h_out):
                hi = stride * ho + ki - pad
                if 0 <= hi < h_in:
                    sh[ki, b * h_out + ho, b * h_in + hi] = 1.0
    return sh


def _make_g(w_oihw, w_in, w_out, stride, pad):
    """Fold W-direction im2col selection + channel contraction of the conv weight
    into one right-multiply operator per kernel row ki.

    g[ki, w*Cin+ci, wo*Cout+co] = w_oihw[co, ci, ki, kj]  with kj = w - stride*wo + pad
    (zero where kj is out of the kernel window == zero padding in W).
    """
    c_out, c_in, kh, kw = w_oihw.shape
    g = np.zeros((kh, w_in * c_in, w_out * c_out), np.float32)
    for ki in range(kh):
        for wo in range(w_out):
            for kj in range(kw):
                w = stride * wo + kj - pad
                if 0 <= w < w_in:
                    g[ki, w * c_in:(w + 1) * c_in, wo * c_out:(wo + 1) * c_out] = \
                        w_oihw[:, :, ki, kj].T
    return g


def _make_bn_avg(w_out, c_out, count):
    """bnm[(wo,co),(wo',co')] = (co == co') / count.
    Right-multiplying a (k, Wo*Cout) row-block of column sums by bnm yields the
    per-channel mean replicated back into the lane-dense (wo, co) layout."""
    length = w_out * c_out
    co = np.arange(length) % c_out
    return (co[:, None] == co[None, :]).astype(np.float32) / float(count)


def init_netD_params(key, nc, ndf, imgsize):
    """Deterministic synthetic parameters with the shapes _netD.__init__ defines."""
    hout = 32
    stride0 = int(np.floor(imgsize / hout))
    ksz = int(imgsize - (hout - 1) * stride0)
    ks = jax.random.split(key, 8)

    def w(k, shape):
        return 0.02 * jax.random.normal(k, shape, dtype=jnp.float32)

    params = {
        "w_stem": w(ks[0], (ndf, nc, ksz, ksz)),
        "w1": w(ks[1], (ndf * 2, ndf, 4, 4)),
        "g1": 1.0 + 0.02 * jax.random.normal(ks[5], (ndf * 2,), dtype=jnp.float32),
        "b1": jnp.zeros((ndf * 2,), jnp.float32),
        "w2": w(ks[2], (ndf * 4, ndf * 2, 4, 4)),
        "g2": 1.0 + 0.02 * jax.random.normal(ks[6], (ndf * 4,), dtype=jnp.float32),
        "b2": jnp.zeros((ndf * 4,), jnp.float32),
        "w3": w(ks[3], (ndf * 8, ndf * 4, 4, 4)),
        "g3": 1.0 + 0.02 * jax.random.normal(ks[7], (ndf * 8,), dtype=jnp.float32),
        "b3": jnp.zeros((ndf * 8,), jnp.float32),
        "w4": w(ks[4], (1, ndf * 8, 4, 4)),
    }
    return params, stride0


def prepare_netD(params, batch, imgsize, stride0):
    """One-time parameter re-layout (host side): builds the SH / G_stack / BN
    operators consumed by the fused kernel.  Returns (device operands, static meta)."""
    cfg = [
        (params["w_stem"], stride0, 0, None, None, "lrelu"),
        (params["w1"], 2, 1, params["g1"], params["b1"], "lrelu"),
        (params["w2"], 2, 1, params["g2"], params["b2"], "lrelu"),
        (params["w3"], 2, 1, params["g3"], params["b3"], "lrelu"),
        (params["w4"], 1, 0, None, None, "sigmoid"),
    ]
    h = w_sp = imgsize
    operands, meta = [], []
    for (wgt, stride, pad, gamma, beta, act) in cfg:
        wgt = np.asarray(wgt)
        c_out, _, kh, kw = wgt.shape
        h_out = _conv_out(h, kh, stride, pad)
        w_out = _conv_out(w_sp, kw, stride, pad)

        # H-direction selection operator; skip it entirely when it is the identity
        # (1x1 / stride-1 / no-pad layers -> saves one MXU matmul + a cast).
        sh = _make_sh(batch, h, h_out, kh, stride, pad)
        sh_identity = (kh == 1 and sh.shape[1] == sh.shape[2]
                       and np.array_equal(sh[0], np.eye(sh.shape[1], dtype=np.float32)))
        if not sh_identity:
            # bf16 MXU operand (exact: 0/1 entries), f32 accumulation in-kernel.
            operands.append(jnp.asarray(sh, dtype=jnp.bfloat16))

        # W-direction selection + channel contraction, vertically stacked over ki so
        # the whole layer contraction is ONE matmul against the lane-concatenated B.
        g = _make_g(wgt, w_sp, w_out, stride, pad)            # (kh, Win*Cin, Wout*Cout)
        g_stack = g.reshape(g.shape[0] * g.shape[1], g.shape[2])
        operands.append(jnp.asarray(g_stack, dtype=jnp.bfloat16))

        has_bn = gamma is not None
        if has_bn:
            count = batch * h_out * w_out
            operands.append(jnp.asarray(_make_bn_avg(w_out, c_out, count), jnp.float32))
            operands.append(jnp.asarray(np.tile(np.asarray(gamma, np.float32), w_out)[None, :]))
            operands.append(jnp.asarray(np.tile(np.asarray(beta, np.float32), w_out)[None, :]))
        meta.append(dict(kh=kh, has_bn=has_bn, act=act, sh_identity=sh_identity))
        h, w_sp = h_out, w_out
    return tuple(operands), tuple(meta)


# ------------------------------ fused Pallas kernel ---------------------------

def _build_kernel(meta):
    def kernel(*refs):
        out_ref = refs[-1]
        a = refs[0][...]                       # (N*H0, W0*nc) f32, stays on-chip
        idx = 1
        for layer in meta:
            if layer["sh_identity"]:
                sh_ref = None
                g_ref = refs[idx]
                idx += 1
            else:
                sh_ref, g_ref = refs[idx], refs[idx + 1]
                idx += 2

            a16 = a.astype(jnp.bfloat16)       # bf16 MXU inputs, f32 accumulate
            if sh_ref is None:
                b_cat = a16
            else:
                # H-direction im2col = 0/1 row-selection matmuls (exact in bf16);
                # lane-concatenate the per-ki results (blocks are 128-aligned) so the
                # W-selection + channel contraction below is a single big MXU matmul.
                blocks = [
                    jnp.dot(sh_ref[ki], a16,
                            preferred_element_type=jnp.float32).astype(jnp.bfloat16)
                    for ki in range(layer["kh"])
                ]
                b_cat = blocks[0] if len(blocks) == 1 else jnp.concatenate(blocks, axis=1)

            y = jnp.dot(b_cat, g_ref[...], preferred_element_type=jnp.float32)
            # y: (N*Ho, Wo*Cout), lane-dense (256 wide for all internal layers)

            if layer["has_bn"]:
                bnm_ref, ga_ref, be_ref = refs[idx], refs[idx + 1], refs[idx + 2]
                idx += 3
                # One-pass batch statistics (training-mode BN: biased variance).
                # E[y] and E[y^2] come out of a single per-channel averaging matmul.
                s12 = jnp.concatenate(
                    [jnp.sum(y, axis=0, keepdims=True),
                     jnp.sum(y * y, axis=0, keepdims=True)], axis=0)      # (2, Wo*Cout)
                stats = jnp.dot(s12, bnm_ref[...], preferred_element_type=jnp.float32)
                mean = stats[0:1, :]
                msq = stats[1:2, :]
                var = jnp.maximum(msq - mean * mean, 0.0)
                inv = jax.lax.rsqrt(var + BN_EPS)
                y = (y - mean) * (ga_ref[...] * inv) + be_ref[...]

            if layer["act"] == "lrelu":
                y = jnp.where(y > 0, y, LRELU_SLOPE * y)
            else:                               # sigmoid head
                y = jax.nn.sigmoid(y)
            a = y
        out_ref[...] = a                        # (N, 1)
    return kernel


def netD_forward(x_nchw, operands, meta, batch, imgsize, nc):
    # NCHW -> lane-dense (N*H, W*C) layout expected by the fused kernel.
    a0 = jnp.transpose(x_nchw, (0, 2, 3, 1)).astype(jnp.float32)
    a0 = a0.reshape(batch * imgsize, imgsize * nc)
    n_in = 1 + len(operands)
    return pl.pallas_call(
        _build_kernel(meta),
        out_shape=jax.ShapeDtypeStruct((batch, 1), jnp.float32),
        in_specs=[pl.BlockSpec(memory_space=pltpu.MemorySpace.VMEM)] * n_in,
        out_specs=pl.BlockSpec(memory_space=pltpu.MemorySpace.VMEM),
    )(a0, *operands)


# ------------------------------ pure-JAX reference ----------------------------

def _reference_forward(x, params, stride0):
    def conv(x, w, stride, pad):
        return jax.lax.conv_general_dilated(
            x, w, (stride, stride), [(pad, pad), (pad, pad)],
            dimension_numbers=("NCHW", "OIHW", "NCHW"))

    def bn(x, g, b):
        m = jnp.mean(x, axis=(0, 2, 3), keepdims=True)
        v = jnp.mean((x - m) ** 2, axis=(0, 2, 3), keepdims=True)
        return (x - m) * jax.lax.rsqrt(v + BN_EPS) * g.reshape(1, -1, 1, 1) \
            + b.reshape(1, -1, 1, 1)

    def lrelu(x):
        return jnp.where(x > 0, x, LRELU_SLOPE * x)

    y = lrelu(conv(x, params["w_stem"], stride0, 0))
    y = lrelu(bn(conv(y, params["w1"], 2, 1), params["g1"], params["b1"]))
    y = lrelu(bn(conv(y, params["w2"], 2, 1), params["g2"], params["b2"]))
    y = lrelu(bn(conv(y, params["w3"], 2, 1), params["g3"], params["b3"]))
    y = jax.nn.sigmoid(conv(y, params["w4"], 1, 0))
    return y.reshape(-1, 1)


# ------------------------------------ main ------------------------------------

if __name__ == "__main__":
    nc, ndf, imgsize, batch = 3, 8, 32, 2

    key = jax.random.PRNGKey(0)
    k_in, k_par = jax.random.split(key)
    x = jax.random.normal(k_in, (batch, nc, imgsize, imgsize), dtype=jnp.float32)

    params, stride0 = init_netD_params(k_par, nc, ndf, imgsize)
    operands, meta = prepare_netD(params, batch, imgsize, stride0)

    fwd = jax.jit(lambda xx, ops: netD_forward(xx, ops, meta, batch, imgsize, nc))
    out = jax.block_until_ready(fwd(x, operands))

    assert out.shape == (batch, 1), out.shape
    assert bool(jnp.all(jnp.isfinite(out)))
    assert bool(jnp.all((out >= 0.0) & (out <= 1.0)))          # sigmoid output range

    # Numerical check against a pure-JAX f32 reference (bf16 MXU inputs -> loose tol).
    ref = _reference_forward(x, params, stride0)
    err = float(jnp.max(jnp.abs(out - ref)))
    assert err < 5e-2, f"max abs err vs reference: {err}"

    print("KERNEL_OK")
</pallas_src>

<mosaic_0001>
module attributes {stable_mosaic.version = 11 : i64} {
  func.func @kernel(%arg0: memref<64x96xf32, #tpu.memory_space<vmem>>, %arg1: memref<96x256xbf16, #tpu.memory_space<vmem>>, %arg2: memref<4x32x64xbf16, #tpu.memory_space<vmem>>, %arg3: memref<1024x256xbf16, #tpu.memory_space<vmem>>, %arg4: memref<256x256xf32, #tpu.memory_space<vmem>>, %arg5: memref<1x256xf32, #tpu.memory_space<vmem>>, %arg6: memref<1x256xf32, #tpu.memory_space<vmem>>, %arg7: memref<4x16x32xbf16, #tpu.memory_space<vmem>>, %arg8: memref<1024x256xbf16, #tpu.memory_space<vmem>>, %arg9: memref<256x256xf32, #tpu.memory_space<vmem>>, %arg10: memref<1x256xf32, #tpu.memory_space<vmem>>, %arg11: memref<1x256xf32, #tpu.memory_space<vmem>>, %arg12: memref<4x8x16xbf16, #tpu.memory_space<vmem>>, %arg13: memref<1024x256xbf16, #tpu.memory_space<vmem>>, %arg14: memref<256x256xf32, #tpu.memory_space<vmem>>, %arg15: memref<1x256xf32, #tpu.memory_space<vmem>>, %arg16: memref<1x256xf32, #tpu.memory_space<vmem>>, %arg17: memref<4x2x8xbf16, #tpu.memory_space<vmem>>, %arg18: memref<1024x1xbf16, #tpu.memory_space<vmem>>, %arg19: memref<2x1xf32, #tpu.memory_space<vmem>>) attributes {dimension_semantics = [], scalar_prefetch = 0 : i64, scratch_operands = 0 : i64, tpu.core_type = #tpu.core_type<tc>} {
    %c0 = arith.constant 0 : index
    %c0_0 = arith.constant 0 : index
    %0 = vector.load %arg0[%c0, %c0_0] : memref<64x96xf32, #tpu.memory_space<vmem>>, vector<64x96xf32>
    %1 = arith.truncf %0 : vector<64x96xf32> to vector<64x96xbf16>
    %c0_1 = arith.constant 0 : index
    %c0_2 = arith.constant 0 : index
    %2 = vector.load %arg1[%c0_1, %c0_2] : memref<96x256xbf16, #tpu.memory_space<vmem>>, vector<96x256xbf16>
    %cst = arith.constant dense<0.000000e+00> : vector<64x256xf32>
    %3 = tpu.matmul %1, %2, %cst {dimension_numbers = #tpu.dot_dimension_numbers<[1], [0], [0], [1], [0, 0, 1, 1], [], []>} : vector<64x96xbf16>, vector<96x256xbf16>, vector<64x256xf32> -> vector<64x256xf32>
    %cst_3 = arith.constant 0.000000e+00 : f32
    %4 = vector.broadcast %cst_3 : f32 to vector<64x256xf32>
    %5 = arith.cmpf ogt, %3, %4 : vector<64x256xf32>
    %cst_4 = arith.constant 2.000000e-01 : f32
    %6 = vector.broadcast %cst_4 : f32 to vector<64x256xf32>
    %7 = arith.mulf %6, %3 : vector<64x256xf32>
    %8 = arith.select %5, %3, %7 : vector<64x256xi1>, vector<64x256xf32>
    %9 = arith.truncf %8 : vector<64x256xf32> to vector<64x256xbf16>
    %c0_5 = arith.constant 0 : index
    %c0_6 = arith.constant 0 : index
    %c0_7 = arith.constant 0 : index
    %10 = vector.load %arg2[%c0_5, %c0_6, %c0_7] : memref<4x32x64xbf16, #tpu.memory_space<vmem>>, vector<1x32x64xbf16>
    %11 = vector.shape_cast %10 : vector<1x32x64xbf16> to vector<32x64xbf16>
    %cst_8 = arith.constant dense<0.000000e+00> : vector<32x256xf32>
    %12 = tpu.matmul %11, %9, %cst_8 {dimension_numbers = #tpu.dot_dimension_numbers<[1], [0], [0], [1], [0, 0, 1, 1], [], []>} : vector<32x64xbf16>, vector<64x256xbf16>, vector<32x256xf32> -> vector<32x256xf32>
    %13 = arith.truncf %12 : vector<32x256xf32> to vector<32x256xbf16>
    %c1 = arith.constant 1 : index
    %c0_9 = arith.constant 0 : index
    %c0_10 = arith.constant 0 : index
    %14 = vector.load %arg2[%c1, %c0_9, %c0_10] : memref<4x32x64xbf16, #tpu.memory_space<vmem>>, vector<1x32x64xbf16>
    %15 = vector.shape_cast %14 : vector<1x32x64xbf16> to vector<32x64xbf16>
    %cst_11 = arith.constant dense<0.000000e+00> : vector<32x256xf32>
    %16 = tpu.matmul %15, %9, %cst_11 {dimension_numbers = #tpu.dot_dimension_numbers<[1], [0], [0], [1], [0, 0, 1, 1], [], []>} : vector<32x64xbf16>, vector<64x256xbf16>, vector<32x256xf32> -> vector<32x256xf32>
    %17 = arith.truncf %16 : vector<32x256xf32> to vector<32x256xbf16>
    %c2 = arith.constant 2 : index
    %c0_12 = arith.constant 0 : index
    %c0_13 = arith.constant 0 : index
    %18 = vector.load %arg2[%c2, %c0_12, %c0_13] : memref<4x32x64xbf16, #tpu.memory_space<vmem>>, vector<1x32x64xbf16>
    %19 = vector.shape_cast %18 : vector<1x32x64xbf16> to vector<32x64xbf16>
    %cst_14 = arith.constant dense<0.000000e+00> : vector<32x256xf32>
    %20 = tpu.matmul %19, %9, %cst_14 {dimension_numbers = #tpu.dot_dimension_numbers<[1], [0], [0], [1], [0, 0, 1, 1], [], []>} : vector<32x64xbf16>, vector<64x256xbf16>, vector<32x256xf32> -> vector<32x256xf32>
    %21 = arith.truncf %20 : vector<32x256xf32> to vector<32x256xbf16>
    %c3 = arith.constant 3 : index
    %c0_15 = arith.constant 0 : index
    %c0_16 = arith.constant 0 : index
    %22 = vector.load %arg2[%c3, %c0_15, %c0_16] : memref<4x32x64xbf16, #tpu.memory_space<vmem>>, vector<1x32x64xbf16>
    %23 = vector.shape_cast %22 : vector<1x32x64xbf16> to vector<32x64xbf16>
    %cst_17 = arith.constant dense<0.000000e+00> : vector<32x256xf32>
    %24 = tpu.matmul %23, %9, %cst_17 {dimension_numbers = #tpu.dot_dimension_numbers<[1], [0], [0], [1], [0, 0, 1, 1], [], []>} : vector<32x64xbf16>, vector<64x256xbf16>, vector<32x256xf32> -> vector<32x256xf32>
    %25 = arith.truncf %24 : vector<32x256xf32> to vector<32x256xbf16>
    %26 = tpu.concatenate %13, %17, %21, %25 in 1 : vector<32x256xbf16>, vector<32x256xbf16>, vector<32x256xbf16>, vector<32x256xbf16> -> vector<32x1024xbf16>
    %c0_18 = arith.constant 0 : index
    %c0_19 = arith.constant 0 : index
    %27 = vector.load %arg3[%c0_18, %c0_19] : memref<1024x256xbf16, #tpu.memory_space<vmem>>, vector<1024x256xbf16>
    %cst_20 = arith.constant dense<0.000000e+00> : vector<32x256xf32>
    %28 = tpu.matmul %26, %27, %cst_20 {dimension_numbers = #tpu.dot_dimension_numbers<[1], [0], [0], [1], [0, 0, 1, 1], [], []>} : vector<32x1024xbf16>, vector<1024x256xbf16>, vector<32x256xf32> -> vector<32x256xf32>
    %cst_21 = arith.constant dense<0.000000e+00> : vector<256xf32>
    %29 = vector.multi_reduction <add>, %28, %cst_21 [0] : vector<32x256xf32> to vector<256xf32>
    %30 = vector.shape_cast %29 : vector<256xf32> to vector<1x256xf32>
    %31 = arith.mulf %28, %28 : vector<32x256xf32>
    %cst_22 = arith.constant dense<0.000000e+00> : vector<256xf32>
    %32 = vector.multi_reduction <add>, %31, %cst_22 [0] : vector<32x256xf32> to vector<256xf32>
    %33 = vector.shape_cast %32 : vector<256xf32> to vector<1x256xf32>
    %34 = tpu.concatenate %30, %33 in 0 : vector<1x256xf32>, vector<1x256xf32> -> vector<2x256xf32>
    %c0_23 = arith.constant 0 : index
    %c0_24 = arith.constant 0 : index
    %35 = vector.load %arg4[%c0_23, %c0_24] : memref<256x256xf32, #tpu.memory_space<vmem>>, vector<256x256xf32>
    %cst_25 = arith.constant dense<0.000000e+00> : vector<2x256xf32>
    %36 = tpu.matmul %34, %35, %cst_25 {dimension_numbers = #tpu.dot_dimension_numbers<[1], [0], [0], [1], [0, 0, 1, 1], [], []>} : vector<2x256xf32>, vector<256x256xf32>, vector<2x256xf32> -> vector<2x256xf32>
    %37 = vector.extract_strided_slice %36 {offsets = [0, 0], sizes = [1, 256], strides = [1, 1]} : vector<2x256xf32> to vector<1x256xf32>
    %38 = vector.extract_strided_slice %36 {offsets = [1, 0], sizes = [1, 256], strides = [1, 1]} : vector<2x256xf32> to vector<1x256xf32>
    %39 = arith.mulf %37, %37 : vector<1x256xf32>
    %40 = arith.subf %38, %39 : vector<1x256xf32>
    %cst_26 = arith.constant 0.000000e+00 : f32
    %41 = vector.broadcast %cst_26 : f32 to vector<1x256xf32>
    %42 = arith.maximumf %40, %41 : vector<1x256xf32>
    %cst_27 = arith.constant 9.99999974E-6 : f32
    %43 = vector.broadcast %cst_27 : f32 to vector<1x256xf32>
    %44 = arith.addf %42, %43 : vector<1x256xf32>
    %45 = math.rsqrt %44 : vector<1x256xf32>
    %46 = vector.broadcast %37 : vector<1x256xf32> to vector<32x256xf32>
    %47 = arith.subf %28, %46 : vector<32x256xf32>
    %c0_28 = arith.constant 0 : index
    %c0_29 = arith.constant 0 : index
    %48 = vector.load %arg5[%c0_28, %c0_29] : memref<1x256xf32, #tpu.memory_space<vmem>>, vector<1x256xf32>
    %49 = arith.mulf %48, %45 : vector<1x256xf32>
    %50 = vector.broadcast %49 : vector<1x256xf32> to vector<32x256xf32>
    %51 = arith.mulf %47, %50 : vector<32x256xf32>
    %c0_30 = arith.constant 0 : index
    %c0_31 = arith.constant 0 : index
    %52 = vector.load %arg6[%c0_30, %c0_31] : memref<1x256xf32, #tpu.memory_space<vmem>>, vector<1x256xf32>
    %53 = vector.broadcast %52 : vector<1x256xf32> to vector<32x256xf32>
    %54 = arith.addf %51, %53 : vector<32x256xf32>
    %cst_32 = arith.constant 0.000000e+00 : f32
    %55 = vector.broadcast %cst_32 : f32 to vector<32x256xf32>
    %56 = arith.cmpf ogt, %54, %55 : vector<32x256xf32>
    %cst_33 = arith.constant 2.000000e-01 : f32
    %57 = vector.broadcast %cst_33 : f32 to vector<32x256xf32>
    %58 = arith.mulf %57, %54 : vector<32x256xf32>
    %59 = arith.select %56, %54, %58 : vector<32x256xi1>, vector<32x256xf32>
    %60 = arith.truncf %59 : vector<32x256xf32> to vector<32x256xbf16>
    %c0_34 = arith.constant 0 : index
    %c0_35 = arith.constant 0 : index
    %c0_36 = arith.constant 0 : index
    %61 = vector.load %arg7[%c0_34, %c0_35, %c0_36] : memref<4x16x32xbf16, #tpu.memory_space<vmem>>, vector<1x16x32xbf16>
    %62 = vector.shape_cast %61 : vector<1x16x32xbf16> to vector<16x32xbf16>
    %cst_37 = arith.constant dense<0.000000e+00> : vector<16x256xf32>
    %63 = tpu.matmul %62, %60, %cst_37 {dimension_numbers = #tpu.dot_dimension_numbers<[1], [0], [0], [1], [0, 0, 1, 1], [], []>} : vector<16x32xbf16>, vector<32x256xbf16>, vector<16x256xf32> -> vector<16x256xf32>
    %64 = arith.truncf %63 : vector<16x256xf32> to vector<16x256xbf16>
    %c1_38 = arith.constant 1 : index
    %c0_39 = arith.constant 0 : index
    %c0_40 = arith.constant 0 : index
    %65 = vector.load %arg7[%c1_38, %c0_39, %c0_40] : memref<4x16x32xbf16, #tpu.memory_space<vmem>>, vector<1x16x32xbf16>
    %66 = vector.shape_cast %65 : vector<1x16x32xbf16> to vector<16x32xbf16>
    %cst_41 = arith.constant dense<0.000000e+00> : vector<16x256xf32>
    %67 = tpu.matmul %66, %60, %cst_41 {dimension_numbers = #tpu.dot_dimension_numbers<[1], [0], [0], [1], [0, 0, 1, 1], [], []>} : vector<16x32xbf16>, vector<32x256xbf16>, vector<16x256xf32> -> vector<16x256xf32>
    %68 = arith.truncf %67 : vector<16x256xf32> to vector<16x256xbf16>
    %c2_42 = arith.constant 2 : index
    %c0_43 = arith.constant 0 : index
    %c0_44 = arith.constant 0 : index
    %69 = vector.load %arg7[%c2_42, %c0_43, %c0_44] : memref<4x16x32xbf16, #tpu.memory_space<vmem>>, vector<1x16x32xbf16>
    %70 = vector.shape_cast %69 : vector<1x16x32xbf16> to vector<16x32xbf16>
    %cst_45 = arith.constant dense<0.000000e+00> : vector<16x256xf32>
    %71 = tpu.matmul %70, %60, %cst_45 {dimension_numbers = #tpu.dot_dimension_numbers<[1], [0], [0], [1], [0, 0, 1, 1], [], []>} : vector<16x32xbf16>, vector<32x256xbf16>, vector<16x256xf32> -> vector<16x256xf32>
    %72 = arith.truncf %71 : vector<16x256xf32> to vector<16x256xbf16>
    %c3_46 = arith.constant 3 : index
    %c0_47 = arith.constant 0 : index
    %c0_48 = arith.constant 0 : index
    %73 = vector.load %arg7[%c3_46, %c0_47, %c0_48] : memref<4x16x32xbf16, #tpu.memory_space<vmem>>, vector<1x16x32xbf16>
    %74 = vector.shape_cast %73 : vector<1x16x32xbf16> to vector<16x32xbf16>
    %cst_49 = arith.constant dense<0.000000e+00> : vector<16x256xf32>
    %75 = tpu.matmul %74, %60, %cst_49 {dimension_numbers = #tpu.dot_dimension_numbers<[1], [0], [0], [1], [0, 0, 1, 1], [], []>} : vector<16x32xbf16>, vector<32x256xbf16>, vector<16x256xf32> -> vector<16x256xf32>
    %76 = arith.truncf %75 : vector<16x256xf32> to vector<16x256xbf16>
    %77 = tpu.concatenate %64, %68, %72, %76 in 1 : vector<16x256xbf16>, vector<16x256xbf16>, vector<16x256xbf16>, vector<16x256xbf16> -> vector<16x1024xbf16>
    %c0_50 = arith.constant 0 : index
    %c0_51 = arith.constant 0 : index
    %78 = vector.load %arg8[%c0_50, %c0_51] : memref<1024x256xbf16, #tpu.memory_space<vmem>>, vector<1024x256xbf16>
    %cst_52 = arith.constant dense<0.000000e+00> : vector<16x256xf32>
    %79 = tpu.matmul %77, %78, %cst_52 {dimension_numbers = #tpu.dot_dimension_numbers<[1], [0], [0], [1], [0, 0, 1, 1], [], []>} : vector<16x1024xbf16>, vector<1024x256xbf16>, vector<16x256xf32> -> vector<16x256xf32>
    %cst_53 = arith.constant dense<0.000000e+00> : vector<256xf32>
    %80 = vector.multi_reduction <add>, %79, %cst_53 [0] : vector<16x256xf32> to vector<256xf32>
    %81 = vector.shape_cast %80 : vector<256xf32> to vector<1x256xf32>
    %82 = arith.mulf %79, %79 : vector<16x256xf32>
    %cst_54 = arith.constant dense<0.000000e+00> : vector<256xf32>
    %83 = vector.multi_reduction <add>, %82, %cst_54 [0] : vector<16x256xf32> to vector<256xf32>
    %84 = vector.shape_cast %83 : vector<256xf32> to vector<1x256xf32>
    %85 = tpu.concatenate %81, %84 in 0 : vector<1x256xf32>, vector<1x256xf32> -> vector<2x256xf32>
    %c0_55 = arith.constant 0 : index
    %c0_56 = arith.constant 0 : index
    %86 = vector.load %arg9[%c0_55, %c0_56] : memref<256x256xf32, #tpu.memory_space<vmem>>, vector<256x256xf32>
    %cst_57 = arith.constant dense<0.000000e+00> : vector<2x256xf32>
    %87 = tpu.matmul %85, %86, %cst_57 {dimension_numbers = #tpu.dot_dimension_numbers<[1], [0], [0], [1], [0, 0, 1, 1], [], []>} : vector<2x256xf32>, vector<256x256xf32>, vector<2x256xf32> -> vector<2x256xf32>
    %88 = vector.extract_strided_slice %87 {offsets = [0, 0], sizes = [1, 256], strides = [1, 1]} : vector<2x256xf32> to vector<1x256xf32>
    %89 = vector.extract_strided_slice %87 {offsets = [1, 0], sizes = [1, 256], strides = [1, 1]} : vector<2x256xf32> to vector<1x256xf32>
    %90 = arith.mulf %88, %88 : vector<1x256xf32>
    %91 = arith.subf %89, %90 : vector<1x256xf32>
    %cst_58 = arith.constant 0.000000e+00 : f32
    %92 = vector.broadcast %cst_58 : f32 to vector<1x256xf32>
    %93 = arith.maximumf %91, %92 : vector<1x256xf32>
    %cst_59 = arith.constant 9.99999974E-6 : f32
    %94 = vector.broadcast %cst_59 : f32 to vector<1x256xf32>
    %95 = arith.addf %93, %94 : vector<1x256xf32>
    %96 = math.rsqrt %95 : vector<1x256xf32>
    %97 = vector.broadcast %88 : vector<1x256xf32> to vector<16x256xf32>
    %98 = arith.subf %79, %97 : vector<16x256xf32>
    %c0_60 = arith.constant 0 : index
    %c0_61 = arith.constant 0 : index
    %99 = vector.load %arg10[%c0_60, %c0_61] : memref<1x256xf32, #tpu.memory_space<vmem>>, vector<1x256xf32>
    %100 = arith.mulf %99, %96 : vector<1x256xf32>
    %101 = vector.broadcast %100 : vector<1x256xf32> to vector<16x256xf32>
    %102 = arith.mulf %98, %101 : vector<16x256xf32>
    %c0_62 = arith.constant 0 : index
    %c0_63 = arith.constant 0 : index
    %103 = vector.load %arg11[%c0_62, %c0_63] : memref<1x256xf32, #tpu.memory_space<vmem>>, vector<1x256xf32>
    %104 = vector.broadcast %103 : vector<1x256xf32> to vector<16x256xf32>
    %105 = arith.addf %102, %104 : vector<16x256xf32>
    %cst_64 = arith.constant 0.000000e+00 : f32
    %106 = vector.broadcast %cst_64 : f32 to vector<16x256xf32>
    %107 = arith.cmpf ogt, %105, %106 : vector<16x256xf32>
    %cst_65 = arith.constant 2.000000e-01 : f32
    %108 = vector.broadcast %cst_65 : f32 to vector<16x256xf32>
    %109 = arith.mulf %108, %105 : vector<16x256xf32>
    %110 = arith.select %107, %105, %109 : vector<16x256xi1>, vector<16x256xf32>
    %111 = arith.truncf %110 : vector<16x256xf32> to vector<16x256xbf16>
    %c0_66 = arith.constant 0 : index
    %c0_67 = arith.constant 0 : index
    %c0_68 = arith.constant 0 : index
    %112 = vector.load %arg12[%c0_66, %c0_67, %c0_68] : memref<4x8x16xbf16, #tpu.memory_space<vmem>>, vector<1x8x16xbf16>
    %113 = vector.shape_cast %112 : vector<1x8x16xbf16> to vector<8x16xbf16>
    %cst_69 = arith.constant dense<0.000000e+00> : vector<8x256xf32>
    %114 = tpu.matmul %113, %111, %cst_69 {dimension_numbers = #tpu.dot_dimension_numbers<[1], [0], [0], [1], [0, 0, 1, 1], [], []>} : vector<8x16xbf16>, vector<16x256xbf16>, vector<8x256xf32> -> vector<8x256xf32>
    %115 = arith.truncf %114 : vector<8x256xf32> to vector<8x256xbf16>
    %c1_70 = arith.constant 1 : index
    %c0_71 = arith.constant 0 : index
    %c0_72 = arith.constant 0 : index
    %116 = vector.load %arg12[%c1_70, %c0_71, %c0_72] : memref<4x8x16xbf16, #tpu.memory_space<vmem>>, vector<1x8x16xbf16>
    %117 = vector.shape_cast %116 : vector<1x8x16xbf16> to vector<8x16xbf16>
    %cst_73 = arith.constant dense<0.000000e+00> : vector<8x256xf32>
    %118 = tpu.matmul %117, %111, %cst_73 {dimension_numbers = #tpu.dot_dimension_numbers<[1], [0], [0], [1], [0, 0, 1, 1], [], []>} : vector<8x16xbf16>, vector<16x256xbf16>, vector<8x256xf32> -> vector<8x256xf32>
    %119 = arith.truncf %118 : vector<8x256xf32> to vector<8x256xbf16>
    %c2_74 = arith.constant 2 : index
    %c0_75 = arith.constant 0 : index
    %c0_76 = arith.constant 0 : index
    %120 = vector.load %arg12[%c2_74, %c0_75, %c0_76] : memref<4x8x16xbf16, #tpu.memory_space<vmem>>, vector<1x8x16xbf16>
    %121 = vector.shape_cast %120 : vector<1x8x16xbf16> to vector<8x16xbf16>
    %cst_77 = arith.constant dense<0.000000e+00> : vector<8x256xf32>
    %122 = tpu.matmul %121, %111, %cst_77 {dimension_numbers = #tpu.dot_dimension_numbers<[1], [0], [0], [1], [0, 0, 1, 1], [], []>} : vector<8x16xbf16>, vector<16x256xbf16>, vector<8x256xf32> -> vector<8x256xf32>
    %123 = arith.truncf %122 : vector<8x256xf32> to vector<8x256xbf16>
    %c3_78 = arith.constant 3 : index
    %c0_79 = arith.constant 0 : index
    %c0_80 = arith.constant 0 : index
    %124 = vector.load %arg12[%c3_78, %c0_79, %c0_80] : memref<4x8x16xbf16, #tpu.memory_space<vmem>>, vector<1x8x16xbf16>
    %125 = vector.shape_cast %124 : vector<1x8x16xbf16> to vector<8x16xbf16>
    %cst_81 = arith.constant dense<0.000000e+00> : vector<8x256xf32>
    %126 = tpu.matmul %125, %111, %cst_81 {dimension_numbers = #tpu.dot_dimension_numbers<[1], [0], [0], [1], [0, 0, 1, 1], [], []>} : vector<8x16xbf16>, vector<16x256xbf16>, vector<8x256xf32> -> vector<8x256xf32>
    %127 = arith.truncf %126 : vector<8x256xf32> to vector<8x256xbf16>
    %128 = tpu.concatenate %115, %119, %123, %127 in 1 : vector<8x256xbf16>, vector<8x256xbf16>, vector<8x256xbf16>, vector<8x256xbf16> -> vector<8x1024xbf16>
    %c0_82 = arith.constant 0 : index
    %c0_83 = arith.constant 0 : index
    %129 = vector.load %arg13[%c0_82, %c0_83] : memref<1024x256xbf16, #tpu.memory_space<vmem>>, vector<1024x256xbf16>
    %cst_84 = arith.constant dense<0.000000e+00> : vector<8x256xf32>
    %130 = tpu.matmul %128, %129, %cst_84 {dimension_numbers = #tpu.dot_dimension_numbers<[1], [0], [0], [1], [0, 0, 1, 1], [], []>} : vector<8x1024xbf16>, vector<1024x256xbf16>, vector<8x256xf32> -> vector<8x256xf32>
    %cst_85 = arith.constant dense<0.000000e+00> : vector<256xf32>
    %131 = vector.multi_reduction <add>, %130, %cst_85 [0] : vector<8x256xf32> to vector<256xf32>
    %132 = vector.shape_cast %131 : vector<256xf32> to vector<1x256xf32>
    %133 = arith.mulf %130, %130 : vector<8x256xf32>
    %cst_86 = arith.constant dense<0.000000e+00> : vector<256xf32>
    %134 = vector.multi_reduction <add>, %133, %cst_86 [0] : vector<8x256xf32> to vector<256xf32>
    %135 = vector.shape_cast %134 : vector<256xf32> to vector<1x256xf32>
    %136 = tpu.concatenate %132, %135 in 0 : vector<1x256xf32>, vector<1x256xf32> -> vector<2x256xf32>
    %c0_87 = arith.constant 0 : index
    %c0_88 = arith.constant 0 : index
    %137 = vector.load %arg14[%c0_87, %c0_88] : memref<256x256xf32, #tpu.memory_space<vmem>>, vector<256x256xf32>
    %cst_89 = arith.constant dense<0.000000e+00> : vector<2x256xf32>
    %138 = tpu.matmul %136, %137, %cst_89 {dimension_numbers = #tpu.dot_dimension_numbers<[1], [0], [0], [1], [0, 0, 1, 1], [], []>} : vector<2x256xf32>, vector<256x256xf32>, vector<2x256xf32> -> vector<2x256xf32>
    %139 = vector.extract_strided_slice %138 {offsets = [0, 0], sizes = [1, 256], strides = [1, 1]} : vector<2x256xf32> to vector<1x256xf32>
    %140 = vector.extract_strided_slice %138 {offsets = [1, 0], sizes = [1, 256], strides = [1, 1]} : vector<2x256xf32> to vector<1x256xf32>
    %141 = arith.mulf %139, %139 : vector<1x256xf32>
    %142 = arith.subf %140, %141 : vector<1x256xf32>
    %cst_90 = arith.constant 0.000000e+00 : f32
    %143 = vector.broadcast %cst_90 : f32 to vector<1x256xf32>
    %144 = arith.maximumf %142, %143 : vector<1x256xf32>
    %cst_91 = arith.constant 9.99999974E-6 : f32
    %145 = vector.broadcast %cst_91 : f32 to vector<1x256xf32>
    %146 = arith.addf %144, %145 : vector<1x256xf32>
    %147 = math.rsqrt %146 : vector<1x256xf32>
    %148 = vector.broadcast %139 : vector<1x256xf32> to vector<8x256xf32>
    %149 = arith.subf %130, %148 : vector<8x256xf32>
    %c0_92 = arith.constant 0 : index
    %c0_93 = arith.constant 0 : index
    %150 = vector.load %arg15[%c0_92, %c0_93] : memref<1x256xf32, #tpu.memory_space<vmem>>, vector<1x256xf32>
    %151 = arith.mulf %150, %147 : vector<1x256xf32>
    %152 = vector.broadcast %151 : vector<1x256xf32> to vector<8x256xf32>
    %153 = arith.mulf %149, %152 : vector<8x256xf32>
    %c0_94 = arith.constant 0 : index
    %c0_95 = arith.constant 0 : index
    %154 = vector.load %arg16[%c0_94, %c0_95] : memref<1x256xf32, #tpu.memory_space<vmem>>, vector<1x256xf32>
    %155 = vector.broadcast %154 : vector<1x256xf32> to vector<8x256xf32>
    %156 = arith.addf %153, %155 : vector<8x256xf32>
    %cst_96 = arith.constant 0.000000e+00 : f32
    %157 = vector.broadcast %cst_96 : f32 to vector<8x256xf32>
    %158 = arith.cmpf ogt, %156, %157 : vector<8x256xf32>
    %cst_97 = arith.constant 2.000000e-01 : f32
    %159 = vector.broadcast %cst_97 : f32 to vector<8x256xf32>
    %160 = arith.mulf %159, %156 : vector<8x256xf32>
    %161 = arith.select %158, %156, %160 : vector<8x256xi1>, vector<8x256xf32>
    %162 = arith.truncf %161 : vector<8x256xf32> to vector<8x256xbf16>
    %c0_98 = arith.constant 0 : index
    %c0_99 = arith.constant 0 : index
    %c0_100 = arith.constant 0 : index
    %163 = vector.load %arg17[%c0_98, %c0_99, %c0_100] : memref<4x2x8xbf16, #tpu.memory_space<vmem>>, vector<1x2x8xbf16>
    %164 = vector.shape_cast %163 : vector<1x2x8xbf16> to vector<2x8xbf16>
    %cst_101 = arith.constant dense<0.000000e+00> : vector<2x256xf32>
    %165 = tpu.matmul %164, %162, %cst_101 {dimension_numbers = #tpu.dot_dimension_numbers<[1], [0], [0], [1], [0, 0, 1, 1], [], []>} : vector<2x8xbf16>, vector<8x256xbf16>, vector<2x256xf32> -> vector<2x256xf32>
    %166 = arith.truncf %165 : vector<2x256xf32> to vector<2x256xbf16>
    %c1_102 = arith.constant 1 : index
    %c0_103 = arith.constant 0 : index
    %c0_104 = arith.constant 0 : index
    %167 = vector.load %arg17[%c1_102, %c0_103, %c0_104] : memref<4x2x8xbf16, #tpu.memory_space<vmem>>, vector<1x2x8xbf16>
    %168 = vector.shape_cast %167 : vector<1x2x8xbf16> to vector<2x8xbf16>
    %cst_105 = arith.constant dense<0.000000e+00> : vector<2x256xf32>
    %169 = tpu.matmul %168, %162, %cst_105 {dimension_numbers = #tpu.dot_dimension_numbers<[1], [0], [0], [1], [0, 0, 1, 1], [], []>} : vector<2x8xbf16>, vector<8x256xbf16>, vector<2x256xf32> -> vector<2x256xf32>
    %170 = arith.truncf %169 : vector<2x256xf32> to vector<2x256xbf16>
    %c2_106 = arith.constant 2 : index
    %c0_107 = arith.constant 0 : index
    %c0_108 = arith.constant 0 : index
    %171 = vector.load %arg17[%c2_106, %c0_107, %c0_108] : memref<4x2x8xbf16, #tpu.memory_space<vmem>>, vector<1x2x8xbf16>
    %172 = vector.shape_cast %171 : vector<1x2x8xbf16> to vector<2x8xbf16>
    %cst_109 = arith.constant dense<0.000000e+00> : vector<2x256xf32>
    %173 = tpu.matmul %172, %162, %cst_109 {dimension_numbers = #tpu.dot_dimension_numbers<[1], [0], [0], [1], [0, 0, 1, 1], [], []>} : vector<2x8xbf16>, vector<8x256xbf16>, vector<2x256xf32> -> vector<2x256xf32>
    %174 = arith.truncf %173 : vector<2x256xf32> to vector<2x256xbf16>
    %c3_110 = arith.constant 3 : index
    %c0_111 = arith.constant 0 : index
    %c0_112 = arith.constant 0 : index
    %175 = vector.load %arg17[%c3_110, %c0_111, %c0_112] : memref<4x2x8xbf16, #tpu.memory_space<vmem>>, vector<1x2x8xbf16>
    %176 = vector.shape_cast %175 : vector<1x2x8xbf16> to vector<2x8xbf16>
    %cst_113 = arith.constant dense<0.000000e+00> : vector<2x256xf32>
    %177 = tpu.matmul %176, %162, %cst_113 {dimension_numbers = #tpu.dot_dimension_numbers<[1], [0], [0], [1], [0, 0, 1, 1], [], []>} : vector<2x8xbf16>, vector<8x256xbf16>, vector<2x256xf32> -> vector<2x256xf32>
    %178 = arith.truncf %177 : vector<2x256xf32> to vector<2x256xbf16>
    %179 = tpu.concatenate %166, %170, %174, %178 in 1 : vector<2x256xbf16>, vector<2x256xbf16>, vector<2x256xbf16>, vector<2x256xbf16> -> vector<2x1024xbf16>
    %c0_114 = arith.constant 0 : index
    %c0_115 = arith.constant 0 : index
    %180 = vector.load %arg18[%c0_114, %c0_115] : memref<1024x1xbf16, #tpu.memory_space<vmem>>, vector<1024x1xbf16>
    %cst_116 = arith.constant dense<0.000000e+00> : vector<2x1xf32>
    %181 = tpu.matmul %179, %180, %cst_116 {dimension_numbers = #tpu.dot_dimension_numbers<[1], [0], [0], [1], [0, 0, 1, 1], [], []>} : vector<2x1024xbf16>, vector<1024x1xbf16>, vector<2x1xf32> -> vector<2x1xf32>
    %182 = arith.negf %181 : vector<2x1xf32>
    %183 = math.exp %182 : vector<2x1xf32>
    %cst_117 = arith.constant 1.000000e+00 : f32
    %184 = vector.broadcast %cst_117 : f32 to vector<2x1xf32>
    %185 = arith.addf %184, %183 : vector<2x1xf32>
    %186 = arith.divf %184, %185 : vector<2x1xf32>
    %c0_118 = arith.constant 0 : index
    %c0_119 = arith.constant 0 : index
    %187 = vector.load %arg19[%c0_118, %c0_119] : memref<2x1xf32, #tpu.memory_space<vmem>>, vector<2x1xf32>
    tpu.vector_store %arg19[%c0_118, %c0_119], %186 {strides = array<i32>} : memref<2x1xf32, #tpu.memory_space<vmem>>, vector<2x1xf32>,
    return
  }
}

</mosaic_0001>

<llo_original>
// kernel: _lambda_.1
$region0: #{_lambda_.1}
  #allocation0 [shape = 'u32[]', space=smem, size = 0x4, offset = 0x4, fixed_abs, tag = 'smem constant byte address 0x4 - core index']
  #allocation1 [shape = 'u32[144,128]{1,0:T(1,128)}', space=vmem, size = 0x12000, scoped, tag = 'internal scratch']
  %s0 = inlined_call_operand.vmem [shape: f32[64,96], index: 0, kind: input, shape index: {}]
  %s1 = inlined_call_operand.vmem [shape: bf16[96,256], index: 1, kind: input, shape index: {}]
  %s2 = inlined_call_operand.vmem [shape: bf16[4,32,64], index: 2, kind: input, shape index: {}]
  %s3 = inlined_call_operand.vmem [shape: bf16[1024,256], index: 3, kind: input, shape index: {}]
  %s4 = inlined_call_operand.hbm [shape: f32[256,256], index: 4, kind: input, shape index: {}]
  %s5 = inlined_call_operand.vmem [shape: f32[1,256], index: 5, kind: input, shape index: {}]
  %s6 = inlined_call_operand.vmem [shape: f32[1,256], index: 6, kind: input, shape index: {}]
  %s7 = inlined_call_operand.vmem [shape: bf16[4,16,32], index: 7, kind: input, shape index: {}]
  %s8 = inlined_call_operand.hbm [shape: bf16[1024,256], index: 8, kind: input, shape index: {}]
  %s9 = inlined_call_operand.hbm [shape: f32[256,256], index: 9, kind: input, shape index: {}]
  %s10 = inlined_call_operand.vmem [shape: f32[1,256], index: 10, kind: input, shape index: {}]
  %s11 = inlined_call_operand.vmem [shape: f32[1,256], index: 11, kind: input, shape index: {}]
  %s12 = inlined_call_operand.vmem [shape: bf16[4,8,16], index: 12, kind: input, shape index: {}]
  %s13 = inlined_call_operand.hbm [shape: bf16[1024,256], index: 13, kind: input, shape index: {}]
  %s14 = inlined_call_operand.hbm [shape: f32[256,256], index: 14, kind: input, shape index: {}]
  %s15 = inlined_call_operand.vmem [shape: f32[1,256], index: 15, kind: input, shape index: {}]
  %s16 = inlined_call_operand.vmem [shape: f32[1,256], index: 16, kind: input, shape index: {}]
  %s17 = inlined_call_operand.vmem [shape: bf16[4,2,8], index: 17, kind: input, shape index: {}]
  %s18 = inlined_call_operand.vmem [shape: bf16[1024,1], index: 18, kind: input, shape index: {}]
  %s19 = inlined_call_operand.vmem [shape: f32[2,1], index: 19, kind: output, shape index: {}]
  %s20 = sld [smem:[#allocation0]]
  $region106: #{_lambda_.1} parent=0
    _
  %s22 = ssub.s32 1, %s20
  %s23 = scalar_select 0, %s22, %s20
  $region1: #{_lambda_.1} parent=0
    #allocation2 [shape = 'u8[262144]{0}', space=vmem, size = 0x40000, scoped, tag = 'input window, operand 4, single buffered']
    #allocation3 [shape = 's32[1]{0}', space=sflag, size = 0x4, scoped, tag = 'scoped memory for _lambda_.1']
    #allocation4 [shape = 'u8[524288]{0}', space=vmem, size = 0x80000, scoped, tag = 'input window, operand 8, single buffered']
    #allocation5 [shape = 's32[1]{0}', space=sflag, size = 0x4, scoped, tag = 'scoped memory for _lambda_.1']
    #allocation6 [shape = 'u8[262144]{0}', space=vmem, size = 0x40000, scoped, tag = 'input window, operand 9, single buffered']
    #allocation7 [shape = 'u8[524288]{0}', space=vmem, size = 0x80000, scoped, tag = 'input window, operand 13, single buffered']
    #allocation8 [shape = 's32[1]{0}', space=sflag, size = 0x4, scoped, tag = 'scoped memory for _lambda_.1']
    #allocation9 [shape = 'u8[262144]{0}', space=vmem, size = 0x40000, scoped, tag = 'input window, operand 14, single buffered']
    %24 = vsyncpa [#allocation3], 0
    %25 = vsyncpa [#allocation5], 0
    %26 = vsyncpa [#allocation8], 0
    // Predicated region
    $region2: #{_lambda_.1} parent=1 // pred_check
      _
    $region3: #{_lambda_.1} parent=1 // pred_check_branch
      %28 = sbr.rel (0) target = $region5
    $region4: #{_lambda_.1} parent=1 // pred_region
      _
    $region5: #{_lambda_.1} parent=1 // pred_fallthru
      _
    // Predicated region
    $region6: #{_lambda_.1} parent=1 // pred_check
      _
    $region7: #{_lambda_.1} parent=1 // pred_check_branch
      %30 = sbr.rel (0) target = $region9
    $region8: #{_lambda_.1} parent=1 // pred_region
      _
    $region9: #{_lambda_.1} parent=1 // pred_fallthru
      _
    // Predicated region
    $region10: #{_lambda_.1} parent=1 // pred_check
      _
    $region11: #{_lambda_.1} parent=1 // pred_check_branch
      %32 = sbr.rel (0) target = $region13
    $region12: #{_lambda_.1} parent=1 // pred_region
      _
    $region13: #{_lambda_.1} parent=1 // pred_fallthru
      _
    // Predicated region
    $region14: #{_lambda_.1} parent=1 // pred_check
      _
    $region15: #{_lambda_.1} parent=1 // pred_check_branch
      %34 = sbr.rel (0) target = $region17
    $region16: #{_lambda_.1} parent=1 // pred_region
      _
    $region17: #{_lambda_.1} parent=1 // pred_fallthru
      _
    // Predicated region
    $region18: #{_lambda_.1} parent=1 // pred_check
      _
    $region19: #{_lambda_.1} parent=1 // pred_check_branch
      %36 = sbr.rel (0) target = $region21
    $region20: #{_lambda_.1} parent=1 // pred_region
      %s38 = ssub.s32 8192, 8192
      %39 = vsyncadd [#allocation3], %s38
      %s40 = sshll.u32 [#allocation2], 4
      %s41 = int_to_ptr.vmem [resolvable:$true] %s40
      %46 = dma.hbm_to_vmem [thread:$0]  %s4, 8192, %s41, [#allocation3], 256, 256, 16
    $region21: #{_lambda_.1} parent=1 // pred_fallthru
      _
    // Predicated region
    $region22: #{_lambda_.1} parent=1 // pred_check
      _
    $region23: #{_lambda_.1} parent=1 // pred_check_branch
      %48 = sbr.rel (0) target = $region25
    $region24: #{_lambda_.1} parent=1 // pred_region
      _
    $region25: #{_lambda_.1} parent=1 // pred_fallthru
      _
    // Predicated region
    $region26: #{_lambda_.1} parent=1 // pred_check
      _
    $region27: #{_lambda_.1} parent=1 // pred_check_branch
      %50 = sbr.rel (0) target = $region29
    $region28: #{_lambda_.1} parent=1 // pred_region
      _
    $region29: #{_lambda_.1} parent=1 // pred_fallthru
      _
    // Predicated region
    $region30: #{_lambda_.1} parent=1 // pred_check
      _
    $region31: #{_lambda_.1} parent=1 // pred_check_branch
      %52 = sbr.rel (0) target = $region33
    $region32: #{_lambda_.1} parent=1 // pred_region
      _
    $region33: #{_lambda_.1} parent=1 // pred_fallthru
      _
    // Predicated region
    $region34: #{_lambda_.1} parent=1 // pred_check
      _
    $region35: #{_lambda_.1} parent=1 // pred_check_branch
      %54 = sbr.rel (0) target = $region37
    $region36: #{_lambda_.1} parent=1 // pred_region
      %s56 = ssub.s32 16384, 16384
      %57 = vsyncadd [#allocation5], %s56
      %s58 = sshll.u32 [#allocation4], 4
      %s59 = int_to_ptr.vmem [resolvable:$true] %s58
      %64 = dma.hbm_to_vmem [thread:$0]  %s8, 16384, %s59, [#allocation5], 128, 128, 8
    $region37: #{_lambda_.1} parent=1 // pred_fallthru
      _
    // Predicated region
    $region38: #{_lambda_.1} parent=1 // pred_check
      _
    $region39: #{_lambda_.1} parent=1 // pred_check_branch
      %66 = sbr.rel (0) target = $region41
    $region40: #{_lambda_.1} parent=1 // pred_region
      %s68 = ssub.s32 8192, 8192
      %69 = vsyncadd [#allocation5], %s68
      %s70 = sshll.u32 [#allocation6], 4
      %s71 = int_to_ptr.vmem [resolvable:$true] %s70
      %76 = dma.hbm_to_vmem [thread:$0]  %s9, 8192, %s71, [#allocation5], 256, 256, 16
    $region41: #{_lambda_.1} parent=1 // pred_fallthru
      _
    // Predicated region
    $region42: #{_lambda_.1} parent=1 // pred_check
      _
    $region43: #{_lambda_.1} parent=1 // pred_check_branch
      %78 = sbr.rel (0) target = $region45
    $region44: #{_lambda_.1} parent=1 // pred_region
      _
    $region45: #{_lambda_.1} parent=1 // pred_fallthru
      _
    // Predicated region
    $region46: #{_lambda_.1} parent=1 // pred_check
      _
    $region47: #{_lambda_.1} parent=1 // pred_check_branch
      %80 = sbr.rel (0) target = $region49
    $region48: #{_lambda_.1} parent=1 // pred_region
      _
    $region49: #{_lambda_.1} parent=1 // pred_fallthru
      _
    // Predicated region
    $region50: #{_lambda_.1} parent=1 // pred_check
      _
    $region51: #{_lambda_.1} parent=1 // pred_check_branch
      %82 = sbr.rel (0) target = $region53
    $region52: #{_lambda_.1} parent=1 // pred_region
      _
    $region53: #{_lambda_.1} parent=1 // pred_fallthru
      _
    // Predicated region
    $region54: #{_lambda_.1} parent=1 // pred_check
      _
    $region55: #{_lambda_.1} parent=1 // pred_check_branch
      %84 = sbr.rel (0) target = $region57
    $region56: #{_lambda_.1} parent=1 // pred_region
      %s86 = ssub.s32 16384, 16384
      %87 = vsyncadd [#allocation8], %s86
      %s88 = sshll.u32 [#allocation7], 4
      %s89 = int_to_ptr.vmem [resolvable:$true] %s88
      %94 = dma.hbm_to_vmem [thread:$0]  %s13, 16384, %s89, [#allocation8], 128, 128, 8
    $region57: #{_lambda_.1} parent=1 // pred_fallthru
      _
    // Predicated region
    $region58: #{_lambda_.1} parent=1 // pred_check
      _
    $region59: #{_lambda_.1} parent=1 // pred_check_branch
      %96 = sbr.rel (0) target = $region61
    $region60: #{_lambda_.1} parent=1 // pred_region
      %s98 = ssub.s32 8192, 8192
      %99 = vsyncadd [#allocation8], %s98
      %s100 = sshll.u32 [#allocation9], 4
      %s101 = int_to_ptr.vmem [resolvable:$true] %s100
      %106 = dma.hbm_to_vmem [thread:$0]  %s14, 8192, %s101, [#allocation8], 256, 256, 16
    $region61: #{_lambda_.1} parent=1 // pred_fallthru
      _
    // Predicated region
    $region62: #{_lambda_.1} parent=1 // pred_check
      _
    $region63: #{_lambda_.1} parent=1 // pred_check_branch
      %108 = sbr.rel (0) target = $region65
    $region64: #{_lambda_.1} parent=1 // pred_region
      _
    $region65: #{_lambda_.1} parent=1 // pred_fallthru
      _
    // Predicated region
    $region66: #{_lambda_.1} parent=1 // pred_check
      _
    $region67: #{_lambda_.1} parent=1 // pred_check_branch
      %110 = sbr.rel (0) target = $region69
    $region68: #{_lambda_.1} parent=1 // pred_region
      _
    $region69: #{_lambda_.1} parent=1 // pred_fallthru
      _
    // Predicated region
    $region70: #{_lambda_.1} parent=1 // pred_check
      _
    $region71: #{_lambda_.1} parent=1 // pred_check_branch
      %112 = sbr.rel (0) target = $region73
    $region72: #{_lambda_.1} parent=1 // pred_region
      _
    $region73: #{_lambda_.1} parent=1 // pred_fallthru
      _
    // Predicated region
    $region74: #{_lambda_.1} parent=1 // pred_check
      _
    $region75: #{_lambda_.1} parent=1 // pred_check_branch
      %114 = sbr.rel (0) target = $region77
    $region76: #{_lambda_.1} parent=1 // pred_region
      _
    $region77: #{_lambda_.1} parent=1 // pred_fallthru
      _
    // Predicated region
    $region78: #{_lambda_.1} parent=1 // pred_check
      _
    $region79: #{_lambda_.1} parent=1 // pred_check_branch
      %116 = sbr.rel (0) target = $region81
    $region80: #{_lambda_.1} parent=1 // pred_region
      %117 = dma.done [#allocation3], 8192
    $region81: #{_lambda_.1} parent=1 // pred_fallthru
      _
    // Predicated region
    $region82: #{_lambda_.1} parent=1 // pred_check
      _
    $region83: #{_lambda_.1} parent=1 // pred_check_branch
      %119 = sbr.rel (0) target = $region85
    $region84: #{_lambda_.1} parent=1 // pred_region
      %120 = dma.done [#allocation5], 16384
    $region85: #{_lambda_.1} parent=1 // pred_fallthru
      _
    // Predicated region
    $region86: #{_lambda_.1} parent=1 // pred_check
      _
    $region87: #{_lambda_.1} parent=1 // pred_check_branch
      %122 = sbr.rel (0) target = $region89
    $region88: #{_lambda_.1} parent=1 // pred_region
      %123 = dma.done [#allocation5], 8192
    $region89: #{_lambda_.1} parent=1 // pred_fallthru
      _
    // Predicated region
    $region90: #{_lambda_.1} parent=1 // pred_check
      _
    $region91: #{_lambda_.1} parent=1 // pred_check_branch
      %125 = sbr.rel (0) target = $region93
    $region92: #{_lambda_.1} parent=1 // pred_region
      %126 = dma.done [#allocation8], 16384
    $region93: #{_lambda_.1} parent=1 // pred_fallthru
      _
    // Predicated region
    $region94: #{_lambda_.1} parent=1 // pred_check
      _
    $region95: #{_lambda_.1} parent=1 // pred_check_branch
      %128 = sbr.rel (0) target = $region97
    $region96: #{_lambda_.1} parent=1 // pred_region
      %129 = dma.done [#allocation8], 8192
    $region97: #{_lambda_.1} parent=1 // pred_fallthru
      _
    %v131 = vld [vmem:[%s0] sm:$0xff]
    %v132 = vld [vmem:[%s0 + $0x8] sm:$0xff]
    %v133 = vld [vmem:[%s0 + $0x10] sm:$0xff]
    %v134 = vld [vmem:[%s0 + $0x18] sm:$0xff]
    %v135 = vld [vmem:[%s0 + $0x20] sm:$0xff]
    %v136 = vld [vmem:[%s0 + $0x28] sm:$0xff]
    %v137 = vld [vmem:[%s0 + $0x30] sm:$0xff]
    %v138 = vld [vmem:[%s0 + $0x38] sm:$0xff]
    %v139 = vpack.c.bf16 %v132, %v131
    %v140 = vpack.c.bf16 %v134, %v133
    %v141 = vpack.c.bf16 %v136, %v135
    %v142 = vpack.c.bf16 %v138, %v137
    %v143 = vld [vmem:[%s1] sm:$0xff]
    %v144 = vld [vmem:[%s1 + $0x8] sm:$0xff]
    %v145 = vld [vmem:[%s1 + $0x10] sm:$0xff]
    %v146 = vld [vmem:[%s1 + $0x18] sm:$0xff]
    %v147 = vld [vmem:[%s1 + $0x20] sm:$0xff]
    %v148 = vld [vmem:[%s1 + $0x28] sm:$0xff]
    %v149 = vld [vmem:[%s1 + $0x30] sm:$0xff]
    %v150 = vld [vmem:[%s1 + $0x38] sm:$0xff]
    %v151 = vld [vmem:[%s1 + $0x40] sm:$0xff]
    %v152 = vld [vmem:[%s1 + $0x48] sm:$0xff]
    %v153 = vld [vmem:[%s1 + $0x50] sm:$0xff]
    %v154 = vld [vmem:[%s1 + $0x58] sm:$0xff]
    %v167 = vunpack.c.l.b16 %v143
    %v168 = vunpack.c.h.b16 %v143
    %v169 = vunpack.c.l.b16 %v144
    %v170 = vunpack.c.h.b16 %v144
    %v171 = vunpack.c.l.b16 %v145
    %v172 = vunpack.c.h.b16 %v145
    %v173 = vunpack.c.l.b16 %v146
    %v174 = vunpack.c.h.b16 %v146
    %v175 = vunpack.c.l.b16 %v147
    %v176 = vunpack.c.h.b16 %v147
    %v177 = vunpack.c.l.b16 %v148
    %v178 = vunpack.c.h.b16 %v148
    %v179 = vunpack.c.l.b16 %v149
    %v180 = vunpack.c.h.b16 %v149
    %v181 = vunpack.c.l.b16 %v150
    %v182 = vunpack.c.h.b16 %v150
    %v183 = vunpack.c.l.b16 %v151
    %v184 = vunpack.c.h.b16 %v151
    %v185 = vunpack.c.l.b16 %v152
    %v186 = vunpack.c.h.b16 %v152
    %v187 = vunpack.c.l.b16 %v153
    %v188 = vunpack.c.h.b16 %v153
    %v189 = vunpack.c.l.b16 %v154
    %v190 = vunpack.c.h.b16 %v154
    %v191 = vpack.c.b16 %v169, %v167
    %v192 = vpack.c.b16 %v170, %v168
    %v193 = vpack.c.b16 %v173, %v171
    %v194 = vpack.c.b16 %v174, %v172
    %v195 = vpack.c.b16 %v177, %v175
    %v196 = vpack.c.b16 %v178, %v176
    %v197 = vpack.c.b16 %v181, %v179
    %v198 = vpack.c.b16 %v182, %v180
    %v199 = vpack.c.b16 %v185, %v183
    %v200 = vpack.c.b16 %v186, %v184
    %v201 = vpack.c.b16 %v189, %v187
    %v202 = vpack.c.b16 %v190, %v188
    %vm215 = vcmask 785408
    %v217 = vsel %vm215, %v139, 0
    %v220 = vsel %vm215, %v140, 0
    %v223 = vsel %vm215, %v141, 0
    %v226 = vsel %vm215, %v142, 0
    %228 = vmatprep.subr.bf16.mxu0 %v192
    %229 = vmatpush1.bf16.msra.mxu0 %v191
    %230 = vmatprep.subr.bf16.mxu0 %v194
    %231 = vmatpush1.bf16.msra.mxu0 %v193
    %232 = vmatprep.subr.bf16.mxu0 %v196
    %233 = vmatpush1.bf16.msra.mxu0 %v195
    %234 = vmatprep.subr.bf16.mxu0 %v198
    %235 = vmatpush1.bf16.msra.mxu0 %v197
    %236 = vmatprep.subr.bf16.mxu0 %v200
    %237 = vmatpush1.bf16.msra.mxu0 %v199
    %238 = vmatprep.subr.bf16.mxu0 %v202
    %239 = vmatpush1.bf16.msra.mxu0 %v201
    %240 = vmatprep.subr.bf16.mxu0 0
    %241 = vmatpush1.bf16.msra.mxu0 0
    %242 = vmatprep.subr.bf16.mxu0 0
    %243 = vmatpush1.bf16.msra.mxu0 0
    %244 = vmatprep.subr.bf16.mxu0 0
    %245 = vmatpush1.bf16.msra.mxu0 0
    %246 = vmatprep.subr.bf16.mxu0 0
    %247 = vmatpush1.bf16.msra.mxu0 0
    %248 = vmatprep.subr.bf16.mxu0 0
    %249 = vmatpush1.bf16.msra.mxu0 0
    %250 = vmatprep.subr.bf16.mxu0 0
    %251 = vmatpush1.bf16.msra.mxu0 0
    %252 = vmatprep.subr.bf16.mxu0 0
    %253 = vmatpush1.bf16.msra.mxu0 0
    %254 = vmatprep.subr.bf16.mxu0 0
    %255 = vmatpush1.bf16.msra.mxu0 0
    %256 = vmatprep.subr.bf16.mxu0 0
    %257 = vmatpush1.bf16.msra.mxu0 0
    %258 = vmatprep.subr.bf16.mxu0 0
    %259 = vmatpush1.bf16.msra.mxu0 0
    %260 = vmatprep.mubr.bf16.mxu0 0
    %261 = vmatmul.mubr.bf16.gmra.mrb[0].mxu0 %v217
    %v262 = vpop.f32.mrb[0].mxu0
    %v263 = vadd.f32 0.0, %v262
    %v264 = vpop.f32.mrb[0].mxu0
    %v265 = vadd.f32 0.0, %v264
    %v266 = vpop.f32.mrb[0].mxu0
    %v267 = vadd.f32 0.0, %v266
    %v268 = vpop.f32.mrb[0].mxu0
    %v269 = vadd.f32 0.0, %v268
    %270 = vmatprep.mubr.bf16.mxu0 0
    %271 = vmatmul.mubr.bf16.gmra.mrb[0].mxu0 %v220
    %v272 = vpop.f32.mrb[0].mxu0
    %v273 = vadd.f32 0.0, %v272
    %v274 = vpop.f32.mrb[0].mxu0
    %v275 = vadd.f32 0.0, %v274
    %v276 = vpop.f32.mrb[0].mxu0
    %v277 = vadd.f32 0.0, %v276
    %v278 = vpop.f32.mrb[0].mxu0
    %v279 = vadd.f32 0.0, %v278
    %280 = vmatprep.mubr.bf16.mxu0 0
    %281 = vmatmul.mubr.bf16.gmra.mrb[0].mxu0 %v223
    %v282 = vpop.f32.mrb[0].mxu0
    %v283 = vadd.f32 0.0, %v282
    %v284 = vpop.f32.mrb[0].mxu0
    %v285 = vadd.f32 0.0, %v284
    %v286 = vpop.f32.mrb[0].mxu0
    %v287 = vadd.f32 0.0, %v286
    %v288 = vpop.f32.mrb[0].mxu0
    %v289 = vadd.f32 0.0, %v288
    %290 = vmatprep.mubr.bf16.mxu0 0
    %291 = vmatmul.mubr.bf16.gmra.mrb[0].mxu0 %v226
    %v292 = vpop.f32.mrb[0].mxu0
    %v293 = vadd.f32 0.0, %v292
    %v294 = vpop.f32.mrb[0].mxu0
    %v295 = vadd.f32 0.0, %v294
    %v296 = vpop.f32.mrb[0].mxu0
    %v297 = vadd.f32 0.0, %v296
    %v298 = vpop.f32.mrb[0].mxu0
    %v299 = vadd.f32 0.0, %v298
    %300 = vdwg.mxu0
    %vm301 = vcmp.gt.f32.partialorder %v263, 0.0
    %vm302 = vcmp.gt.f32.partialorder %v265, 0.0
    %vm303 = vcmp.gt.f32.partialorder %v267, 0.0
    %vm304 = vcmp.gt.f32.partialorder %v269, 0.0
    %vm305 = vcmp.gt.f32.partialorder %v273, 0.0
    %vm306 = vcmp.gt.f32.partialorder %v275, 0.0
    %vm307 = vcmp.gt.f32.partialorder %v277, 0.0
    %vm308 = vcmp.gt.f32.partialorder %v279, 0.0
    %vm309 = vcmp.gt.f32.partialorder %v283, 0.0
    %vm310 = vcmp.gt.f32.partialorder %v285, 0.0
    %vm311 = vcmp.gt.f32.partialorder %v287, 0.0
    %vm312 = vcmp.gt.f32.partialorder %v289, 0.0
    %vm313 = vcmp.gt.f32.partialorder %v293, 0.0
    %vm314 = vcmp.gt.f32.partialorder %v295, 0.0
    %vm315 = vcmp.gt.f32.partialorder %v297, 0.0
    %vm316 = vcmp.gt.f32.partialorder %v299, 0.0
    %v317 = vmul.f32 %v263, 0.2
    %v318 = vmul.f32 %v265, 0.2
    %v319 = vmul.f32 %v267, 0.2
    %v320 = vmul.f32 %v269, 0.2
    %v321 = vmul.f32 %v273, 0.2
    %v322 = vmul.f32 %v275, 0.2
    %v323 = vmul.f32 %v277, 0.2
    %v324 = vmul.f32 %v279, 0.2
    %v325 = vmul.f32 %v283, 0.2
    %v326 = vmul.f32 %v285, 0.2
    %v327 = vmul.f32 %v287, 0.2
    %v328 = vmul.f32 %v289, 0.2
    %v329 = vmul.f32 %v293, 0.2
    %v330 = vmul.f32 %v295, 0.2
    %v331 = vmul.f32 %v297, 0.2
    %v332 = vmul.f32 %v299, 0.2
    %v333 = vsel %vm301, %v263, %v317
    %v334 = vsel %vm302, %v265, %v318
    %v335 = vsel %vm303, %v267, %v319
    %v336 = vsel %vm304, %v269, %v320
    %v337 = vsel %vm305, %v273, %v321
    %v338 = vsel %vm306, %v275, %v322
    %v339 = vsel %vm307, %v277, %v323
    %v340 = vsel %vm308, %v279, %v324
    %v341 = vsel %vm309, %v283, %v325
    %v342 = vsel %vm310, %v285, %v326
    %v343 = vsel %vm311, %v287, %v327
    %v344 = vsel %vm312, %v289, %v328
    %v345 = vsel %vm313, %v293, %v329
    %v346 = vsel %vm314, %v295, %v330
    %v347 = vsel %vm315, %v297, %v331
    %v348 = vsel %vm316, %v299, %v332
    %v349 = vpack.c.bf16 %v335, %v333
    %v350 = vpack.c.bf16 %v336, %v334
    %v351 = vpack.c.bf16 %v339, %v337
    %v352 = vpack.c.bf16 %v340, %v338
    %v353 = vpack.c.bf16 %v343, %v341
    %v354 = vpack.c.bf16 %v344, %v342
    %v355 = vpack.c.bf16 %v347, %v345
    %v356 = vpack.c.bf16 %v348, %v346
    %v357 = vld [vmem:[%s2] sm:$0xf]
    %v358 = vld [vmem:[%s2 + $0x4] sm:$0xf]
    %v359 = vld [vmem:[%s2 + $0x8] sm:$0xf]
    %v360 = vld [vmem:[%s2 + $0xc] sm:$0xf]
    %v365 = vunpack.c.l.b16 %v357
    %v366 = vunpack.c.l.b16 %v358
    %v367 = vunpack.c.l.b16 %v359
    %v368 = vunpack.c.l.b16 %v360
    %v369 = vpack.c.b16 %v366, %v365
    %v370 = vpack.c.b16 %v368, %v367
    %vm371 = vcmask 523264
    %v373 = vsel %vm371, %v369, 0
    %v376 = vsel %vm371, %v370, 0
    %378 = vmatprep.subr.bf16.mxu0 %v350
    %379 = vmatpush1.bf16.msra.mxu0 %v349
    %380 = vmatprep.subr.bf16.mxu0 %v352
    %381 = vmatpush1.bf16.msra.mxu0 %v351
    %382 = vmatprep.subr.bf16.mxu0 %v354
    %383 = vmatpush1.bf16.msra.mxu0 %v353
    %384 = vmatprep.subr.bf16.mxu0 %v356
    %385 = vmatpush1.bf16.msra.mxu0 %v355
    %386 = vmatprep.subr.bf16.mxu0 0
    %387 = vmatpush1.bf16.msra.mxu0 0
    %388 = vmatprep.subr.bf16.mxu0 0
    %389 = vmatpush1.bf16.msra.mxu0 0
    %390 = vmatprep.subr.bf16.mxu0 0
    %391 = vmatpush1.bf16.msra.mxu0 0
    %392 = vmatprep.subr.bf16.mxu0 0
    %393 = vmatpush1.bf16.msra.mxu0 0
    %394 = vmatprep.subr.bf16.mxu0 0
    %395 = vmatpush1.bf16.msra.mxu0 0
    %396 = vmatprep.subr.bf16.mxu0 0
    %397 = vmatpush1.bf16.msra.mxu0 0
    %398 = vmatprep.subr.bf16.mxu0 0
    %399 = vmatpush1.bf16.msra.mxu0 0
    %400 = vmatprep.subr.bf16.mxu0 0
    %401 = vmatpush1.bf16.msra.mxu0 0
    %402 = vmatprep.subr.bf16.mxu0 0
    %403 = vmatpush1.bf16.msra.mxu0 0
    %404 = vmatprep.subr.bf16.mxu0 0
    %405 = vmatpush1.bf16.msra.mxu0 0
    %406 = vmatprep.subr.bf16.mxu0 0
    %407 = vmatpush1.bf16.msra.mxu0 0
    %408 = vmatprep.subr.bf16.mxu0 0
    %409 = vmatpush1.bf16.msra.mxu0 0
    %410 = vmatprep.mubr.bf16.mxu0 0
    %411 = vmatmul.mubr.bf16.gmra.mrb[0].mxu0 %v373
    %v412 = vpop.f32.mrb[0].mxu0
    %v413 = vadd.f32 0.0, %v412
    %v414 = vpop.f32.mrb[0].mxu0
    %v415 = vadd.f32 0.0, %v414
    %v416 = vpop.f32.mrb[0].mxu0
    %v417 = vadd.f32 0.0, %v416
    %v418 = vpop.f32.mrb[0].mxu0
    %v419 = vadd.f32 0.0, %v418
    %420 = vmatprep.mubr.bf16.mxu0 0
    %421 = vmatmul.mubr.bf16.gmra.mrb[0].mxu0 %v376
    %v422 = vpop.f32.mrb[0].mxu0
    %v423 = vadd.f32 0.0, %v422
    %v424 = vpop.f32.mrb[0].mxu0
    %v425 = vadd.f32 0.0, %v424
    %v426 = vpop.f32.mrb[0].mxu0
    %v427 = vadd.f32 0.0, %v426
    %v428 = vpop.f32.mrb[0].mxu0
    %v429 = vadd.f32 0.0, %v428
    %430 = vdwg.mxu0
    %v431 = vpack.c.bf16 %v417, %v413
    %v432 = vpack.c.bf16 %v419, %v415
    %v433 = vpack.c.bf16 %v427, %v423
    %v434 = vpack.c.bf16 %v429, %v425
    %s435 = scalar_lea.vmem %s2, 16
    %v436 = vld [vmem:[%s435] sm:$0xf]
    %v437 = vld [vmem:[%s435 + $0x4] sm:$0xf]
    %v438 = vld [vmem:[%s435 + $0x8] sm:$0xf]
    %v439 = vld [vmem:[%s435 + $0xc] sm:$0xf]
    %v444 = vunpack.c.l.b16 %v436
    %v445 = vunpack.c.l.b16 %v437
    %v446 = vunpack.c.l.b16 %v438
    %v447 = vunpack.c.l.b16 %v439
    %v448 = vpack.c.b16 %v445, %v444
    %v449 = vpack.c.b16 %v447, %v446
    %v451 = vsel %vm371, %v448, 0
    %v454 = vsel %vm371, %v449, 0
    %456 = vmatprep.subr.bf16.mxu0 %v350
    %457 = vmatpush1.bf16.msra.mxu0 %v349
    %458 = vmatprep.subr.bf16.mxu0 %v352
    %459 = vmatpush1.bf16.msra.mxu0 %v351
    %460 = vmatprep.subr.bf16.mxu0 %v354
    %461 = vmatpush1.bf16.msra.mxu0 %v353
    %462 = vmatprep.subr.bf16.mxu0 %v356
    %463 = vmatpush1.bf16.msra.mxu0 %v355
    %464 = vmatprep.subr.bf16.mxu0 0
    %465 = vmatpush1.bf16.msra.mxu0 0
    %466 = vmatprep.subr.bf16.mxu0 0
    %467 = vmatpush1.bf16.msra.mxu0 0
    %468 = vmatprep.subr.bf16.mxu0 0
    %469 = vmatpush1.bf16.msra.mxu0 0
    %470 = vmatprep.subr.bf16.mxu0 0
    %471 = vmatpush1.bf16.msra.mxu0 0
    %472 = vmatprep.subr.bf16.mxu0 0
    %473 = vmatpush1.bf16.msra.mxu0 0
    %474 = vmatprep.subr.bf16.mxu0 0
    %475 = vmatpush1.bf16.msra.mxu0 0
    %476 = vmatprep.subr.bf16.mxu0 0
    %477 = vmatpush1.bf16.msra.mxu0 0
    %478 = vmatprep.subr.bf16.mxu0 0
    %479 = vmatpush1.bf16.msra.mxu0 0
    %480 = vmatprep.subr.bf16.mxu0 0
    %481 = vmatpush1.bf16.msra.mxu0 0
    %482 = vmatprep.subr.bf16.mxu0 0
    %483 = vmatpush1.bf16.msra.mxu0 0
    %484 = vmatprep.subr.bf16.mxu0 0
    %485 = vmatpush1.bf16.msra.mxu0 0
    %486 = vmatprep.subr.bf16.mxu0 0
    %487 = vmatpush1.bf16.msra.mxu0 0
    %488 = vmatprep.mubr.bf16.mxu0 0
    %489 = vmatmul.mubr.bf16.gmra.mrb[0].mxu0 %v451
    %v490 = vpop.f32.mrb[0].mxu0
    %v491 = vadd.f32 0.0, %v490
    %v492 = vpop.f32.mrb[0].mxu0
    %v493 = vadd.f32 0.0, %v492
    %v494 = vpop.f32.mrb[0].mxu0
    %v495 = vadd.f32 0.0, %v494
    %v496 = vpop.f32.mrb[0].mxu0
    %v497 = vadd.f32 0.0, %v496
    %498 = vmatprep.mubr.bf16.mxu0 0
    %499 = vmatmul.mubr.bf16.gmra.mrb[0].mxu0 %v454
    %v500 = vpop.f32.mrb[0].mxu0
    %v501 = vadd.f32 0.0, %v500
    %v502 = vpop.f32.mrb[0].mxu0
    %v503 = vadd.f32 0.0, %v502
    %v504 = vpop.f32.mrb[0].mxu0
    %v505 = vadd.f32 0.0, %v504
    %v506 = vpop.f32.mrb[0].mxu0
    %v507 = vadd.f32 0.0, %v506
    %508 = vdwg.mxu0
    %v509 = vpack.c.bf16 %v495, %v491
    %v510 = vpack.c.bf16 %v497, %v493
    %v511 = vpack.c.bf16 %v505, %v501
    %v512 = vpack.c.bf16 %v507, %v503
    %s513 = scalar_lea.vmem %s2, 32
    %v514 = vld [vmem:[%s513] sm:$0xf]
    %v515 = vld [vmem:[%s513 + $0x4] sm:$0xf]
    %v516 = vld [vmem:[%s513 + $0x8] sm:$0xf]
    %v517 = vld [vmem:[%s513 + $0xc] sm:$0xf]
    %v522 = vunpack.c.l.b16 %v514
    %v523 = vunpack.c.l.b16 %v515
    %v524 = vunpack.c.l.b16 %v516
    %v525 = vunpack.c.l.b16 %v517
    %v526 = vpack.c.b16 %v523, %v522
    %v527 = vpack.c.b16 %v525, %v524
    %v529 = vsel %vm371, %v526, 0
    %v532 = vsel %vm371, %v527, 0
    %534 = vmatprep.subr.bf16.mxu0 %v350
    %535 = vmatpush1.bf16.msra.mxu0 %v349
    %536 = vmatprep.subr.bf16.mxu0 %v352
    %537 = vmatpush1.bf16.msra.mxu0 %v351
    %538 = vmatprep.subr.bf16.mxu0 %v354
    %539 = vmatpush1.bf16.msra.mxu0 %v353
    %540 = vmatprep.subr.bf16.mxu0 %v356
    %541 = vmatpush1.bf16.msra.mxu0 %v355
    %542 = vmatprep.subr.bf16.mxu0 0
    %543 = vmatpush1.bf16.msra.mxu0 0
    %544 = vmatprep.subr.bf16.mxu0 0
    %545 = vmatpush1.bf16.msra.mxu0 0
    %546 = vmatprep.subr.bf16.mxu0 0
    %547 = vmatpush1.bf16.msra.mxu0 0
    %548 = vmatprep.subr.bf16.mxu0 0
    %549 = vmatpush1.bf16.msra.mxu0 0
    %550 = vmatprep.subr.bf16.mxu0 0
    %551 = vmatpush1.bf16.msra.mxu0 0
    %552 = vmatprep.subr.bf16.mxu0 0
    %553 = vmatpush1.bf16.msra.mxu0 0
    %554 = vmatprep.subr.bf16.mxu0 0
    %555 = vmatpush1.bf16.msra.mxu0 0
    %556 = vmatprep.subr.bf16.mxu0 0
    %557 = vmatpush1.bf16.msra.mxu0 0
    %558 = vmatprep.subr.bf16.mxu0 0
    %559 = vmatpush1.bf16.msra.mxu0 0
    %560 = vmatprep.subr.bf16.mxu0 0
    %561 = vmatpush1.bf16.msra.mxu0 0
    %562 = vmatprep.subr.bf16.mxu0 0
    %563 = vmatpush1.bf16.msra.mxu0 0
    %564 = vmatprep.subr.bf16.mxu0 0
    %565 = vmatpush1.bf16.msra.mxu0 0
    %566 = vmatprep.mubr.bf16.mxu0 0
    %567 = vmatmul.mubr.bf16.gmra.mrb[0].mxu0 %v529
    %v568 = vpop.f32.mrb[0].mxu0
    %v569 = vadd.f32 0.0, %v568
    %v570 = vpop.f32.mrb[0].mxu0
    %v571 = vadd.f32 0.0, %v570
    %v572 = vpop.f32.mrb[0].mxu0
    %v573 = vadd.f32 0.0, %v572
    %v574 = vpop.f32.mrb[0].mxu0
    %v575 = vadd.f32 0.0, %v574
    %576 = vmatprep.mubr.bf16.mxu0 0
    %577 = vmatmul.mubr.bf16.gmra.mrb[0].mxu0 %v532
    %v578 = vpop.f32.mrb[0].mxu0
    %v579 = vadd.f32 0.0, %v578
    %v580 = vpop.f32.mrb[0].mxu0
    %v581 = vadd.f32 0.0, %v580
    %v582 = vpop.f32.mrb[0].mxu0
    %v583 = vadd.f32 0.0, %v582
    %v584 = vpop.f32.mrb[0].mxu0
    %v585 = vadd.f32 0.0, %v584
    %586 = vdwg.mxu0
    %v587 = vpack.c.bf16 %v573, %v569
    %v588 = vpack.c.bf16 %v575, %v571
    %v589 = vpack.c.bf16 %v583, %v579
    %v590 = vpack.c.bf16 %v585, %v581
    %s591 = scalar_lea.vmem %s2, 48
    %v592 = vld [vmem:[%s591] sm:$0xf]
    %v593 = vld [vmem:[%s591 + $0x4] sm:$0xf]
    %v594 = vld [vmem:[%s591 + $0x8] sm:$0xf]
    %v595 = vld [vmem:[%s591 + $0xc] sm:$0xf]
    %v600 = vunpack.c.l.b16 %v592
    %v601 = vunpack.c.l.b16 %v593
    %v602 = vunpack.c.l.b16 %v594
    %v603 = vunpack.c.l.b16 %v595
    %v604 = vpack.c.b16 %v601, %v600
    %v605 = vpack.c.b16 %v603, %v602
    %v607 = vsel %vm371, %v604, 0
    %v610 = vsel %vm371, %v605, 0
    %612 = vmatprep.subr.bf16.mxu0 %v350
    %613 = vmatpush1.bf16.msra.mxu0 %v349
    %614 = vmatprep.subr.bf16.mxu0 %v352
    %615 = vmatpush1.bf16.msra.mxu0 %v351
    %616 = vmatprep.subr.bf16.mxu0 %v354
    %617 = vmatpush1.bf16.msra.mxu0 %v353
    %618 = vmatprep.subr.bf16.mxu0 %v356
    %619 = vmatpush1.bf16.msra.mxu0 %v355
    %620 = vmatprep.subr.bf16.mxu0 0
    %621 = vmatpush1.bf16.msra.mxu0 0
    %622 = vmatprep.subr.bf16.mxu0 0
    %623 = vmatpush1.bf16.msra.mxu0 0
    %624 = vmatprep.subr.bf16.mxu0 0
    %625 = vmatpush1.bf16.msra.mxu0 0
    %626 = vmatprep.subr.bf16.mxu0 0
    %627 = vmatpush1.bf16.msra.mxu0 0
    %628 = vmatprep.subr.bf16.mxu0 0
    %629 = vmatpush1.bf16.msra.mxu0 0
    %630 = vmatprep.subr.bf16.mxu0 0
    %631 = vmatpush1.bf16.msra.mxu0 0
    %632 = vmatprep.subr.bf16.mxu0 0
    %633 = vmatpush1.bf16.msra.mxu0 0
    %634 = vmatprep.subr.bf16.mxu0 0
    %635 = vmatpush1.bf16.msra.mxu0 0
    %636 = vmatprep.subr.bf16.mxu0 0
    %637 = vmatpush1.bf16.msra.mxu0 0
    %638 = vmatprep.subr.bf16.mxu0 0
    %639 = vmatpush1.bf16.msra.mxu0 0
    %640 = vmatprep.subr.bf16.mxu0 0
    %641 = vmatpush1.bf16.msra.mxu0 0
    %642 = vmatprep.subr.bf16.mxu0 0
    %643 = vmatpush1.bf16.msra.mxu0 0
    %644 = vmatprep.mubr.bf16.mxu0 0
    %645 = vmatmul.mubr.bf16.gmra.mrb[0].mxu0 %v607
    %v646 = vpop.f32.mrb[0].mxu0
    %v647 = vadd.f32 0.0, %v646
    %v648 = vpop.f32.mrb[0].mxu0
    %v649 = vadd.f32 0.0, %v648
    %v650 = vpop.f32.mrb[0].mxu0
    %v651 = vadd.f32 0.0, %v650
    %v652 = vpop.f32.mrb[0].mxu0
    %v653 = vadd.f32 0.0, %v652
    %654 = vmatprep.mubr.bf16.mxu0 0
    %655 = vmatmul.mubr.bf16.gmra.mrb[0].mxu0 %v610
    %v656 = vpop.f32.mrb[0].mxu0
    %v657 = vadd.f32 0.0, %v656
    %v658 = vpop.f32.mrb[0].mxu0
    %v659 = vadd.f32 0.0, %v658
    %v660 = vpop.f32.mrb[0].mxu0
    %v661 = vadd.f32 0.0, %v660
    %v662 = vpop.f32.mrb[0].mxu0
    %v663 = vadd.f32 0.0, %v662
    %664 = vdwg.mxu0
    %v665 = vpack.c.bf16 %v651, %v647
    %v666 = vpack.c.bf16 %v653, %v649
    %v667 = vpack.c.bf16 %v661, %v657
    %v668 = vpack.c.bf16 %v663, %v659
    %v669 = vld [vmem:[%s3] sm:$0xff]
    %v670 = vld [vmem:[%s3 + $0x8] sm:$0xff]
    %v671 = vld [vmem:[%s3 + $0x10] sm:$0xff]
    %v672 = vld [vmem:[%s3 + $0x18] sm:$0xff]
    %v673 = vld [vmem:[%s3 + $0x20] sm:$0xff]
    %v674 = vld [vmem:[%s3 + $0x28] sm:$0xff]
    %v675 = vld [vmem:[%s3 + $0x30] sm:$0xff]
    %v676 = vld [vmem:[%s3 + $0x38] sm:$0xff]
    %v677 = vld [vmem:[%s3 + $0x40] sm:$0xff]
    %v678 = vld [vmem:[%s3 + $0x48] sm:$0xff]
    %v679 = vld [vmem:[%s3 + $0x50] sm:$0xff]
    %v680 = vld [vmem:[%s3 + $0x58] sm:$0xff]
    %v681 = vld [vmem:[%s3 + $0x60] sm:$0xff]
    %v682 = vld [vmem:[%s3 + $0x68] sm:$0xff]
    %v683 = vld [vmem:[%s3 + $0x70] sm:$0xff]
    %v684 = vld [vmem:[%s3 + $0x78] sm:$0xff]
    %v685 = vld [vmem:[%s3 + $0x80] sm:$0xff]
    %v686 = vld [vmem:[%s3 + $0x88] sm:$0xff]
    %v687 = vld [vmem:[%s3 + $0x90] sm:$0xff]
    %v688 = vld [vmem:[%s3 + $0x98] sm:$0xff]
    %v689 = vld [vmem:[%s3 + $0xa0] sm:$0xff]
    %v690 = vld [vmem:[%s3 + $0xa8] sm:$0xff]
    %v691 = vld [vmem:[%s3 + $0xb0] sm:$0xff]
    %v692 = vld [vmem:[%s3 + $0xb8] sm:$0xff]
    %v693 = vld [vmem:[%s3 + $0xc0] sm:$0xff]
    %v694 = vld [vmem:[%s3 + $0xc8] sm:$0xff]
    %v695 = vld [vmem:[%s3 + $0xd0] sm:$0xff]
    %v696 = vld [vmem:[%s3 + $0xd8] sm:$0xff]
    %v697 = vld [vmem:[%s3 + $0xe0] sm:$0xff]
    %v698 = vld [vmem:[%s3 + $0xe8] sm:$0xff]
    %v699 = vld [vmem:[%s3 + $0xf0] sm:$0xff]
    %v700 = vld [vmem:[%s3 + $0xf8] sm:$0xff]
    %v701 = vld [vmem:[%s3 + $0x100] sm:$0xff]
    %v702 = vld [vmem:[%s3 + $0x108] sm:$0xff]
    %v703 = vld [vmem:[%s3 + $0x110] sm:$0xff]
    %v704 = vld [vmem:[%s3 + $0x118] sm:$0xff]
    %v705 = vld [vmem:[%s3 + $0x120] sm:$0xff]
    %v706 = vld [vmem:[%s3 + $0x128] sm:$0xff]
    %v707 = vld [vmem:[%s3 + $0x130] sm:$0xff]
    %v708 = vld [vmem:[%s3 + $0x138] sm:$0xff]
    %v709 = vld [vmem:[%s3 + $0x140] sm:$0xff]
    %v710 = vld [vmem:[%s3 + $0x148] sm:$0xff]
    %v711 = vld [vmem:[%s3 + $0x150] sm:$0xff]
    %v712 = vld [vmem:[%s3 + $0x158] sm:$0xff]
    %v713 = vld [vmem:[%s3 + $0x160] sm:$0xff]
    %v714 = vld [vmem:[%s3 + $0x168] sm:$0xff]
    %v715 = vld [vmem:[%s3 + $0x170] sm:$0xff]
    %v716 = vld [vmem:[%s3 + $0x178] sm:$0xff]
    %v717 = vld [vmem:[%s3 + $0x180] sm:$0xff]
    %v718 = vld [vmem:[%s3 + $0x188] sm:$0xff]
    %v719 = vld [vmem:[%s3 + $0x190] sm:$0xff]
    %v720 = vld [vmem:[%s3 + $0x198] sm:$0xff]
    %v721 = vld [vmem:[%s3 + $0x1a0] sm:$0xff]
    %v722 = vld [vmem:[%s3 + $0x1a8] sm:$0xff]
    %v723 = vld [vmem:[%s3 + $0x1b0] sm:$0xff]
    %v724 = vld [vmem:[%s3 + $0x1b8] sm:$0xff]
    %v725 = vld [vmem:[%s3 + $0x1c0] sm:$0xff]
    %v726 = vld [vmem:[%s3 + $0x1c8] sm:$0xff]
    %v727 = vld [vmem:[%s3 + $0x1d0] sm:$0xff]
    %v728 = vld [vmem:[%s3 + $0x1d8] sm:$0xff]
    %v729 = vld [vmem:[%s3 + $0x1e0] sm:$0xff]
    %v730 = vld [vmem:[%s3 + $0x1e8] sm:$0xff]
    %v731 = vld [vmem:[%s3 + $0x1f0] sm:$0xff]
    %v732 = vld [vmem:[%s3 + $0x1f8] sm:$0xff]
    %v733 = vld [vmem:[%s3 + $0x200] sm:$0xff]
    %v734 = vld [vmem:[%s3 + $0x208] sm:$0xff]
    %v735 = vld [vmem:[%s3 + $0x210] sm:$0xff]
    %v736 = vld [vmem:[%s3 + $0x218] sm:$0xff]
    %v737 = vld [vmem:[%s3 + $0x220] sm:$0xff]
    %v738 = vld [vmem:[%s3 + $0x228] sm:$0xff]
    %v739 = vld [vmem:[%s3 + $0x230] sm:$0xff]
    %v740 = vld [vmem:[%s3 + $0x238] sm:$0xff]
    %v741 = vld [vmem:[%s3 + $0x240] sm:$0xff]
    %v742 = vld [vmem:[%s3 + $0x248] sm:$0xff]
    %v743 = vld [vmem:[%s3 + $0x250] sm:$0xff]
    %v744 = vld [vmem:[%s3 + $0x258] sm:$0xff]
    %v745 = vld [vmem:[%s3 + $0x260] sm:$0xff]
    %v746 = vld [vmem:[%s3 + $0x268] sm:$0xff]
    %v747 = vld [vmem:[%s3 + $0x270] sm:$0xff]
    %v748 = vld [vmem:[%s3 + $0x278] sm:$0xff]
    %v749 = vld [vmem:[%s3 + $0x280] sm:$0xff]
    %v750 = vld [vmem:[%s3 + $0x288] sm:$0xff]
    %v751 = vld [vmem:[%s3 + $0x290] sm:$0xff]
    %v752 = vld [vmem:[%s3 + $0x298] sm:$0xff]
    %v753 = vld [vmem:[%s3 + $0x2a0] sm:$0xff]
    %v754 = vld [vmem:[%s3 + $0x2a8] sm:$0xff]
    %v755 = vld [vmem:[%s3 + $0x2b0] sm:$0xff]
    %v756 = vld [vmem:[%s3 + $0x2b8] sm:$0xff]
    %v757 = vld [vmem:[%s3 + $0x2c0] sm:$0xff]
    %v758 = vld [vmem:[%s3 + $0x2c8] sm:$0xff]
    %v759 = vld [vmem:[%s3 + $0x2d0] sm:$0xff]
    %v760 = vld [vmem:[%s3 + $0x2d8] sm:$0xff]
    %v761 = vld [vmem:[%s3 + $0x2e0] sm:$0xff]
    %v762 = vld [vmem:[%s3 + $0x2e8] sm:$0xff]
    %v763 = vld [vmem:[%s3 + $0x2f0] sm:$0xff]
    %v764 = vld [vmem:[%s3 + $0x2f8] sm:$0xff]
    %v765 = vld [vmem:[%s3 + $0x300] sm:$0xff]
    %v766 = vld [vmem:[%s3 + $0x308] sm:$0xff]
    %v767 = vld [vmem:[%s3 + $0x310] sm:$0xff]
    %v768 = vld [vmem:[%s3 + $0x318] sm:$0xff]
    %v769 = vld [vmem:[%s3 + $0x320] sm:$0xff]
    %v770 = vld [vmem:[%s3 + $0x328] sm:$0xff]
    %v771 = vld [vmem:[%s3 + $0x330] sm:$0xff]
    %v772 = vld [vmem:[%s3 + $0x338] sm:$0xff]
    %v773 = vld [vmem:[%s3 + $0x340] sm:$0xff]
    %v774 = vld [vmem:[%s3 + $0x348] sm:$0xff]
    %v775 = vld [vmem:[%s3 + $0x350] sm:$0xff]
    %v776 = vld [vmem:[%s3 + $0x358] sm:$0xff]
    %v777 = vld [vmem:[%s3 + $0x360] sm:$0xff]
    %v778 = vld [vmem:[%s3 + $0x368] sm:$0xff]
    %v779 = vld [vmem:[%s3 + $0x370] sm:$0xff]
    %v780 = vld [vmem:[%s3 + $0x378] sm:$0xff]
    %v781 = vld [vmem:[%s3 + $0x380] sm:$0xff]
    %v782 = vld [vmem:[%s3 + $0x388] sm:$0xff]
    %v783 = vld [vmem:[%s3 + $0x390] sm:$0xff]
    %v784 = vld [vmem:[%s3 + $0x398] sm:$0xff]
    %v785 = vld [vmem:[%s3 + $0x3a0] sm:$0xff]
    %v786 = vld [vmem:[%s3 + $0x3a8] sm:$0xff]
    %v787 = vld [vmem:[%s3 + $0x3b0] sm:$0xff]
    %v788 = vld [vmem:[%s3 + $0x3b8] sm:$0xff]
    %v789 = vld [vmem:[%s3 + $0x3c0] sm:$0xff]
    %v790 = vld [vmem:[%s3 + $0x3c8] sm:$0xff]
    %v791 = vld [vmem:[%s3 + $0x3d0] sm:$0xff]
    %v792 = vld [vmem:[%s3 + $0x3d8] sm:$0xff]
    %v793 = vld [vmem:[%s3 + $0x3e0] sm:$0xff]
    %v794 = vld [vmem:[%s3 + $0x3e8] sm:$0xff]
    %v795 = vld [vmem:[%s3 + $0x3f0] sm:$0xff]
    %v796 = vld [vmem:[%s3 + $0x3f8] sm:$0xff]
    %v925 = vunpack.c.l.b16 %v669
    %v926 = vunpack.c.h.b16 %v669
    %v927 = vunpack.c.l.b16 %v670
    %v928 = vunpack.c.h.b16 %v670
    %v929 = vunpack.c.l.b16 %v671
    %v930 = vunpack.c.h.b16 %v671
    %v931 = vunpack.c.l.b16 %v672
    %v932 = vunpack.c.h.b16 %v672
    %v933 = vunpack.c.l.b16 %v673
    %v934 = vunpack.c.h.b16 %v673
    %v935 = vunpack.c.l.b16 %v674
    %v936 = vunpack.c.h.b16 %v674
    %v937 = vunpack.c.l.b16 %v675
    %v938 = vunpack.c.h.b16 %v675
    %v939 = vunpack.c.l.b16 %v676
    %v940 = vunpack.c.h.b16 %v676
    %v941 = vunpack.c.l.b16 %v677
    %v942 = vunpack.c.h.b16 %v677
    %v943 = vunpack.c.l.b16 %v678
    %v944 = vunpack.c.h.b16 %v678
    %v945 = vunpack.c.l.b16 %v679
    %v946 = vunpack.c.h.b16 %v679
    %v947 = vunpack.c.l.b16 %v680
    %v948 = vunpack.c.h.b16 %v680
    %v949 = vunpack.c.l.b16 %v681
    %v950 = vunpack.c.h.b16 %v681
    %v951 = vunpack.c.l.b16 %v682
    %v952 = vunpack.c.h.b16 %v682
    %v953 = vunpack.c.l.b16 %v683
    %v954 = vunpack.c.h.b16 %v683
    %v955 = vunpack.c.l.b16 %v684
    %v956 = vunpack.c.h.b16 %v684
    %v957 = vunpack.c.l.b16 %v685
    %v958 = vunpack.c.h.b16 %v685
    %v959 = vunpack.c.l.b16 %v686
    %v960 = vunpack.c.h.b16 %v686
    %v961 = vunpack.c.l.b16 %v687
    %v962 = vunpack.c.h.b16 %v687
    %v963 = vunpack.c.l.b16 %v688
    %v964 = vunpack.c.h.b16 %v688
    %v965 = vunpack.c.l.b16 %v689
    %v966 = vunpack.c.h.b16 %v689
    %v967 = vunpack.c.l.b16 %v690
    %v968 = vunpack.c.h.b16 %v690
    %v969 = vunpack.c.l.b16 %v691
    %v970 = vunpack.c.h.b16 %v691
    %v971 = vunpack.c.l.b16 %v692
    %v972 = vunpack.c.h.b16 %v692
    %v973 = vunpack.c.l.b16 %v693
    %v974 = vunpack.c.h.b16 %v693
    %v975 = vunpack.c.l.b16 %v694
    %v976 = vunpack.c.h.b16 %v694
    %v977 = vunpack.c.l.b16 %v695
    %v978 = vunpack.c.h.b16 %v695
    %v979 = vunpack.c.l.b16 %v696
    %v980 = vunpack.c.h.b16 %v696
    %v981 = vunpack.c.l.b16 %v697
    %v982 = vunpack.c.h.b16 %v697
    %v983 = vunpack.c.l.b16 %v698
    %v984 = vunpack.c.h.b16 %v698
    %v985 = vunpack.c.l.b16 %v699
    %v986 = vunpack.c.h.b16 %v699
    %v987 = vunpack.c.l.b16 %v700
    %v988 = vunpack.c.h.b16 %v700
    %v989 = vunpack.c.l.b16 %v701
    %v990 = vunpack.c.h.b16 %v701
    %v991 = vunpack.c.l.b16 %v702
    %v992 = vunpack.c.h.b16 %v702
    %v993 = vunpack.c.l.b16 %v703
    %v994 = vunpack.c.h.b16 %v703
    %v995 = vunpack.c.l.b16 %v704
    %v996 = vunpack.c.h.b16 %v704
    %v997 = vunpack.c.l.b16 %v705
    %v998 = vunpack.c.h.b16 %v705
    %v999 = vunpack.c.l.b16 %v706
    %v1000 = vunpack.c.h.b16 %v706
    %v1001 = vunpack.c.l.b16 %v707
    %v1002 = vunpack.c.h.b16 %v707
    %v1003 = vunpack.c.l.b16 %v708
    %v1004 = vunpack.c.h.b16 %v708
    %v1005 = vunpack.c.l.b16 %v709
    %v1006 = vunpack.c.h.b16 %v709
    %v1007 = vunpack.c.l.b16 %v710
    %v1008 = vunpack.c.h.b16 %v710
    %v1009 = vunpack.c.l.b16 %v711
    %v1010 = vunpack.c.h.b16 %v711
    %v1011 = vunpack.c.l.b16 %v712
    %v1012 = vunpack.c.h.b16 %v712
    %v1013 = vunpack.c.l.b16 %v713
    %v1014 = vunpack.c.h.b16 %v713
    %v1015 = vunpack.c.l.b16 %v714
    %v1016 = vunpack.c.h.b16 %v714
    %v1017 = vunpack.c.l.b16 %v715
    %v1018 = vunpack.c.h.b16 %v715
    %v1019 = vunpack.c.l.b16 %v716
    %v1020 = vunpack.c.h.b16 %v716
    %v1021 = vunpack.c.l.b16 %v717
    %v1022 = vunpack.c.h.b16 %v717
    %v1023 = vunpack.c.l.b16 %v718
    %v1024 = vunpack.c.h.b16 %v718
    %v1025 = vunpack.c.l.b16 %v719
    %v1026 = vunpack.c.h.b16 %v719
    %v1027 = vunpack.c.l.b16 %v720
    %v1028 = vunpack.c.h.b16 %v720
    %v1029 = vunpack.c.l.b16 %v721
    %v1030 = vunpack.c.h.b16 %v721
    %v1031 = vunpack.c.l.b16 %v722
    %v1032 = vunpack.c.h.b16 %v722
    %v1033 = vunpack.c.l.b16 %v723
    %v1034 = vunpack.c.h.b16 %v723
    %v1035 = vunpack.c.l.b16 %v724
    %v1036 = vunpack.c.h.b16 %v724
    %v1037 = vunpack.c.l.b16 %v725
    %v1038 = vunpack.c.h.b16 %v725
    %v1039 = vunpack.c.l.b16 %v726
    %v1040 = vunpack.c.h.b16 %v726
    %v1041 = vunpack.c.l.b16 %v727
    %v1042 = vunpack.c.h.b16 %v727
    %v1043 = vunpack.c.l.b16 %v728
    %v1044 = vunpack.c.h.b16 %v728
    %v1045 = vunpack.c.l.b16 %v729
    %v1046 = vunpack.c.h.b16 %v729
    %v1047 = vunpack.c.l.b16 %v730
    %v1048 = vunpack.c.h.b16 %v730
    %v1049 = vunpack.c.l.b16 %v731
    %v1050 = vunpack.c.h.b16 %v731
    %v1051 = vunpack.c.l.b16 %v732
    %v1052 = vunpack.c.h.b16 %v732
    %v1053 = vunpack.c.l.b16 %v733
    %v1054 = vunpack.c.h.b16 %v733
    %v1055 = vunpack.c.l.b16 %v734
    %v1056 = vunpack.c.h.b16 %v734
    %v1057 = vunpack.c.l.b16 %v735
    %v1058 = vunpack.c.h.b16 %v735
    %v1059 = vunpack.c.l.b16 %v736
    %v1060 = vunpack.c.h.b16 %v736
    %v1061 = vunpack.c.l.b16 %v737
    %v1062 = vunpack.c.h.b16 %v737
    %v1063 = vunpack.c.l.b16 %v738
    %v1064 = vunpack.c.h.b16 %v738
    %v1065 = vunpack.c.l.b16 %v739
    %v1066 = vunpack.c.h.b16 %v739
    %v1067 = vunpack.c.l.b16 %v740
    %v1068 = vunpack.c.h.b16 %v740
    %v1069 = vunpack.c.l.b16 %v741
    %v1070 = vunpack.c.h.b16 %v741
    %v1071 = vunpack.c.l.b16 %v742
    %v1072 = vunpack.c.h.b16 %v742
    %v1073 = vunpack.c.l.b16 %v743
    %v1074 = vunpack.c.h.b16 %v743
    %v1075 = vunpack.c.l.b16 %v744
    %v1076 = vunpack.c.h.b16 %v744
    %v1077 = vunpack.c.l.b16 %v745
    %v1078 = vunpack.c.h.b16 %v745
    %v1079 = vunpack.c.l.b16 %v746
    %v1080 = vunpack.c.h.b16 %v746
    %v1081 = vunpack.c.l.b16 %v747
    %v1082 = vunpack.c.h.b16 %v747
    %v1083 = vunpack.c.l.b16 %v748
    %v1084 = vunpack.c.h.b16 %v748
    %v1085 = vunpack.c.l.b16 %v749
    %v1086 = vunpack.c.h.b16 %v749
    %v1087 = vunpack.c.l.b16 %v750
    %v1088 = vunpack.c.h.b16 %v750
    %v1089 = vunpack.c.l.b16 %v751
    %v1090 = vunpack.c.h.b16 %v751
    %v1091 = vunpack.c.l.b16 %v752
    %v1092 = vunpack.c.h.b16 %v752
    %v1093 = vunpack.c.l.b16 %v753
    %v1094 = vunpack.c.h.b16 %v753
    %v1095 = vunpack.c.l.b16 %v754
    %v1096 = vunpack.c.h.b16 %v754
    %v1097 = vunpack.c.l.b16 %v755
    %v1098 = vunpack.c.h.b16 %v755
    %v1099 = vunpack.c.l.b16 %v756
    %v1100 = vunpack.c.h.b16 %v756
    %v1101 = vunpack.c.l.b16 %v757
    %v1102 = vunpack.c.h.b16 %v757
    %v1103 = vunpack.c.l.b16 %v758
    %v1104 = vunpack.c.h.b16 %v758
    %v1105 = vunpack.c.l.b16 %v759
    %v1106 = vunpack.c.h.b16 %v759
    %v1107 = vunpack.c.l.b16 %v760
    %v1108 = vunpack.c.h.b16 %v760
    %v1109 = vunpack.c.l.b16 %v761
    %v1110 = vunpack.c.h.b16 %v761
    %v1111 = vunpack.c.l.b16 %v762
    %v1112 = vunpack.c.h.b16 %v762
    %v1113 = vunpack.c.l.b16 %v763
    %v1114 = vunpack.c.h.b16 %v763
    %v1115 = vunpack.c.l.b16 %v764
    %v1116 = vunpack.c.h.b16 %v764
    %v1117 = vunpack.c.l.b16 %v765
    %v1118 = vunpack.c.h.b16 %v765
    %v1119 = vunpack.c.l.b16 %v766
    %v1120 = vunpack.c.h.b16 %v766
    %v1121 = vunpack.c.l.b16 %v767
    %v1122 = vunpack.c.h.b16 %v767
    %v1123 = vunpack.c.l.b16 %v768
    %v1124 = vunpack.c.h.b16 %v768
    %v1125 = vunpack.c.l.b16 %v769
    %v1126 = vunpack.c.h.b16 %v769
    %v1127 = vunpack.c.l.b16 %v770
    %v1128 = vunpack.c.h.b16 %v770
    %v1129 = vunpack.c.l.b16 %v771
    %v1130 = vunpack.c.h.b16 %v771
    %v1131 = vunpack.c.l.b16 %v772
    %v1132 = vunpack.c.h.b16 %v772
    %v1133 = vunpack.c.l.b16 %v773
    %v1134 = vunpack.c.h.b16 %v773
    %v1135 = vunpack.c.l.b16 %v774
    %v1136 = vunpack.c.h.b16 %v774
    %v1137 = vunpack.c.l.b16 %v775
    %v1138 = vunpack.c.h.b16 %v775
    %v1139 = vunpack.c.l.b16 %v776
    %v1140 = vunpack.c.h.b16 %v776
    %v1141 = vunpack.c.l.b16 %v777
    %v1142 = vunpack.c.h.b16 %v777
    %v1143 = vunpack.c.l.b16 %v778
    %v1144 = vunpack.c.h.b16 %v778
    %v1145 = vunpack.c.l.b16 %v779
    %v1146 = vunpack.c.h.b16 %v779
    %v1147 = vunpack.c.l.b16 %v780
    %v1148 = vunpack.c.h.b16 %v780
    %v1149 = vunpack.c.l.b16 %v781
    %v1150 = vunpack.c.h.b16 %v781
    %v1151 = vunpack.c.l.b16 %v782
    %v1152 = vunpack.c.h.b16 %v782
    %v1153 = vunpack.c.l.b16 %v783
    %v1154 = vunpack.c.h.b16 %v783
    %v1155 = vunpack.c.l.b16 %v784
    %v1156 = vunpack.c.h.b16 %v784
    %v1157 = vunpack.c.l.b16 %v785
    %v1158 = vunpack.c.h.b16 %v785
    %v1159 = vunpack.c.l.b16 %v786
    %v1160 = vunpack.c.h.b16 %v786
    %v1161 = vunpack.c.l.b16 %v787
    %v1162 = vunpack.c.h.b16 %v787
    %v1163 = vunpack.c.l.b16 %v788
    %v1164 = vunpack.c.h.b16 %v788
    %v1165 = vunpack.c.l.b16 %v789
    %v1166 = vunpack.c.h.b16 %v789
    %v1167 = vunpack.c.l.b16 %v790
    %v1168 = vunpack.c.h.b16 %v790
    %v1169 = vunpack.c.l.b16 %v791
    %v1170 = vunpack.c.h.b16 %v791
    %v1171 = vunpack.c.l.b16 %v792
    %v1172 = vunpack.c.h.b16 %v792
    %v1173 = vunpack.c.l.b16 %v793
    %v1174 = vunpack.c.h.b16 %v793
    %v1175 = vunpack.c.l.b16 %v794
    %v1176 = vunpack.c.h.b16 %v794
    %v1177 = vunpack.c.l.b16 %v795
    %v1178 = vunpack.c.h.b16 %v795
    %v1179 = vunpack.c.l.b16 %v796
    %v1180 = vunpack.c.h.b16 %v796
    %v1181 = vpack.c.b16 %v927, %v925
    %v1182 = vpack.c.b16 %v928, %v926
    %v1183 = vpack.c.b16 %v931, %v929
    %v1184 = vpack.c.b16 %v932, %v930
    %v1185 = vpack.c.b16 %v935, %v933
    %v1186 = vpack.c.b16 %v936, %v934
    %v1187 = vpack.c.b16 %v939, %v937
    %v1188 = vpack.c.b16 %v940, %v938
    %v1189 = vpack.c.b16 %v943, %v941
    %v1190 = vpack.c.b16 %v944, %v942
    %v1191 = vpack.c.b16 %v947, %v945
    %v1192 = vpack.c.b16 %v948, %v946
    %v1193 = vpack.c.b16 %v951, %v949
    %v1194 = vpack.c.b16 %v952, %v950
    %v1195 = vpack.c.b16 %v955, %v953
    %v1196 = vpack.c.b16 %v956, %v954
    %v1197 = vpack.c.b16 %v959, %v957
    %v1198 = vpack.c.b16 %v960, %v958
    %v1199 = vpack.c.b16 %v963, %v961
    %v1200 = vpack.c.b16 %v964, %v962
    %v1201 = vpack.c.b16 %v967, %v965
    %v1202 = vpack.c.b16 %v968, %v966
    %v1203 = vpack.c.b16 %v971, %v969
    %v1204 = vpack.c.b16 %v972, %v970
    %v1205 = vpack.c.b16 %v975, %v973
    %v1206 = vpack.c.b16 %v976, %v974
    %v1207 = vpack.c.b16 %v979, %v977
    %v1208 = vpack.c.b16 %v980, %v978
    %v1209 = vpack.c.b16 %v983, %v981
    %v1210 = vpack.c.b16 %v984, %v982
    %v1211 = vpack.c.b16 %v987, %v985
    %v1212 = vpack.c.b16 %v988, %v986
    %v1213 = vpack.c.b16 %v991, %v989
    %v1214 = vpack.c.b16 %v992, %v990
    %v1215 = vpack.c.b16 %v995, %v993
    %v1216 = vpack.c.b16 %v996, %v994
    %v1217 = vpack.c.b16 %v999, %v997
    %v1218 = vpack.c.b16 %v1000, %v998
    %v1219 = vpack.c.b16 %v1003, %v1001
    %v1220 = vpack.c.b16 %v1004, %v1002
    %v1221 = vpack.c.b16 %v1007, %v1005
    %v1222 = vpack.c.b16 %v1008, %v1006
    %v1223 = vpack.c.b16 %v1011, %v1009
    %v1224 = vpack.c.b16 %v1012, %v1010
    %v1225 = vpack.c.b16 %v1015, %v1013
    %v1226 = vpack.c.b16 %v1016, %v1014
    %v1227 = vpack.c.b16 %v1019, %v1017
    %v1228 = vpack.c.b16 %v1020, %v1018
    %v1229 = vpack.c.b16 %v1023, %v1021
    %v1230 = vpack.c.b16 %v1024, %v1022
    %v1231 = vpack.c.b16 %v1027, %v1025
    %v1232 = vpack.c.b16 %v1028, %v1026
    %v1233 = vpack.c.b16 %v1031, %v1029
    %v1234 = vpack.c.b16 %v1032, %v1030
    %v1235 = vpack.c.b16 %v1035, %v1033
    %v1236 = vpack.c.b16 %v1036, %v1034
    %v1237 = vpack.c.b16 %v1039, %v1037
    %v1238 = vpack.c.b16 %v1040, %v1038
    %v1239 = vpack.c.b16 %v1043, %v1041
    %v1240 = vpack.c.b16 %v1044, %v1042
    %v1241 = vpack.c.b16 %v1047, %v1045
    %v1242 = vpack.c.b16 %v1048, %v1046
    %v1243 = vpack.c.b16 %v1051, %v1049
    %v1244 = vpack.c.b16 %v1052, %v1050
    %v1245 = vpack.c.b16 %v1055, %v1053
    %v1246 = vpack.c.b16 %v1056, %v1054
    %v1247 = vpack.c.b16 %v1059, %v1057
    %v1248 = vpack.c.b16 %v1060, %v1058
    %v1249 = vpack.c.b16 %v1063, %v1061
    %v1250 = vpack.c.b16 %v1064, %v1062
    %v1251 = vpack.c.b16 %v1067, %v1065
    %v1252 = vpack.c.b16 %v1068, %v1066
    %v1253 = vpack.c.b16 %v1071, %v1069
    %v1254 = vpack.c.b16 %v1072, %v1070
    %v1255 = vpack.c.b16 %v1075, %v1073
    %v1256 = vpack.c.b16 %v1076, %v1074
    %v1257 = vpack.c.b16 %v1079, %v1077
    %v1258 = vpack.c.b16 %v1080, %v1078
    %v1259 = vpack.c.b16 %v1083, %v1081
    %v1260 = vpack.c.b16 %v1084, %v1082
    %v1261 = vpack.c.b16 %v1087, %v1085
    %v1262 = vpack.c.b16 %v1088, %v1086
    %v1263 = vpack.c.b16 %v1091, %v1089
    %v1264 = vpack.c.b16 %v1092, %v1090
    %v1265 = vpack.c.b16 %v1095, %v1093
    %v1266 = vpack.c.b16 %v1096, %v1094
    %v1267 = vpack.c.b16 %v1099, %v1097
    %v1268 = vpack.c.b16 %v1100, %v1098
    %v1269 = vpack.c.b16 %v1103, %v1101
    %v1270 = vpack.c.b16 %v1104, %v1102
    %v1271 = vpack.c.b16 %v1107, %v1105
    %v1272 = vpack.c.b16 %v1108, %v1106
    %v1273 = vpack.c.b16 %v1111, %v1109
    %v1274 = vpack.c.b16 %v1112, %v1110
    %v1275 = vpack.c.b16 %v1115, %v1113
    %v1276 = vpack.c.b16 %v1116, %v1114
    %v1277 = vpack.c.b16 %v1119, %v1117
    %v1278 = vpack.c.b16 %v1120, %v1118
    %v1279 = vpack.c.b16 %v1123, %v1121
    %v1280 = vpack.c.b16 %v1124, %v1122
    %v1281 = vpack.c.b16 %v1127, %v1125
    %v1282 = vpack.c.b16 %v1128, %v1126
    %v1283 = vpack.c.b16 %v1131, %v1129
    %v1284 = vpack.c.b16 %v1132, %v1130
    %v1285 = vpack.c.b16 %v1135, %v1133
    %v1286 = vpack.c.b16 %v1136, %v1134
    %v1287 = vpack.c.b16 %v1139, %v1137
    %v1288 = vpack.c.b16 %v1140, %v1138
    %v1289 = vpack.c.b16 %v1143, %v1141
    %v1290 = vpack.c.b16 %v1144, %v1142
    %v1291 = vpack.c.b16 %v1147, %v1145
    %v1292 = vpack.c.b16 %v1148, %v1146
    %v1293 = vpack.c.b16 %v1151, %v1149
    %v1294 = vpack.c.b16 %v1152, %v1150
    %v1295 = vpack.c.b16 %v1155, %v1153
    %v1296 = vpack.c.b16 %v1156, %v1154
    %v1297 = vpack.c.b16 %v1159, %v1157
    %v1298 = vpack.c.b16 %v1160, %v1158
    %v1299 = vpack.c.b16 %v1163, %v1161
    %v1300 = vpack.c.b16 %v1164, %v1162
    %v1301 = vpack.c.b16 %v1167, %v1165
    %v1302 = vpack.c.b16 %v1168, %v1166
    %v1303 = vpack.c.b16 %v1171, %v1169
    %v1304 = vpack.c.b16 %v1172, %v1170
    %v1305 = vpack.c.b16 %v1175, %v1173
    %v1306 = vpack.c.b16 %v1176, %v1174
    %v1307 = vpack.c.b16 %v1179, %v1177
    %v1308 = vpack.c.b16 %v1180, %v1178
    %1437 = vmatprep.subr.bf16.mxu0 %v1182
    %1438 = vmatpush1.bf16.msra.mxu0 %v1181
    %1439 = vmatprep.subr.bf16.mxu0 %v1184
    %1440 = vmatpush1.bf16.msra.mxu0 %v1183
    %1441 = vmatprep.subr.bf16.mxu0 %v1186
    %1442 = vmatpush1.bf16.msra.mxu0 %v1185
    %1443 = vmatprep.subr.bf16.mxu0 %v1188
    %1444 = vmatpush1.bf16.msra.mxu0 %v1187
    %1445 = vmatprep.subr.bf16.mxu0 %v1190
    %1446 = vmatpush1.bf16.msra.mxu0 %v1189
    %1447 = vmatprep.subr.bf16.mxu0 %v1192
    %1448 = vmatpush1.bf16.msra.mxu0 %v1191
    %1449 = vmatprep.subr.bf16.mxu0 %v1194
    %1450 = vmatpush1.bf16.msra.mxu0 %v1193
    %1451 = vmatprep.subr.bf16.mxu0 %v1196
    %1452 = vmatpush1.bf16.msra.mxu0 %v1195
    %1453 = vmatprep.subr.bf16.mxu0 %v1198
    %1454 = vmatpush1.bf16.msra.mxu0 %v1197
    %1455 = vmatprep.subr.bf16.mxu0 %v1200
    %1456 = vmatpush1.bf16.msra.mxu0 %v1199
    %1457 = vmatprep.subr.bf16.mxu0 %v1202
    %1458 = vmatpush1.bf16.msra.mxu0 %v1201
    %1459 = vmatprep.subr.bf16.mxu0 %v1204
    %1460 = vmatpush1.bf16.msra.mxu0 %v1203
    %1461 = vmatprep.subr.bf16.mxu0 %v1206
    %1462 = vmatpush1.bf16.msra.mxu0 %v1205
    %1463 = vmatprep.subr.bf16.mxu0 %v1208
    %1464 = vmatpush1.bf16.msra.mxu0 %v1207
    %1465 = vmatprep.subr.bf16.mxu0 %v1210
    %1466 = vmatpush1.bf16.msra.mxu0 %v1209
    %1467 = vmatprep.subr.bf16.mxu0 %v1212
    %1468 = vmatpush1.bf16.msra.mxu0 %v1211
    %1469 = vmatprep.mubr.bf16.mxu0 %v432
    %1470 = vmatmul.mubr.bf16.gmra.mrb[0].mxu0 %v431
    %v1471 = vpop.f32.mrb[0].mxu0
    %v1472 = vadd.f32 0.0, %v1471
    %v1473 = vpop.f32.mrb[0].mxu0
    %v1474 = vadd.f32 0.0, %v1473
    %v1475 = vpop.f32.mrb[0].mxu0
    %v1476 = vadd.f32 0.0, %v1475
    %v1477 = vpop.f32.mrb[0].mxu0
    %v1478 = vadd.f32 0.0, %v1477
    %1479 = vmatprep.mubr.bf16.mxu0 %v434
    %1480 = vmatmul.mubr.bf16.gmra.mrb[0].mxu0 %v433
    %v1481 = vpop.f32.mrb[0].mxu0
    %v1482 = vadd.f32 0.0, %v1481
    %v1483 = vpop.f32.mrb[0].mxu0
    %v1484 = vadd.f32 0.0, %v1483
    %v1485 = vpop.f32.mrb[0].mxu0
    %v1486 = vadd.f32 0.0, %v1485
    %v1487 = vpop.f32.mrb[0].mxu0
    %v1488 = vadd.f32 0.0, %v1487
    %1489 = vdwg.mxu0
    %1490 = vmatprep.subr.bf16.mxu0 %v1214
    %1491 = vmatpush1.bf16.msra.mxu0 %v1213
    %1492 = vmatprep.subr.bf16.mxu0 %v1216
    %1493 = vmatpush1.bf16.msra.mxu0 %v1215
    %1494 = vmatprep.subr.bf16.mxu0 %v1218
    %1495 = vmatpush1.bf16.msra.mxu0 %v1217
    %1496 = vmatprep.subr.bf16.mxu0 %v1220
    %1497 = vmatpush1.bf16.msra.mxu0 %v1219
    %1498 = vmatprep.subr.bf16.mxu0 %v1222
    %1499 = vmatpush1.bf16.msra.mxu0 %v1221
    %1500 = vmatprep.subr.bf16.mxu0 %v1224
    %1501 = vmatpush1.bf16.msra.mxu0 %v1223
    %1502 = vmatprep.subr.bf16.mxu0 %v1226
    %1503 = vmatpush1.bf16.msra.mxu0 %v1225
    %1504 = vmatprep.subr.bf16.mxu0 %v1228
    %1505 = vmatpush1.bf16.msra.mxu0 %v1227
    %1506 = vmatprep.subr.bf16.mxu0 %v1230
    %1507 = vmatpush1.bf16.msra.mxu0 %v1229
    %1508 = vmatprep.subr.bf16.mxu0 %v1232
    %1509 = vmatpush1.bf16.msra.mxu0 %v1231
    %1510 = vmatprep.subr.bf16.mxu0 %v1234
    %1511 = vmatpush1.bf16.msra.mxu0 %v1233
    %1512 = vmatprep.subr.bf16.mxu0 %v1236
    %1513 = vmatpush1.bf16.msra.mxu0 %v1235
    %1514 = vmatprep.subr.bf16.mxu0 %v1238
    %1515 = vmatpush1.bf16.msra.mxu0 %v1237
    %1516 = vmatprep.subr.bf16.mxu0 %v1240
    %1517 = vmatpush1.bf16.msra.mxu0 %v1239
    %1518 = vmatprep.subr.bf16.mxu0 %v1242
    %1519 = vmatpush1.bf16.msra.mxu0 %v1241
    %1520 = vmatprep.subr.bf16.mxu0 %v1244
    %1521 = vmatpush1.bf16.msra.mxu0 %v1243
    %1522 = vmatprep.mubr.bf16.mxu0 %v510
    %1523 = vmatmul.mubr.bf16.gmra.mrb[0].mxu0 %v509
    %v1524 = vpop.f32.mrb[0].mxu0
    %v1525 = vadd.f32 %v1472, %v1524
    %v1526 = vpop.f32.mrb[0].mxu0
    %v1527 = vadd.f32 %v1474, %v1526
    %v1528 = vpop.f32.mrb[0].mxu0
    %v1529 = vadd.f32 %v1476, %v1528
    %v1530 = vpop.f32.mrb[0].mxu0
    %v1531 = vadd.f32 %v1478, %v1530
    %1532 = vmatprep.mubr.bf16.mxu0 %v512
    %1533 = vmatmul.mubr.bf16.gmra.mrb[0].mxu0 %v511
    %v1534 = vpop.f32.mrb[0].mxu0
    %v1535 = vadd.f32 %v1482, %v1534
    %v1536 = vpop.f32.mrb[0].mxu0
    %v1537 = vadd.f32 %v1484, %v1536
    %v1538 = vpop.f32.mrb[0].mxu0
    %v1539 = vadd.f32 %v1486, %v1538
    %v1540 = vpop.f32.mrb[0].mxu0
    %v1541 = vadd.f32 %v1488, %v1540
    %1542 = vdwg.mxu0
    %1543 = vmatprep.subr.bf16.mxu0 %v1246
    %1544 = vmatpush1.bf16.msra.mxu0 %v1245
    %1545 = vmatprep.subr.bf16.mxu0 %v1248
    %1546 = vmatpush1.bf16.msra.mxu0 %v1247
    %1547 = vmatprep.subr.bf16.mxu0 %v1250
    %1548 = vmatpush1.bf16.msra.mxu0 %v1249
    %1549 = vmatprep.subr.bf16.mxu0 %v1252
    %1550 = vmatpush1.bf16.msra.mxu0 %v1251
    %1551 = vmatprep.subr.bf16.mxu0 %v1254
    %1552 = vmatpush1.bf16.msra.mxu0 %v1253
    %1553 = vmatprep.subr.bf16.mxu0 %v1256
    %1554 = vmatpush1.bf16.msra.mxu0 %v1255
    %1555 = vmatprep.subr.bf16.mxu0 %v1258
    %1556 = vmatpush1.bf16.msra.mxu0 %v1257
    %1557 = vmatprep.subr.bf16.mxu0 %v1260
    %1558 = vmatpush1.bf16.msra.mxu0 %v1259
    %1559 = vmatprep.subr.bf16.mxu0 %v1262
    %1560 = vmatpush1.bf16.msra.mxu0 %v1261
    %1561 = vmatprep.subr.bf16.mxu0 %v1264
    %1562 = vmatpush1.bf16.msra.mxu0 %v1263
    %1563 = vmatprep.subr.bf16.mxu0 %v1266
    %1564 = vmatpush1.bf16.msra.mxu0 %v1265
    %1565 = vmatprep.subr.bf16.mxu0 %v1268
    %1566 = vmatpush1.bf16.msra.mxu0 %v1267
    %1567 = vmatprep.subr.bf16.mxu0 %v1270
    %1568 = vmatpush1.bf16.msra.mxu0 %v1269
    %1569 = vmatprep.subr.bf16.mxu0 %v1272
    %1570 = vmatpush1.bf16.msra.mxu0 %v1271
    %1571 = vmatprep.subr.bf16.mxu0 %v1274
    %1572 = vmatpush1.bf16.msra.mxu0 %v1273
    %1573 = vmatprep.subr.bf16.mxu0 %v1276
    %1574 = vmatpush1.bf16.msra.mxu0 %v1275
    %1575 = vmatprep.mubr.bf16.mxu0 %v588
    %1576 = vmatmul.mubr.bf16.gmra.mrb[0].mxu0 %v587
    %v1577 = vpop.f32.mrb[0].mxu0
    %v1578 = vadd.f32 %v1525, %v1577
    %v1579 = vpop.f32.mrb[0].mxu0
    %v1580 = vadd.f32 %v1527, %v1579
    %v1581 = vpop.f32.mrb[0].mxu0
    %v1582 = vadd.f32 %v1529, %v1581
    %v1583 = vpop.f32.mrb[0].mxu0
    %v1584 = vadd.f32 %v1531, %v1583
    %1585 = vmatprep.mubr.bf16.mxu0 %v590
    %1586 = vmatmul.mubr.bf16.gmra.mrb[0].mxu0 %v589
    %v1587 = vpop.f32.mrb[0].mxu0
    %v1588 = vadd.f32 %v1535, %v1587
    %v1589 = vpop.f32.mrb[0].mxu0
    %v1590 = vadd.f32 %v1537, %v1589
    %v1591 = vpop.f32.mrb[0].mxu0
    %v1592 = vadd.f32 %v1539, %v1591
    %v1593 = vpop.f32.mrb[0].mxu0
    %v1594 = vadd.f32 %v1541, %v1593
    %1595 = vdwg.mxu0
    %1596 = vmatprep.subr.bf16.mxu0 %v1278
    %1597 = vmatpush1.bf16.msra.mxu0 %v1277
    %1598 = vmatprep.subr.bf16.mxu0 %v1280
    %1599 = vmatpush1.bf16.msra.mxu0 %v1279
    %1600 = vmatprep.subr.bf16.mxu0 %v1282
    %1601 = vmatpush1.bf16.msra.mxu0 %v1281
    %1602 = vmatprep.subr.bf16.mxu0 %v1284
    %1603 = vmatpush1.bf16.msra.mxu0 %v1283
    %1604 = vmatprep.subr.bf16.mxu0 %v1286
    %1605 = vmatpush1.bf16.msra.mxu0 %v1285
    %1606 = vmatprep.subr.bf16.mxu0 %v1288
    %1607 = vmatpush1.bf16.msra.mxu0 %v1287
    %1608 = vmatprep.subr.bf16.mxu0 %v1290
    %1609 = vmatpush1.bf16.msra.mxu0 %v1289
    %1610 = vmatprep.subr.bf16.mxu0 %v1292
    %1611 = vmatpush1.bf16.msra.mxu0 %v1291
    %1612 = vmatprep.subr.bf16.mxu0 %v1294
    %1613 = vmatpush1.bf16.msra.mxu0 %v1293
    %1614 = vmatprep.subr.bf16.mxu0 %v1296
    %1615 = vmatpush1.bf16.msra.mxu0 %v1295
    %1616 = vmatprep.subr.bf16.mxu0 %v1298
    %1617 = vmatpush1.bf16.msra.mxu0 %v1297
    %1618 = vmatprep.subr.bf16.mxu0 %v1300
    %1619 = vmatpush1.bf16.msra.mxu0 %v1299
    %1620 = vmatprep.subr.bf16.mxu0 %v1302
    %1621 = vmatpush1.bf16.msra.mxu0 %v1301
    %1622 = vmatprep.subr.bf16.mxu0 %v1304
    %1623 = vmatpush1.bf16.msra.mxu0 %v1303
    %1624 = vmatprep.subr.bf16.mxu0 %v1306
    %1625 = vmatpush1.bf16.msra.mxu0 %v1305
    %1626 = vmatprep.subr.bf16.mxu0 %v1308
    %1627 = vmatpush1.bf16.msra.mxu0 %v1307
    %1628 = vmatprep.mubr.bf16.mxu0 %v666
    %1629 = vmatmul.mubr.bf16.gmra.mrb[0].mxu0 %v665
    %v1630 = vpop.f32.mrb[0].mxu0
    %v1631 = vadd.f32 %v1578, %v1630
    %v1632 = vpop.f32.mrb[0].mxu0
    %v1633 = vadd.f32 %v1580, %v1632
    %v1634 = vpop.f32.mrb[0].mxu0
    %v1635 = vadd.f32 %v1582, %v1634
    %v1636 = vpop.f32.mrb[0].mxu0
    %v1637 = vadd.f32 %v1584, %v1636
    %1638 = vmatprep.mubr.bf16.mxu0 %v668
    %1639 = vmatmul.mubr.bf16.gmra.mrb[0].mxu0 %v667
    %v1640 = vpop.f32.mrb[0].mxu0
    %v1641 = vadd.f32 %v1588, %v1640
    %v1642 = vpop.f32.mrb[0].mxu0
    %v1643 = vadd.f32 %v1590, %v1642
    %v1644 = vpop.f32.mrb[0].mxu0
    %v1645 = vadd.f32 %v1592, %v1644
    %v1646 = vpop.f32.mrb[0].mxu0
    %v1647 = vadd.f32 %v1594, %v1646
    %1648 = vdwg.mxu0
    %v1649 = vadd.f32 %v1631, %v1635
    %v1650 = vadd.f32 %v1649, %v1641
    %v1651 = vadd.f32 %v1650, %v1645
    %v1652 = vrot.slane %v1651, 4
    %v1653 = vadd.f32 %v1651, %v1652
    %v1654 = vrot.slane %v1653, 2
    %v1655 = vadd.f32 %v1653, %v1654
    %v1656 = vrot.slane %v1655, 1
    %v1657 = vadd.f32 %v1655, %v1656
    %v1658 = vadd.f32 %v1633, %v1637
    %v1659 = vadd.f32 %v1658, %v1643
    %v1660 = vadd.f32 %v1659, %v1647
    %v1661 = vrot.slane %v1660, 4
    %v1662 = vadd.f32 %v1660, %v1661
    %v1663 = vrot.slane %v1662, 2
    %v1664 = vadd.f32 %v1662, %v1663
    %v1665 = vrot.slane %v1664, 1
    %v1666 = vadd.f32 %v1664, %v1665
    %v1667 = vmul.f32 %v1631, %v1631
    %v1668 = vmul.f32 %v1633, %v1633
    %v1669 = vmul.f32 %v1635, %v1635
    %v1670 = vmul.f32 %v1637, %v1637
    %v1671 = vmul.f32 %v1641, %v1641
    %v1672 = vmul.f32 %v1643, %v1643
    %v1673 = vmul.f32 %v1645, %v1645
    %v1674 = vmul.f32 %v1647, %v1647
    %v1675 = vadd.f32 %v1667, %v1669
    %v1676 = vadd.f32 %v1675, %v1671
    %v1677 = vadd.f32 %v1676, %v1673
    %v1678 = vrot.slane %v1677, 4
    %v1679 = vadd.f32 %v1677, %v1678
    %v1680 = vrot.slane %v1679, 2
    %v1681 = vadd.f32 %v1679, %v1680
    %v1682 = vrot.slane %v1681, 1
    %v1683 = vadd.f32 %v1681, %v1682
    %v1684 = vadd.f32 %v1668, %v1670
    %v1685 = vadd.f32 %v1684, %v1672
    %v1686 = vadd.f32 %v1685, %v1674
    %v1687 = vrot.slane %v1686, 4
    %v1688 = vadd.f32 %v1686, %v1687
    %v1689 = vrot.slane %v1688, 2
    %v1690 = vadd.f32 %v1688, %v1689
    %v1691 = vrot.slane %v1690, 1
    %v1692 = vadd.f32 %v1690, %v1691
    %vm1693 = vcmask 1040384
    %v1694 = vsel %vm1693, %v1657, %v1683
    %v1695 = vsel %vm1693, %v1666, %v1692
    %v1696 = vld [vmem:[#allocation2] sm:$0xff]
    %v1697 = vld [vmem:[#allocation2 + $0x8] sm:$0xff]
    %v1698 = vld [vmem:[#allocation2 + $0x10] sm:$0xff]
    %v1699 = vld [vmem:[#allocation2 + $0x18] sm:$0xff]
    %v1700 = vld [vmem:[#allocation2 + $0x20] sm:$0xff]
    %v1701 = vld [vmem:[#allocation2 + $0x28] sm:$0xff]
    %v1702 = vld [vmem:[#allocation2 + $0x30] sm:$0xff]
    %v1703 = vld [vmem:[#allocation2 + $0x38] sm:$0xff]
    %v1704 = vld [vmem:[#allocation2 + $0x40] sm:$0xff]
    %v1705 = vld [vmem:[#allocation2 + $0x48] sm:$0xff]
    %v1706 = vld [vmem:[#allocation2 + $0x50] sm:$0xff]
    %v1707 = vld [vmem:[#allocation2 + $0x58] sm:$0xff]
    %v1708 = vld [vmem:[#allocation2 + $0x60] sm:$0xff]
    %v1709 = vld [vmem:[#allocation2 + $0x68] sm:$0xff]
    %v1710 = vld [vmem:[#allocation2 + $0x70] sm:$0xff]
    %v1711 = vld [vmem:[#allocation2 + $0x78] sm:$0xff]
    %v1712 = vld [vmem:[#allocation2 + $0x80] sm:$0xff]
    %v1713 = vld [vmem:[#allocation2 + $0x88] sm:$0xff]
    %v1714 = vld [vmem:[#allocation2 + $0x90] sm:$0xff]
    %v1715 = vld [vmem:[#allocation2 + $0x98] sm:$0xff]
    %v1716 = vld [vmem:[#allocation2 + $0xa0] sm:$0xff]
    %v1717 = vld [vmem:[#allocation2 + $0xa8] sm:$0xff]
    %v1718 = vld [vmem:[#allocation2 + $0xb0] sm:$0xff]
    %v1719 = vld [vmem:[#allocation2 + $0xb8] sm:$0xff]
    %v1720 = vld [vmem:[#allocation2 + $0xc0] sm:$0xff]
    %v1721 = vld [vmem:[#allocation2 + $0xc8] sm:$0xff]
    %v1722 = vld [vmem:[#allocation2 + $0xd0] sm:$0xff]
    %v1723 = vld [vmem:[#allocation2 + $0xd8] sm:$0xff]
    %v1724 = vld [vmem:[#allocation2 + $0xe0] sm:$0xff]
    %v1725 = vld [vmem:[#allocation2 + $0xe8] sm:$0xff]
    %v1726 = vld [vmem:[#allocation2 + $0xf0] sm:$0xff]
    %v1727 = vld [vmem:[#allocation2 + $0xf8] sm:$0xff]
    %v1728 = vld [vmem:[#allocation2 + $0x100] sm:$0xff]
    %v1729 = vld [vmem:[#allocation2 + $0x108] sm:$0xff]
    %v1730 = vld [vmem:[#allocation2 + $0x110] sm:$0xff]
    %v1731 = vld [vmem:[#allocation2 + $0x118] sm:$0xff]
    %v1732 = vld [vmem:[#allocation2 + $0x120] sm:$0xff]
    %v1733 = vld [vmem:[#allocation2 + $0x128] sm:$0xff]
    %v1734 = vld [vmem:[#allocation2 + $0x130] sm:$0xff]
    %v1735 = vld [vmem:[#allocation2 + $0x138] sm:$0xff]
    %v1736 = vld [vmem:[#allocation2 + $0x140] sm:$0xff]
    %v1737 = vld [vmem:[#allocation2 + $0x148] sm:$0xff]
    %v1738 = vld [vmem:[#allocation2 + $0x150] sm:$0xff]
    %v1739 = vld [vmem:[#allocation2 + $0x158] sm:$0xff]
    %v1740 = vld [vmem:[#allocation2 + $0x160] sm:$0xff]
    %v1741 = vld [vmem:[#allocation2 + $0x168] sm:$0xff]
    %v1742 = vld [vmem:[#allocation2 + $0x170] sm:$0xff]
    %v1743 = vld [vmem:[#allocation2 + $0x178] sm:$0xff]
    %v1744 = vld [vmem:[#allocation2 + $0x180] sm:$0xff]
    %v1745 = vld [vmem:[#allocation2 + $0x188] sm:$0xff]
    %v1746 = vld [vmem:[#allocation2 + $0x190] sm:$0xff]
    %v1747 = vld [vmem:[#allocation2 + $0x198] sm:$0xff]
    %v1748 = vld [vmem:[#allocation2 + $0x1a0] sm:$0xff]
    %v1749 = vld [vmem:[#allocation2 + $0x1a8] sm:$0xff]
    %v1750 = vld [vmem:[#allocation2 + $0x1b0] sm:$0xff]
    %v1751 = vld [vmem:[#allocation2 + $0x1b8] sm:$0xff]
    %v1752 = vld [vmem:[#allocation2 + $0x1c0] sm:$0xff]
    %v1753 = vld [vmem:[#allocation2 + $0x1c8] sm:$0xff]
    %v1754 = vld [vmem:[#allocation2 + $0x1d0] sm:$0xff]
    %v1755 = vld [vmem:[#allocation2 + $0x1d8] sm:$0xff]
    %v1756 = vld [vmem:[#allocation2 + $0x1e0] sm:$0xff]
    %v1757 = vld [vmem:[#allocation2 + $0x1e8] sm:$0xff]
    %v1758 = vld [vmem:[#allocation2 + $0x1f0] sm:$0xff]
    %v1759 = vld [vmem:[#allocation2 + $0x1f8] sm:$0xff]
    %1760 = vmatprep.subr.mxu0 %v1697
    %1761 = vmatpush1.msra.mxu0 %v1696
    %1762 = vmatprep.subr.mxu0 %v1699
    %1763 = vmatpush1.msra.mxu0 %v1698
    %1764 = vmatprep.subr.mxu0 %v1701
    %1765 = vmatpush1.msra.mxu0 %v1700
    %1766 = vmatprep.subr.mxu0 %v1703
    %1767 = vmatpush1.msra.mxu0 %v1702
    %1768 = vmatprep.subr.mxu0 %v1705
    %1769 = vmatpush1.msra.mxu0 %v1704
    %1770 = vmatprep.subr.mxu0 %v1707
    %1771 = vmatpush1.msra.mxu0 %v1706
    %1772 = vmatprep.subr.mxu0 %v1709
    %1773 = vmatpush1.msra.mxu0 %v1708
    %1774 = vmatprep.subr.mxu0 %v1711
    %1775 = vmatpush1.msra.mxu0 %v1710
    %1776 = vmatprep.subr.mxu0 %v1713
    %1777 = vmatpush1.msra.mxu0 %v1712
    %1778 = vmatprep.subr.mxu0 %v1715
    %1779 = vmatpush1.msra.mxu0 %v1714
    %1780 = vmatprep.subr.mxu0 %v1717
    %1781 = vmatpush1.msra.mxu0 %v1716
    %1782 = vmatprep.subr.mxu0 %v1719
    %1783 = vmatpush1.msra.mxu0 %v1718
    %1784 = vmatprep.subr.mxu0 %v1721
    %1785 = vmatpush1.msra.mxu0 %v1720
    %1786 = vmatprep.subr.mxu0 %v1723
    %1787 = vmatpush1.msra.mxu0 %v1722
    %1788 = vmatprep.subr.mxu0 %v1725
    %1789 = vmatpush1.msra.mxu0 %v1724
    %1790 = vmatprep.subr.mxu0 %v1727
    %1791 = vmatpush1.msra.mxu0 %v1726
    %1792 = vmatprep.subr.mxu0 %v1729
    %1793 = vmatpush1.msra.mxu0 %v1728
    %1794 = vmatprep.subr.mxu0 %v1731
    %1795 = vmatpush1.msra.mxu0 %v1730
    %1796 = vmatprep.subr.mxu0 %v1733
    %1797 = vmatpush1.msra.mxu0 %v1732
    %1798 = vmatprep.subr.mxu0 %v1735
    %1799 = vmatpush1.msra.mxu0 %v1734
    %1800 = vmatprep.subr.mxu0 %v1737
    %1801 = vmatpush1.msra.mxu0 %v1736
    %1802 = vmatprep.subr.mxu0 %v1739
    %1803 = vmatpush1.msra.mxu0 %v1738
    %1804 = vmatprep.subr.mxu0 %v1741
    %1805 = vmatpush1.msra.mxu0 %v1740
    %1806 = vmatprep.subr.mxu0 %v1743
    %1807 = vmatpush1.msra.mxu0 %v1742
    %1808 = vmatprep.subr.mxu0 %v1745
    %1809 = vmatpush1.msra.mxu0 %v1744
    %1810 = vmatprep.subr.mxu0 %v1747
    %1811 = vmatpush1.msra.mxu0 %v1746
    %1812 = vmatprep.subr.mxu0 %v1749
    %1813 = vmatpush1.msra.mxu0 %v1748
    %1814 = vmatprep.subr.mxu0 %v1751
    %1815 = vmatpush1.msra.mxu0 %v1750
    %1816 = vmatprep.subr.mxu0 %v1753
    %1817 = vmatpush1.msra.mxu0 %v1752
    %1818 = vmatprep.subr.mxu0 %v1755
    %1819 = vmatpush1.msra.mxu0 %v1754
    %1820 = vmatprep.subr.mxu0 %v1757
    %1821 = vmatpush1.msra.mxu0 %v1756
    %1822 = vmatprep.subr.mxu0 %v1759
    %1823 = vmatpush1.msra.mxu0 %v1758
    %1824 = vmatprep.mubr.f32.mxu0 %v1695
    %1825 = vmatmul.mubr.f32.gmra.mrb[0].mxu0 %v1694
    %v1826 = vpop.f32.mrb[0].mxu0
    %v1827 = vadd.f32 0.0, %v1826
    %v1828 = vpop.f32.mrb[0].mxu0
    %v1829 = vadd.f32 0.0, %v1828
    %1830 = vdwg.mxu0
    %v1831 = vmul.f32 %v1827, %v1827
    %v1832 = vmul.f32 %v1829, %v1829
    %v1835 = vrot.slane %v1831, 7
    %v1836 = vrot.slane %v1832, 7
    %v1839 = vsub.f32 %v1827, %v1835
    %v1840 = vsub.f32 %v1829, %v1836
    %v1841 = vmax.f32 %v1839, 0.0
    %v1842 = vmax.f32 %v1840, 0.0
    %v1843 = vadd.f32 %v1841, 1e-05
    %v1844 = vadd.f32 %v1842, 1e-05
    %v1845 = vrsqrt.pop %v1843
    %v1846 = vrsqrt.pop %v1844
    %v1847 = vlaneseq
    %v1848 = vshrl.u32 %v1847, 7
    %v1849 = vsub.s32 0, %v1848
    %v1850 = vrot.slane %v1827, %v1849
    %v1851 = vlaneseq
    %v1852 = vshrl.u32 %v1851, 7
    %v1853 = vsub.s32 0, %v1852
    %v1854 = vrot.slane %v1829, %v1853
    %v1855 = vsub.f32 %v1631, %v1850
    %v1856 = vsub.f32 %v1633, %v1854
    %v1857 = vsub.f32 %v1635, %v1850
    %v1858 = vsub.f32 %v1637, %v1854
    %v1859 = vsub.f32 %v1641, %v1850
    %v1860 = vsub.f32 %v1643, %v1854
    %v1861 = vsub.f32 %v1645, %v1850
    %v1862 = vsub.f32 %v1647, %v1854
    %v1863 = vld [vmem:[%s5] sm:$0x3]
    %v1866 = vcombine.low %v1845, %v1846
    %v1868 = vunpack.c.l.s4 1966171168
    %v1869 = vunpack.c.0.s8 %v1868
    %v1870 = vlaneseq
    %v1871 = vshrl.u32 %v1870, 7
    %v1872 = vsub.s32 %v1869, %v1871
    %v1873 = vrot.slane %v1866, %v1872
    %v1874 = vcombine.high %v1873, %v1873
    %v1876 = vunpack.c.l.s4 1966171168
    %v1877 = vunpack.c.0.s8 %v1876
    %v1878 = vlaneseq
    %v1879 = vshrl.u32 %v1878, 7
    %v1880 = vsub.s32 %v1877, %v1879
    %v1881 = vrot.slane %v1874, %v1880
    %v1883 = vmul.f32 %v1863, %v1881
    %v1885 = vlaneseq
    %v1886 = vshrl.u32 %v1885, 7
    %v1887 = vsub.s32 0, %v1886
    %v1888 = vrot.slane %v1883, %v1887
    %v1889 = vlaneseq
    %v1890 = vshrl.u32 %v1889, 7
    %v1891 = vsub.s32 1, %v1890
    %v1892 = vrot.slane %v1883, %v1891
    %v1895 = vmul.f32 %v1855, %v1888
    %v1896 = vmul.f32 %v1856, %v1892
    %v1897 = vmul.f32 %v1857, %v1888
    %v1898 = vmul.f32 %v1858, %v1892
    %v1899 = vmul.f32 %v1859, %v1888
    %v1900 = vmul.f32 %v1860, %v1892
    %v1901 = vmul.f32 %v1861, %v1888
    %v1902 = vmul.f32 %v1862, %v1892
    %v1903 = vld [vmem:[%s6] sm:$0x3]
    %v1905 = vlaneseq
    %v1906 = vshrl.u32 %v1905, 7
    %v1907 = vsub.s32 0, %v1906
    %v1908 = vrot.slane %v1903, %v1907
    %v1909 = vlaneseq
    %v1910 = vshrl.u32 %v1909, 7
    %v1911 = vsub.s32 1, %v1910
    %v1912 = vrot.slane %v1903, %v1911
    %v1915 = vadd.f32 %v1895, %v1908
    %v1916 = vadd.f32 %v1896, %v1912
    %v1917 = vadd.f32 %v1897, %v1908
    %v1918 = vadd.f32 %v1898, %v1912
    %v1919 = vadd.f32 %v1899, %v1908
    %v1920 = vadd.f32 %v1900, %v1912
    %v1921 = vadd.f32 %v1901, %v1908
    %v1922 = vadd.f32 %v1902, %v1912
    %vm1923 = vcmp.gt.f32.partialorder %v1915, 0.0
    %vm1924 = vcmp.gt.f32.partialorder %v1916, 0.0
    %vm1925 = vcmp.gt.f32.partialorder %v1917, 0.0
    %vm1926 = vcmp.gt.f32.partialorder %v1918, 0.0
    %vm1927 = vcmp.gt.f32.partialorder %v1919, 0.0
    %vm1928 = vcmp.gt.f32.partialorder %v1920, 0.0
    %vm1929 = vcmp.gt.f32.partialorder %v1921, 0.0
    %vm1930 = vcmp.gt.f32.partialorder %v1922, 0.0
    %v1931 = vmul.f32 %v1915, 0.2
    %v1932 = vmul.f32 %v1916, 0.2
    %v1933 = vmul.f32 %v1917, 0.2
    %v1934 = vmul.f32 %v1918, 0.2
    %v1935 = vmul.f32 %v1919, 0.2
    %v1936 = vmul.f32 %v1920, 0.2
    %v1937 = vmul.f32 %v1921, 0.2
    %v1938 = vmul.f32 %v1922, 0.2
    %v1939 = vsel %vm1923, %v1915, %v1931
    %v1940 = vsel %vm1924, %v1916, %v1932
    %v1941 = vsel %vm1925, %v1917, %v1933
    %v1942 = vsel %vm1926, %v1918, %v1934
    %v1943 = vsel %vm1927, %v1919, %v1935
    %v1944 = vsel %vm1928, %v1920, %v1936
    %v1945 = vsel %vm1929, %v1921, %v1937
    %v1946 = vsel %vm1930, %v1922, %v1938
    %v1947 = vpack.c.bf16 %v1941, %v1939
    %v1948 = vpack.c.bf16 %v1942, %v1940
    %v1949 = vpack.c.bf16 %v1945, %v1943
    %v1950 = vpack.c.bf16 %v1946, %v1944
    %v1951 = vld [vmem:[%s7] sm:$0xf]
    %v1952 = vld [vmem:[%s7 + $0x4] sm:$0xf]
    %v1955 = vunpack.c.l.b16 %v1951
    %v1956 = vunpack.c.l.b16 %v1952
    %v1957 = vpack.c.b16 %v1956, %v1955
    %vm1958 = vcmask 261120
    %v1960 = vsel %vm1958, %v1957, 0
    %1962 = vmatprep.subr.bf16.mxu0 %v1948
    %1963 = vmatpush1.bf16.msra.mxu0 %v1947
    %1964 = vmatprep.subr.bf16.mxu0 %v1950
    %1965 = vmatpush1.bf16.msra.mxu0 %v1949
    %1966 = vmatprep.subr.bf16.mxu0 0
    %1967 = vmatpush1.bf16.msra.mxu0 0
    %1968 = vmatprep.subr.bf16.mxu0 0
    %1969 = vmatpush1.bf16.msra.mxu0 0
    %1970 = vmatprep.subr.bf16.mxu0 0
    %1971 = vmatpush1.bf16.msra.mxu0 0
    %1972 = vmatprep.subr.bf16.mxu0 0
    %1973 = vmatpush1.bf16.msra.mxu0 0
    %1974 = vmatprep.subr.bf16.mxu0 0
    %1975 = vmatpush1.bf16.msra.mxu0 0
    %1976 = vmatprep.subr.bf16.mxu0 0
    %1977 = vmatpush1.bf16.msra.mxu0 0
    %1978 = vmatprep.subr.bf16.mxu0 0
    %1979 = vmatpush1.bf16.msra.mxu0 0
    %1980 = vmatprep.subr.bf16.mxu0 0
    %1981 = vmatpush1.bf16.msra.mxu0 0
    %1982 = vmatprep.subr.bf16.mxu0 0
    %1983 = vmatpush1.bf16.msra.mxu0 0
    %1984 = vmatprep.subr.bf16.mxu0 0
    %1985 = vmatpush1.bf16.msra.mxu0 0
    %1986 = vmatprep.subr.bf16.mxu0 0
    %1987 = vmatpush1.bf16.msra.mxu0 0
    %1988 = vmatprep.subr.bf16.mxu0 0
    %1989 = vmatpush1.bf16.msra.mxu0 0
    %1990 = vmatprep.subr.bf16.mxu0 0
    %1991 = vmatpush1.bf16.msra.mxu0 0
    %1992 = vmatprep.subr.bf16.mxu0 0
    %1993 = vmatpush1.bf16.msra.mxu0 0
    %1994 = vmatprep.mubr.bf16.mxu0 0
    %1995 = vmatmul.mubr.bf16.gmra.mrb[0].mxu0 %v1960
    %v1996 = vpop.f32.mrb[0].mxu0
    %v1997 = vadd.f32 0.0, %v1996
    %v1998 = vpop.f32.mrb[0].mxu0
    %v1999 = vadd.f32 0.0, %v1998
    %v2000 = vpop.f32.mrb[0].mxu0
    %v2001 = vadd.f32 0.0, %v2000
    %v2002 = vpop.f32.mrb[0].mxu0
    %v2003 = vadd.f32 0.0, %v2002
    %2004 = vdwg.mxu0
    %v2005 = vpack.c.bf16 %v2001, %v1997
    %v2006 = vpack.c.bf16 %v2003, %v1999
    %s2007 = scalar_lea.vmem %s7, 8
    %v2008 = vld [vmem:[%s2007] sm:$0xf]
    %v2009 = vld [vmem:[%s2007 + $0x4] sm:$0xf]
    %v2012 = vunpack.c.l.b16 %v2008
    %v2013 = vunpack.c.l.b16 %v2009
    %v2014 = vpack.c.b16 %v2013, %v2012
    %v2016 = vsel %vm1958, %v2014, 0
    %2018 = vmatprep.subr.bf16.mxu0 %v1948
    %2019 = vmatpush1.bf16.msra.mxu0 %v1947
    %2020 = vmatprep.subr.bf16.mxu0 %v1950
    %2021 = vmatpush1.bf16.msra.mxu0 %v1949
    %2022 = vmatprep.subr.bf16.mxu0 0
    %2023 = vmatpush1.bf16.msra.mxu0 0
    %2024 = vmatprep.subr.bf16.mxu0 0
    %2025 = vmatpush1.bf16.msra.mxu0 0
    %2026 = vmatprep.subr.bf16.mxu0 0
    %2027 = vmatpush1.bf16.msra.mxu0 0
    %2028 = vmatprep.subr.bf16.mxu0 0
    %2029 = vmatpush1.bf16.msra.mxu0 0
    %2030 = vmatprep.subr.bf16.mxu0 0
    %2031 = vmatpush1.bf16.msra.mxu0 0
    %2032 = vmatprep.subr.bf16.mxu0 0
    %2033 = vmatpush1.bf16.msra.mxu0 0
    %2034 = vmatprep.subr.bf16.mxu0 0
    %2035 = vmatpush1.bf16.msra.mxu0 0
    %2036 = vmatprep.subr.bf16.mxu0 0
    %2037 = vmatpush1.bf16.msra.mxu0 0
    %2038 = vmatprep.subr.bf16.mxu0 0
    %2039 = vmatpush1.bf16.msra.mxu0 0
    %2040 = vmatprep.subr.bf16.mxu0 0
    %2041 = vmatpush1.bf16.msra.mxu0 0
    %2042 = vmatprep.subr.bf16.mxu0 0
    %2043 = vmatpush1.bf16.msra.mxu0 0
    %2044 = vmatprep.subr.bf16.mxu0 0
    %2045 = vmatpush1.bf16.msra.mxu0 0
    %2046 = vmatprep.subr.bf16.mxu0 0
    %2047 = vmatpush1.bf16.msra.mxu0 0
    %2048 = vmatprep.subr.bf16.mxu0 0
    %2049 = vmatpush1.bf16.msra.mxu0 0
    %2050 = vmatprep.mubr.bf16.mxu0 0
    %2051 = vmatmul.mubr.bf16.gmra.mrb[0].mxu0 %v2016
    %v2052 = vpop.f32.mrb[0].mxu0
    %v2053 = vadd.f32 0.0, %v2052
    %v2054 = vpop.f32.mrb[0].mxu0
    %v2055 = vadd.f32 0.0, %v2054
    %v2056 = vpop.f32.mrb[0].mxu0
    %v2057 = vadd.f32 0.0, %v2056
    %v2058 = vpop.f32.mrb[0].mxu0
    %v2059 = vadd.f32 0.0, %v2058
    %2060 = vdwg.mxu0
    %v2061 = vpack.c.bf16 %v2057, %v2053
    %v2062 = vpack.c.bf16 %v2059, %v2055
    %s2063 = scalar_lea.vmem %s7, 16
    %v2064 = vld [vmem:[%s2063] sm:$0xf]
    %v2065 = vld [vmem:[%s2063 + $0x4] sm:$0xf]
    %v2068 = vunpack.c.l.b16 %v2064
    %v2069 = vunpack.c.l.b16 %v2065
    %v2070 = vpack.c.b16 %v2069, %v2068
    %v2072 = vsel %vm1958, %v2070, 0
    %2074 = vmatprep.subr.bf16.mxu0 %v1948
    %2075 = vmatpush1.bf16.msra.mxu0 %v1947
    %2076 = vmatprep.subr.bf16.mxu0 %v1950
    %2077 = vmatpush1.bf16.msra.mxu0 %v1949
    %2078 = vmatprep.subr.bf16.mxu0 0
    %2079 = vmatpush1.bf16.msra.mxu0 0
    %2080 = vmatprep.subr.bf16.mxu0 0
    %2081 = vmatpush1.bf16.msra.mxu0 0
    %2082 = vmatprep.subr.bf16.mxu0 0
    %2083 = vmatpush1.bf16.msra.mxu0 0
    %2084 = vmatprep.subr.bf16.mxu0 0
    %2085 = vmatpush1.bf16.msra.mxu0 0
    %2086 = vmatprep.subr.bf16.mxu0 0
    %2087 = vmatpush1.bf16.msra.mxu0 0
    %2088 = vmatprep.subr.bf16.mxu0 0
    %2089 = vmatpush1.bf16.msra.mxu0 0
    %2090 = vmatprep.subr.bf16.mxu0 0
    %2091 = vmatpush1.bf16.msra.mxu0 0
    %2092 = vmatprep.subr.bf16.mxu0 0
    %2093 = vmatpush1.bf16.msra.mxu0 0
    %2094 = vmatprep.subr.bf16.mxu0 0
    %2095 = vmatpush1.bf16.msra.mxu0 0
    %2096 = vmatprep.subr.bf16.mxu0 0
    %2097 = vmatpush1.bf16.msra.mxu0 0
    %2098 = vmatprep.subr.bf16.mxu0 0
    %2099 = vmatpush1.bf16.msra.mxu0 0
    %2100 = vmatprep.subr.bf16.mxu0 0
    %2101 = vmatpush1.bf16.msra.mxu0 0
    %2102 = vmatprep.subr.bf16.mxu0 0
    %2103 = vmatpush1.bf16.msra.mxu0 0
    %2104 = vmatprep.subr.bf16.mxu0 0
    %2105 = vmatpush1.bf16.msra.mxu0 0
    %2106 = vmatprep.mubr.bf16.mxu0 0
    %2107 = vmatmul.mubr.bf16.gmra.mrb[0].mxu0 %v2072
    %v2108 = vpop.f32.mrb[0].mxu0
    %v2109 = vadd.f32 0.0, %v2108
    %v2110 = vpop.f32.mrb[0].mxu0
    %v2111 = vadd.f32 0.0, %v2110
    %v2112 = vpop.f32.mrb[0].mxu0
    %v2113 = vadd.f32 0.0, %v2112
    %v2114 = vpop.f32.mrb[0].mxu0
    %v2115 = vadd.f32 0.0, %v2114
    %2116 = vdwg.mxu0
    %v2117 = vpack.c.bf16 %v2113, %v2109
    %v2118 = vpack.c.bf16 %v2115, %v2111
    %s2119 = scalar_lea.vmem %s7, 24
    %v2120 = vld [vmem:[%s2119] sm:$0xf]
    %v2121 = vld [vmem:[%s2119 + $0x4] sm:$0xf]
    %v2124 = vunpack.c.l.b16 %v2120
    %v2125 = vunpack.c.l.b16 %v2121
    %v2126 = vpack.c.b16 %v2125, %v2124
    %v2128 = vsel %vm1958, %v2126, 0
    %2130 = vmatprep.subr.bf16.mxu0 %v1948
    %2131 = vmatpush1.bf16.msra.mxu0 %v1947
    %2132 = vmatprep.subr.bf16.mxu0 %v1950
    %2133 = vmatpush1.bf16.msra.mxu0 %v1949
    %2134 = vmatprep.subr.bf16.mxu0 0
    %2135 = vmatpush1.bf16.msra.mxu0 0
    %2136 = vmatprep.subr.bf16.mxu0 0
    %2137 = vmatpush1.bf16.msra.mxu0 0
    %2138 = vmatprep.subr.bf16.mxu0 0
    %2139 = vmatpush1.bf16.msra.mxu0 0
    %2140 = vmatprep.subr.bf16.mxu0 0
    %2141 = vmatpush1.bf16.msra.mxu0 0
    %2142 = vmatprep.subr.bf16.mxu0 0
    %2143 = vmatpush1.bf16.msra.mxu0 0
    %2144 = vmatprep.subr.bf16.mxu0 0
    %2145 = vmatpush1.bf16.msra.mxu0 0
    %2146 = vmatprep.subr.bf16.mxu0 0
    %2147 = vmatpush1.bf16.msra.mxu0 0
    %2148 = vmatprep.subr.bf16.mxu0 0
    %2149 = vmatpush1.bf16.msra.mxu0 0
    %2150 = vmatprep.subr.bf16.mxu0 0
    %2151 = vmatpush1.bf16.msra.mxu0 0
    %2152 = vmatprep.subr.bf16.mxu0 0
    %2153 = vmatpush1.bf16.msra.mxu0 0
    %2154 = vmatprep.subr.bf16.mxu0 0
    %2155 = vmatpush1.bf16.msra.mxu0 0
    %2156 = vmatprep.subr.bf16.mxu0 0
    %2157 = vmatpush1.bf16.msra.mxu0 0
    %2158 = vmatprep.subr.bf16.mxu0 0
    %2159 = vmatpush1.bf16.msra.mxu0 0
    %2160 = vmatprep.subr.bf16.mxu0 0
    %2161 = vmatpush1.bf16.msra.mxu0 0
    %2162 = vmatprep.mubr.bf16.mxu0 0
    %2163 = vmatmul.mubr.bf16.gmra.mrb[0].mxu0 %v2128
    %v2164 = vpop.f32.mrb[0].mxu0
    %v2165 = vadd.f32 0.0, %v2164
    %v2166 = vpop.f32.mrb[0].mxu0
    %v2167 = vadd.f32 0.0, %v2166
    %v2168 = vpop.f32.mrb[0].mxu0
    %v2169 = vadd.f32 0.0, %v2168
    %v2170 = vpop.f32.mrb[0].mxu0
    %v2171 = vadd.f32 0.0, %v2170
    %2172 = vdwg.mxu0
    %v2173 = vpack.c.bf16 %v2169, %v2165
    %v2174 = vpack.c.bf16 %v2171, %v2167
    %v2175 = vld [vmem:[#allocation4] sm:$0xff]
    %v2176 = vld [vmem:[#allocation4 + $0x8] sm:$0xff]
    %v2177 = vld [vmem:[#allocation4 + $0x10] sm:$0xff]
    %v2178 = vld [vmem:[#allocation4 + $0x18] sm:$0xff]
    %v2179 = vld [vmem:[#allocation4 + $0x20] sm:$0xff]
    %v2180 = vld [vmem:[#allocation4 + $0x28] sm:$0xff]
    %v2181 = vld [vmem:[#allocation4 + $0x30] sm:$0xff]
    %v2182 = vld [vmem:[#allocation4 + $0x38] sm:$0xff]
    %v2183 = vld [vmem:[#allocation4 + $0x40] sm:$0xff]
    %v2184 = vld [vmem:[#allocation4 + $0x48] sm:$0xff]
    %v2185 = vld [vmem:[#allocation4 + $0x50] sm:$0xff]
    %v2186 = vld [vmem:[#allocation4 + $0x58] sm:$0xff]
    %v2187 = vld [vmem:[#allocation4 + $0x60] sm:$0xff]
    %v2188 = vld [vmem:[#allocation4 + $0x68] sm:$0xff]
    %v2189 = vld [vmem:[#allocation4 + $0x70] sm:$0xff]
    %v2190 = vld [vmem:[#allocation4 + $0x78] sm:$0xff]
    %v2191 = vld [vmem:[#allocation4 + $0x80] sm:$0xff]
    %v2192 = vld [vmem:[#allocation4 + $0x88] sm:$0xff]
    %v2193 = vld [vmem:[#allocation4 + $0x90] sm:$0xff]
    %v2194 = vld [vmem:[#allocation4 + $0x98] sm:$0xff]
    %v2195 = vld [vmem:[#allocation4 + $0xa0] sm:$0xff]
    %v2196 = vld [vmem:[#allocation4 + $0xa8] sm:$0xff]
    %v2197 = vld [vmem:[#allocation4 + $0xb0] sm:$0xff]
    %v2198 = vld [vmem:[#allocation4 + $0xb8] sm:$0xff]
    %v2199 = vld [vmem:[#allocation4 + $0xc0] sm:$0xff]
    %v2200 = vld [vmem:[#allocation4 + $0xc8] sm:$0xff]
    %v2201 = vld [vmem:[#allocation4 + $0xd0] sm:$0xff]
    %v2202 = vld [vmem:[#allocation4 + $0xd8] sm:$0xff]
    %v2203 = vld [vmem:[#allocation4 + $0xe0] sm:$0xff]
    %v2204 = vld [vmem:[#allocation4 + $0xe8] sm:$0xff]
    %v2205 = vld [vmem:[#allocation4 + $0xf0] sm:$0xff]
    %v2206 = vld [vmem:[#allocation4 + $0xf8] sm:$0xff]
    %v2207 = vld [vmem:[#allocation4 + $0x100] sm:$0xff]
    %v2208 = vld [vmem:[#allocation4 + $0x108] sm:$0xff]
    %v2209 = vld [vmem:[#allocation4 + $0x110] sm:$0xff]
    %v2210 = vld [vmem:[#allocation4 + $0x118] sm:$0xff]
    %v2211 = vld [vmem:[#allocation4 + $0x120] sm:$0xff]
    %v2212 = vld [vmem:[#allocation4 + $0x128] sm:$0xff]
    %v2213 = vld [vmem:[#allocation4 + $0x130] sm:$0xff]
    %v2214 = vld [vmem:[#allocation4 + $0x138] sm:$0xff]
    %v2215 = vld [vmem:[#allocation4 + $0x140] sm:$0xff]
    %v2216 = vld [vmem:[#allocation4 + $0x148] sm:$0xff]
    %v2217 = vld [vmem:[#allocation4 + $0x150] sm:$0xff]
    %v2218 = vld [vmem:[#allocation4 + $0x158] sm:$0xff]
    %v2219 = vld [vmem:[#allocation4 + $0x160] sm:$0xff]
    %v2220 = vld [vmem:[#allocation4 + $0x168] sm:$0xff]
    %v2221 = vld [vmem:[#allocation4 + $0x170] sm:$0xff]
    %v2222 = vld [vmem:[#allocation4 + $0x178] sm:$0xff]
    %v2223 = vld [vmem:[#allocation4 + $0x180] sm:$0xff]
    %v2224 = vld [vmem:[#allocation4 + $0x188] sm:$0xff]
    %v2225 = vld [vmem:[#allocation4 + $0x190] sm:$0xff]
    %v2226 = vld [vmem:[#allocation4 + $0x198] sm:$0xff]
    %v2227 = vld [vmem:[#allocation4 + $0x1a0] sm:$0xff]
    %v2228 = vld [vmem:[#allocation4 + $0x1a8] sm:$0xff]
    %v2229 = vld [vmem:[#allocation4 + $0x1b0] sm:$0xff]
    %v2230 = vld [vmem:[#allocation4 + $0x1b8] sm:$0xff]
    %v2231 = vld [vmem:[#allocation4 + $0x1c0] sm:$0xff]
    %v2232 = vld [vmem:[#allocation4 + $0x1c8] sm:$0xff]
    %v2233 = vld [vmem:[#allocation4 + $0x1d0] sm:$0xff]
    %v2234 = vld [vmem:[#allocation4 + $0x1d8] sm:$0xff]
    %v2235 = vld [vmem:[#allocation4 + $0x1e0] sm:$0xff]
    %v2236 = vld [vmem:[#allocation4 + $0x1e8] sm:$0xff]
    %v2237 = vld [vmem:[#allocation4 + $0x1f0] sm:$0xff]
    %v2238 = vld [vmem:[#allocation4 + $0x1f8] sm:$0xff]
    %v2239 = vld [vmem:[#allocation4 + $0x200] sm:$0xff]
    %v2240 = vld [vmem:[#allocation4 + $0x208] sm:$0xff]
    %v2241 = vld [vmem:[#allocation4 + $0x210] sm:$0xff]
    %v2242 = vld [vmem:[#allocation4 + $0x218] sm:$0xff]
    %v2243 = vld [vmem:[#allocation4 + $0x220] sm:$0xff]
    %v2244 = vld [vmem:[#allocation4 + $0x228] sm:$0xff]
    %v2245 = vld [vmem:[#allocation4 + $0x230] sm:$0xff]
    %v2246 = vld [vmem:[#allocation4 + $0x238] sm:$0xff]
    %v2247 = vld [vmem:[#allocation4 + $0x240] sm:$0xff]
    %v2248 = vld [vmem:[#allocation4 + $0x248] sm:$0xff]
    %v2249 = vld [vmem:[#allocation4 + $0x250] sm:$0xff]
    %v2250 = vld [vmem:[#allocation4 + $0x258] sm:$0xff]
    %v2251 = vld [vmem:[#allocation4 + $0x260] sm:$0xff]
    %v2252 = vld [vmem:[#allocation4 + $0x268] sm:$0xff]
    %v2253 = vld [vmem:[#allocation4 + $0x270] sm:$0xff]
    %v2254 = vld [vmem:[#allocation4 + $0x278] sm:$0xff]
    %v2255 = vld [vmem:[#allocation4 + $0x280] sm:$0xff]
    %v2256 = vld [vmem:[#allocation4 + $0x288] sm:$0xff]
    %v2257 = vld [vmem:[#allocation4 + $0x290] sm:$0xff]
    %v2258 = vld [vmem:[#allocation4 + $0x298] sm:$0xff]
    %v2259 = vld [vmem:[#allocation4 + $0x2a0] sm:$0xff]
    %v2260 = vld [vmem:[#allocation4 + $0x2a8] sm:$0xff]
    %v2261 = vld [vmem:[#allocation4 + $0x2b0] sm:$0xff]
    %v2262 = vld [vmem:[#allocation4 + $0x2b8] sm:$0xff]
    %v2263 = vld [vmem:[#allocation4 + $0x2c0] sm:$0xff]
    %v2264 = vld [vmem:[#allocation4 + $0x2c8] sm:$0xff]
    %v2265 = vld [vmem:[#allocation4 + $0x2d0] sm:$0xff]
    %v2266 = vld [vmem:[#allocation4 + $0x2d8] sm:$0xff]
    %v2267 = vld [vmem:[#allocation4 + $0x2e0] sm:$0xff]
    %v2268 = vld [vmem:[#allocation4 + $0x2e8] sm:$0xff]
    %v2269 = vld [vmem:[#allocation4 + $0x2f0] sm:$0xff]
    %v2270 = vld [vmem:[#allocation4 + $0x2f8] sm:$0xff]
    %v2271 = vld [vmem:[#allocation4 + $0x300] sm:$0xff]
    %v2272 = vld [vmem:[#allocation4 + $0x308] sm:$0xff]
    %v2273 = vld [vmem:[#allocation4 + $0x310] sm:$0xff]
    %v2274 = vld [vmem:[#allocation4 + $0x318] sm:$0xff]
    %v2275 = vld [vmem:[#allocation4 + $0x320] sm:$0xff]
    %v2276 = vld [vmem:[#allocation4 + $0x328] sm:$0xff]
    %v2277 = vld [vmem:[#allocation4 + $0x330] sm:$0xff]
    %v2278 = vld [vmem:[#allocation4 + $0x338] sm:$0xff]
    %v2279 = vld [vmem:[#allocation4 + $0x340] sm:$0xff]
    %v2280 = vld [vmem:[#allocation4 + $0x348] sm:$0xff]
    %v2281 = vld [vmem:[#allocation4 + $0x350] sm:$0xff]
    %v2282 = vld [vmem:[#allocation4 + $0x358] sm:$0xff]
    %v2283 = vld [vmem:[#allocation4 + $0x360] sm:$0xff]
    %v2284 = vld [vmem:[#allocation4 + $0x368] sm:$0xff]
    %v2285 = vld [vmem:[#allocation4 + $0x370] sm:$0xff]
    %v2286 = vld [vmem:[#allocation4 + $0x378] sm:$0xff]
    %v2287 = vld [vmem:[#allocation4 + $0x380] sm:$0xff]
    %v2288 = vld [vmem:[#allocation4 + $0x388] sm:$0xff]
    %v2289 = vld [vmem:[#allocation4 + $0x390] sm:$0xff]
    %v2290 = vld [vmem:[#allocation4 + $0x398] sm:$0xff]
    %v2291 = vld [vmem:[#allocation4 + $0x3a0] sm:$0xff]
    %v2292 = vld [vmem:[#allocation4 + $0x3a8] sm:$0xff]
    %v2293 = vld [vmem:[#allocation4 + $0x3b0] sm:$0xff]
    %v2294 = vld [vmem:[#allocation4 + $0x3b8] sm:$0xff]
    %v2295 = vld [vmem:[#allocation4 + $0x3c0] sm:$0xff]
    %v2296 = vld [vmem:[#allocation4 + $0x3c8] sm:$0xff]
    %v2297 = vld [vmem:[#allocation4 + $0x3d0] sm:$0xff]
    %v2298 = vld [vmem:[#allocation4 + $0x3d8] sm:$0xff]
    %v2299 = vld [vmem:[#allocation4 + $0x3e0] sm:$0xff]
    %v2300 = vld [vmem:[#allocation4 + $0x3e8] sm:$0xff]
    %v2301 = vld [vmem:[#allocation4 + $0x3f0] sm:$0xff]
    %v2302 = vld [vmem:[#allocation4 + $0x3f8] sm:$0xff]
    %v2431 = vunpack.c.l.b16 %v2175
    %v2432 = vunpack.c.h.b16 %v2175
    %v2433 = vunpack.c.l.b16 %v2176
    %v2434 = vunpack.c.h.b16 %v2176
    %v2435 = vunpack.c.l.b16 %v2177
    %v2436 = vunpack.c.h.b16 %v2177
    %v2437 = vunpack.c.l.b16 %v2178
    %v2438 = vunpack.c.h.b16 %v2178
    %v2439 = vunpack.c.l.b16 %v2179
    %v2440 = vunpack.c.h.b16 %v2179
    %v2441 = vunpack.c.l.b16 %v2180
    %v2442 = vunpack.c.h.b16 %v2180
    %v2443 = vunpack.c.l.b16 %v2181
    %v2444 = vunpack.c.h.b16 %v2181
    %v2445 = vunpack.c.l.b16 %v2182
    %v2446 = vunpack.c.h.b16 %v2182
    %v2447 = vunpack.c.l.b16 %v2183
    %v2448 = vunpack.c.h.b16 %v2183
    %v2449 = vunpack.c.l.b16 %v2184
    %v2450 = vunpack.c.h.b16 %v2184
    %v2451 = vunpack.c.l.b16 %v2185
    %v2452 = vunpack.c.h.b16 %v2185
    %v2453 = vunpack.c.l.b16 %v2186
    %v2454 = vunpack.c.h.b16 %v2186
    %v2455 = vunpack.c.l.b16 %v2187
    %v2456 = vunpack.c.h.b16 %v2187
    %v2457 = vunpack.c.l.b16 %v2188
    %v2458 = vunpack.c.h.b16 %v2188
    %v2459 = vunpack.c.l.b16 %v2189
    %v2460 = vunpack.c.h.b16 %v2189
    %v2461 = vunpack.c.l.b16 %v2190
    %v2462 = vunpack.c.h.b16 %v2190
    %v2463 = vunpack.c.l.b16 %v2191
    %v2464 = vunpack.c.h.b16 %v2191
    %v2465 = vunpack.c.l.b16 %v2192
    %v2466 = vunpack.c.h.b16 %v2192
    %v2467 = vunpack.c.l.b16 %v2193
    %v2468 = vunpack.c.h.b16 %v2193
    %v2469 = vunpack.c.l.b16 %v2194
    %v2470 = vunpack.c.h.b16 %v2194
    %v2471 = vunpack.c.l.b16 %v2195
    %v2472 = vunpack.c.h.b16 %v2195
    %v2473 = vunpack.c.l.b16 %v2196
    %v2474 = vunpack.c.h.b16 %v2196
    %v2475 = vunpack.c.l.b16 %v2197
    %v2476 = vunpack.c.h.b16 %v2197
    %v2477 = vunpack.c.l.b16 %v2198
    %v2478 = vunpack.c.h.b16 %v2198
    %v2479 = vunpack.c.l.b16 %v2199
    %v2480 = vunpack.c.h.b16 %v2199
    %v2481 = vunpack.c.l.b16 %v2200
    %v2482 = vunpack.c.h.b16 %v2200
    %v2483 = vunpack.c.l.b16 %v2201
    %v2484 = vunpack.c.h.b16 %v2201
    %v2485 = vunpack.c.l.b16 %v2202
    %v2486 = vunpack.c.h.b16 %v2202
    %v2487 = vunpack.c.l.b16 %v2203
    %v2488 = vunpack.c.h.b16 %v2203
    %v2489 = vunpack.c.l.b16 %v2204
    %v2490 = vunpack.c.h.b16 %v2204
    %v2491 = vunpack.c.l.b16 %v2205
    %v2492 = vunpack.c.h.b16 %v2205
    %v2493 = vunpack.c.l.b16 %v2206
    %v2494 = vunpack.c.h.b16 %v2206
    %v2495 = vunpack.c.l.b16 %v2207
    %v2496 = vunpack.c.h.b16 %v2207
    %v2497 = vunpack.c.l.b16 %v2208
    %v2498 = vunpack.c.h.b16 %v2208
    %v2499 = vunpack.c.l.b16 %v2209
    %v2500 = vunpack.c.h.b16 %v2209
    %v2501 = vunpack.c.l.b16 %v2210
    %v2502 = vunpack.c.h.b16 %v2210
    %v2503 = vunpack.c.l.b16 %v2211
    %v2504 = vunpack.c.h.b16 %v2211
    %v2505 = vunpack.c.l.b16 %v2212
    %v2506 = vunpack.c.h.b16 %v2212
    %v2507 = vunpack.c.l.b16 %v2213
    %v2508 = vunpack.c.h.b16 %v2213
    %v2509 = vunpack.c.l.b16 %v2214
    %v2510 = vunpack.c.h.b16 %v2214
    %v2511 = vunpack.c.l.b16 %v2215
    %v2512 = vunpack.c.h.b16 %v2215
    %v2513 = vunpack.c.l.b16 %v2216
    %v2514 = vunpack.c.h.b16 %v2216
    %v2515 = vunpack.c.l.b16 %v2217
    %v2516 = vunpack.c.h.b16 %v2217
    %v2517 = vunpack.c.l.b16 %v2218
    %v2518 = vunpack.c.h.b16 %v2218
    %v2519 = vunpack.c.l.b16 %v2219
    %v2520 = vunpack.c.h.b16 %v2219
    %v2521 = vunpack.c.l.b16 %v2220
    %v2522 = vunpack.c.h.b16 %v2220
    %v2523 = vunpack.c.l.b16 %v2221
    %v2524 = vunpack.c.h.b16 %v2221
    %v2525 = vunpack.c.l.b16 %v2222
    %v2526 = vunpack.c.h.b16 %v2222
    %v2527 = vunpack.c.l.b16 %v2223
    %v2528 = vunpack.c.h.b16 %v2223
    %v2529 = vunpack.c.l.b16 %v2224
    %v2530 = vunpack.c.h.b16 %v2224
    %v2531 = vunpack.c.l.b16 %v2225
    %v2532 = vunpack.c.h.b16 %v2225
    %v2533 = vunpack.c.l.b16 %v2226
    %v2534 = vunpack.c.h.b16 %v2226
    %v2535 = vunpack.c.l.b16 %v2227
    %v2536 = vunpack.c.h.b16 %v2227
    %v2537 = vunpack.c.l.b16 %v2228
    %v2538 = vunpack.c.h.b16 %v2228
    %v2539 = vunpack.c.l.b16 %v2229
    %v2540 = vunpack.c.h.b16 %v2229
    %v2541 = vunpack.c.l.b16 %v2230
    %v2542 = vunpack.c.h.b16 %v2230
    %v2543 = vunpack.c.l.b16 %v2231
    %v2544 = vunpack.c.h.b16 %v2231
    %v2545 = vunpack.c.l.b16 %v2232
    %v2546 = vunpack.c.h.b16 %v2232
    %v2547 = vunpack.c.l.b16 %v2233
    %v2548 = vunpack.c.h.b16 %v2233
    %v2549 = vunpack.c.l.b16 %v2234
    %v2550 = vunpack.c.h.b16 %v2234
    %v2551 = vunpack.c.l.b16 %v2235
    %v2552 = vunpack.c.h.b16 %v2235
    %v2553 = vunpack.c.l.b16 %v2236
    %v2554 = vunpack.c.h.b16 %v2236
    %v2555 = vunpack.c.l.b16 %v2237
    %v2556 = vunpack.c.h.b16 %v2237
    %v2557 = vunpack.c.l.b16 %v2238
    %v2558 = vunpack.c.h.b16 %v2238
    %v2559 = vunpack.c.l.b16 %v2239
    %v2560 = vunpack.c.h.b16 %v2239
    %v2561 = vunpack.c.l.b16 %v2240
    %v2562 = vunpack.c.h.b16 %v2240
    %v2563 = vunpack.c.l.b16 %v2241
    %v2564 = vunpack.c.h.b16 %v2241
    %v2565 = vunpack.c.l.b16 %v2242
    %v2566 = vunpack.c.h.b16 %v2242
    %v2567 = vunpack.c.l.b16 %v2243
    %v2568 = vunpack.c.h.b16 %v2243
    %v2569 = vunpack.c.l.b16 %v2244
    %v2570 = vunpack.c.h.b16 %v2244
    %v2571 = vunpack.c.l.b16 %v2245
    %v2572 = vunpack.c.h.b16 %v2245
    %v2573 = vunpack.c.l.b16 %v2246
    %v2574 = vunpack.c.h.b16 %v2246
    %v2575 = vunpack.c.l.b16 %v2247
    %v2576 = vunpack.c.h.b16 %v2247
    %v2577 = vunpack.c.l.b16 %v2248
    %v2578 = vunpack.c.h.b16 %v2248
    %v2579 = vunpack.c.l.b16 %v2249
    %v2580 = vunpack.c.h.b16 %v2249
    %v2581 = vunpack.c.l.b16 %v2250
    %v2582 = vunpack.c.h.b16 %v2250
    %v2583 = vunpack.c.l.b16 %v2251
    %v2584 = vunpack.c.h.b16 %v2251
    %v2585 = vunpack.c.l.b16 %v2252
    %v2586 = vunpack.c.h.b16 %v2252
    %v2587 = vunpack.c.l.b16 %v2253
    %v2588 = vunpack.c.h.b16 %v2253
    %v2589 = vunpack.c.l.b16 %v2254
    %v2590 = vunpack.c.h.b16 %v2254
    %v2591 = vunpack.c.l.b16 %v2255
    %v2592 = vunpack.c.h.b16 %v2255
    %v2593 = vunpack.c.l.b16 %v2256
    %v2594 = vunpack.c.h.b16 %v2256
    %v2595 = vunpack.c.l.b16 %v2257
    %v2596 = vunpack.c.h.b16 %v2257
    %v2597 = vunpack.c.l.b16 %v2258
    %v2598 = vunpack.c.h.b16 %v2258
    %v2599 = vunpack.c.l.b16 %v2259
    %v2600 = vunpack.c.h.b16 %v2259
    %v2601 = vunpack.c.l.b16 %v2260
    %v2602 = vunpack.c.h.b16 %v2260
    %v2603 = vunpack.c.l.b16 %v2261
    %v2604 = vunpack.c.h.b16 %v2261
    %v2605 = vunpack.c.l.b16 %v2262
    %v2606 = vunpack.c.h.b16 %v2262
    %v2607 = vunpack.c.l.b16 %v2263
    %v2608 = vunpack.c.h.b16 %v2263
    %v2609 = vunpack.c.l.b16 %v2264
    %v2610 = vunpack.c.h.b16 %v2264
    %v2611 = vunpack.c.l.b16 %v2265
    %v2612 = vunpack.c.h.b16 %v2265
    %v2613 = vunpack.c.l.b16 %v2266
    %v2614 = vunpack.c.h.b16 %v2266
    %v2615 = vunpack.c.l.b16 %v2267
    %v2616 = vunpack.c.h.b16 %v2267
    %v2617 = vunpack.c.l.b16 %v2268
    %v2618 = vunpack.c.h.b16 %v2268
    %v2619 = vunpack.c.l.b16 %v2269
    %v2620 = vunpack.c.h.b16 %v2269
    %v2621 = vunpack.c.l.b16 %v2270
    %v2622 = vunpack.c.h.b16 %v2270
    %v2623 = vunpack.c.l.b16 %v2271
    %v2624 = vunpack.c.h.b16 %v2271
    %v2625 = vunpack.c.l.b16 %v2272
    %v2626 = vunpack.c.h.b16 %v2272
    %v2627 = vunpack.c.l.b16 %v2273
    %v2628 = vunpack.c.h.b16 %v2273
    %v2629 = vunpack.c.l.b16 %v2274
    %v2630 = vunpack.c.h.b16 %v2274
    %v2631 = vunpack.c.l.b16 %v2275
    %v2632 = vunpack.c.h.b16 %v2275
    %v2633 = vunpack.c.l.b16 %v2276
    %v2634 = vunpack.c.h.b16 %v2276
    %v2635 = vunpack.c.l.b16 %v2277
    %v2636 = vunpack.c.h.b16 %v2277
    %v2637 = vunpack.c.l.b16 %v2278
    %v2638 = vunpack.c.h.b16 %v2278
    %v2639 = vunpack.c.l.b16 %v2279
    %v2640 = vunpack.c.h.b16 %v2279
    %v2641 = vunpack.c.l.b16 %v2280
    %v2642 = vunpack.c.h.b16 %v2280
    %v2643 = vunpack.c.l.b16 %v2281
    %v2644 = vunpack.c.h.b16 %v2281
    %v2645 = vunpack.c.l.b16 %v2282
    %v2646 = vunpack.c.h.b16 %v2282
    %v2647 = vunpack.c.l.b16 %v2283
    %v2648 = vunpack.c.h.b16 %v2283
    %v2649 = vunpack.c.l.b16 %v2284
    %v2650 = vunpack.c.h.b16 %v2284
    %v2651 = vunpack.c.l.b16 %v2285
    %v2652 = vunpack.c.h.b16 %v2285
    %v2653 = vunpack.c.l.b16 %v2286
    %v2654 = vunpack.c.h.b16 %v2286
    %v2655 = vunpack.c.l.b16 %v2287
    %v2656 = vunpack.c.h.b16 %v2287
    %v2657 = vunpack.c.l.b16 %v2288
    %v2658 = vunpack.c.h.b16 %v2288
    %v2659 = vunpack.c.l.b16 %v2289
    %v2660 = vunpack.c.h.b16 %v2289
    %v2661 = vunpack.c.l.b16 %v2290
    %v2662 = vunpack.c.h.b16 %v2290
    %v2663 = vunpack.c.l.b16 %v2291
    %v2664 = vunpack.c.h.b16 %v2291
    %v2665 = vunpack.c.l.b16 %v2292
    %v2666 = vunpack.c.h.b16 %v2292
    %v2667 = vunpack.c.l.b16 %v2293
    %v2668 = vunpack.c.h.b16 %v2293
    %v2669 = vunpack.c.l.b16 %v2294
    %v2670 = vunpack.c.h.b16 %v2294
    %v2671 = vunpack.c.l.b16 %v2295
    %v2672 = vunpack.c.h.b16 %v2295
    %v2673 = vunpack.c.l.b16 %v2296
    %v2674 = vunpack.c.h.b16 %v2296
    %v2675 = vunpack.c.l.b16 %v2297
    %v2676 = vunpack.c.h.b16 %v2297
    %v2677 = vunpack.c.l.b16 %v2298
    %v2678 = vunpack.c.h.b16 %v2298
    %v2679 = vunpack.c.l.b16 %v2299
    %v2680 = vunpack.c.h.b16 %v2299
    %v2681 = vunpack.c.l.b16 %v2300
    %v2682 = vunpack.c.h.b16 %v2300
    %v2683 = vunpack.c.l.b16 %v2301
    %v2684 = vunpack.c.h.b16 %v2301
    %v2685 = vunpack.c.l.b16 %v2302
    %v2686 = vunpack.c.h.b16 %v2302
    %v2687 = vpack.c.b16 %v2433, %v2431
    %v2688 = vpack.c.b16 %v2434, %v2432
    %v2689 = vpack.c.b16 %v2437, %v2435
    %v2690 = vpack.c.b16 %v2438, %v2436
    %v2691 = vpack.c.b16 %v2441, %v2439
    %v2692 = vpack.c.b16 %v2442, %v2440
    %v2693 = vpack.c.b16 %v2445, %v2443
    %v2694 = vpack.c.b16 %v2446, %v2444
    %v2695 = vpack.c.b16 %v2449, %v2447
    %v2696 = vpack.c.b16 %v2450, %v2448
    %v2697 = vpack.c.b16 %v2453, %v2451
    %v2698 = vpack.c.b16 %v2454, %v2452
    %v2699 = vpack.c.b16 %v2457, %v2455
    %v2700 = vpack.c.b16 %v2458, %v2456
    %v2701 = vpack.c.b16 %v2461, %v2459
    %v2702 = vpack.c.b16 %v2462, %v2460
    %v2703 = vpack.c.b16 %v2465, %v2463
    %v2704 = vpack.c.b16 %v2466, %v2464
    %v2705 = vpack.c.b16 %v2469, %v2467
    %v2706 = vpack.c.b16 %v2470, %v2468
    %v2707 = vpack.c.b16 %v2473, %v2471
    %v2708 = vpack.c.b16 %v2474, %v2472
    %v2709 = vpack.c.b16 %v2477, %v2475
    %v2710 = vpack.c.b16 %v2478, %v2476
    %v2711 = vpack.c.b16 %v2481, %v2479
    %v2712 = vpack.c.b16 %v2482, %v2480
    %v2713 = vpack.c.b16 %v2485, %v2483
    %v2714 = vpack.c.b16 %v2486, %v2484
    %v2715 = vpack.c.b16 %v2489, %v2487
    %v2716 = vpack.c.b16 %v2490, %v2488
    %v2717 = vpack.c.b16 %v2493, %v2491
    %v2718 = vpack.c.b16 %v2494, %v2492
    %v2719 = vpack.c.b16 %v2497, %v2495
    %v2720 = vpack.c.b16 %v2498, %v2496
    %v2721 = vpack.c.b16 %v2501, %v2499
    %v2722 = vpack.c.b16 %v2502, %v2500
    %v2723 = vpack.c.b16 %v2505, %v2503
    %v2724 = vpack.c.b16 %v2506, %v2504
    %v2725 = vpack.c.b16 %v2509, %v2507
    %v2726 = vpack.c.b16 %v2510, %v2508
    %v2727 = vpack.c.b16 %v2513, %v2511
    %v2728 = vpack.c.b16 %v2514, %v2512
    %v2729 = vpack.c.b16 %v2517, %v2515
    %v2730 = vpack.c.b16 %v2518, %v2516
    %v2731 = vpack.c.b16 %v2521, %v2519
    %v2732 = vpack.c.b16 %v2522, %v2520
    %v2733 = vpack.c.b16 %v2525, %v2523
    %v2734 = vpack.c.b16 %v2526, %v2524
    %v2735 = vpack.c.b16 %v2529, %v2527
    %v2736 = vpack.c.b16 %v2530, %v2528
    %v2737 = vpack.c.b16 %v2533, %v2531
    %v2738 = vpack.c.b16 %v2534, %v2532
    %v2739 = vpack.c.b16 %v2537, %v2535
    %v2740 = vpack.c.b16 %v2538, %v2536
    %v2741 = vpack.c.b16 %v2541, %v2539
    %v2742 = vpack.c.b16 %v2542, %v2540
    %v2743 = vpack.c.b16 %v2545, %v2543
    %v2744 = vpack.c.b16 %v2546, %v2544
    %v2745 = vpack.c.b16 %v2549, %v2547
    %v2746 = vpack.c.b16 %v2550, %v2548
    %v2747 = vpack.c.b16 %v2553, %v2551
    %v2748 = vpack.c.b16 %v2554, %v2552
    %v2749 = vpack.c.b16 %v2557, %v2555
    %v2750 = vpack.c.b16 %v2558, %v2556
    %v2751 = vpack.c.b16 %v2561, %v2559
    %v2752 = vpack.c.b16 %v2562, %v2560
    %v2753 = vpack.c.b16 %v2565, %v2563
    %v2754 = vpack.c.b16 %v2566, %v2564
    %v2755 = vpack.c.b16 %v2569, %v2567
    %v2756 = vpack.c.b16 %v2570, %v2568
    %v2757 = vpack.c.b16 %v2573, %v2571
    %v2758 = vpack.c.b16 %v2574, %v2572
    %v2759 = vpack.c.b16 %v2577, %v2575
    %v2760 = vpack.c.b16 %v2578, %v2576
    %v2761 = vpack.c.b16 %v2581, %v2579
    %v2762 = vpack.c.b16 %v2582, %v2580
    %v2763 = vpack.c.b16 %v2585, %v2583
    %v2764 = vpack.c.b16 %v2586, %v2584
    %v2765 = vpack.c.b16 %v2589, %v2587
    %v2766 = vpack.c.b16 %v2590, %v2588
    %v2767 = vpack.c.b16 %v2593, %v2591
    %v2768 = vpack.c.b16 %v2594, %v2592
    %v2769 = vpack.c.b16 %v2597, %v2595
    %v2770 = vpack.c.b16 %v2598, %v2596
    %v2771 = vpack.c.b16 %v2601, %v2599
    %v2772 = vpack.c.b16 %v2602, %v2600
    %v2773 = vpack.c.b16 %v2605, %v2603
    %v2774 = vpack.c.b16 %v2606, %v2604
    %v2775 = vpack.c.b16 %v2609, %v2607
    %v2776 = vpack.c.b16 %v2610, %v2608
    %v2777 = vpack.c.b16 %v2613, %v2611
    %v2778 = vpack.c.b16 %v2614, %v2612
    %v2779 = vpack.c.b16 %v2617, %v2615
    %v2780 = vpack.c.b16 %v2618, %v2616
    %v2781 = vpack.c.b16 %v2621, %v2619
    %v2782 = vpack.c.b16 %v2622, %v2620
    %v2783 = vpack.c.b16 %v2625, %v2623
    %v2784 = vpack.c.b16 %v2626, %v2624
    %v2785 = vpack.c.b16 %v2629, %v2627
    %v2786 = vpack.c.b16 %v2630, %v2628
    %v2787 = vpack.c.b16 %v2633, %v2631
    %v2788 = vpack.c.b16 %v2634, %v2632
    %v2789 = vpack.c.b16 %v2637, %v2635
    %v2790 = vpack.c.b16 %v2638, %v2636
    %v2791 = vpack.c.b16 %v2641, %v2639
    %v2792 = vpack.c.b16 %v2642, %v2640
    %v2793 = vpack.c.b16 %v2645, %v2643
    %v2794 = vpack.c.b16 %v2646, %v2644
    %v2795 = vpack.c.b16 %v2649, %v2647
    %v2796 = vpack.c.b16 %v2650, %v2648
    %v2797 = vpack.c.b16 %v2653, %v2651
    %v2798 = vpack.c.b16 %v2654, %v2652
    %v2799 = vpack.c.b16 %v2657, %v2655
    %v2800 = vpack.c.b16 %v2658, %v2656
    %v2801 = vpack.c.b16 %v2661, %v2659
    %v2802 = vpack.c.b16 %v2662, %v2660
    %v2803 = vpack.c.b16 %v2665, %v2663
    %v2804 = vpack.c.b16 %v2666, %v2664
    %v2805 = vpack.c.b16 %v2669, %v2667
    %v2806 = vpack.c.b16 %v2670, %v2668
    %v2807 = vpack.c.b16 %v2673, %v2671
    %v2808 = vpack.c.b16 %v2674, %v2672
    %v2809 = vpack.c.b16 %v2677, %v2675
    %v2810 = vpack.c.b16 %v2678, %v2676
    %v2811 = vpack.c.b16 %v2681, %v2679
    %v2812 = vpack.c.b16 %v2682, %v2680
    %v2813 = vpack.c.b16 %v2685, %v2683
    %v2814 = vpack.c.b16 %v2686, %v2684
    %2943 = vmatprep.subr.bf16.mxu0 %v2688
    %2944 = vmatpush1.bf16.msra.mxu0 %v2687
    %2945 = vmatprep.subr.bf16.mxu0 %v2690
    %2946 = vmatpush1.bf16.msra.mxu0 %v2689
    %2947 = vmatprep.subr.bf16.mxu0 %v2692
    %2948 = vmatpush1.bf16.msra.mxu0 %v2691
    %2949 = vmatprep.subr.bf16.mxu0 %v2694
    %2950 = vmatpush1.bf16.msra.mxu0 %v2693
    %2951 = vmatprep.subr.bf16.mxu0 %v2696
    %2952 = vmatpush1.bf16.msra.mxu0 %v2695
    %2953 = vmatprep.subr.bf16.mxu0 %v2698
    %2954 = vmatpush1.bf16.msra.mxu0 %v2697
    %2955 = vmatprep.subr.bf16.mxu0 %v2700
    %2956 = vmatpush1.bf16.msra.mxu0 %v2699
    %2957 = vmatprep.subr.bf16.mxu0 %v2702
    %2958 = vmatpush1.bf16.msra.mxu0 %v2701
    %2959 = vmatprep.subr.bf16.mxu0 %v2704
    %2960 = vmatpush1.bf16.msra.mxu0 %v2703
    %2961 = vmatprep.subr.bf16.mxu0 %v2706
    %2962 = vmatpush1.bf16.msra.mxu0 %v2705
    %2963 = vmatprep.subr.bf16.mxu0 %v2708
    %2964 = vmatpush1.bf16.msra.mxu0 %v2707
    %2965 = vmatprep.subr.bf16.mxu0 %v2710
    %2966 = vmatpush1.bf16.msra.mxu0 %v2709
    %2967 = vmatprep.subr.bf16.mxu0 %v2712
    %2968 = vmatpush1.bf16.msra.mxu0 %v2711
    %2969 = vmatprep.subr.bf16.mxu0 %v2714
    %2970 = vmatpush1.bf16.msra.mxu0 %v2713
    %2971 = vmatprep.subr.bf16.mxu0 %v2716
    %2972 = vmatpush1.bf16.msra.mxu0 %v2715
    %2973 = vmatprep.subr.bf16.mxu0 %v2718
    %2974 = vmatpush1.bf16.msra.mxu0 %v2717
    %2975 = vmatprep.mubr.bf16.mxu0 %v2006
    %2976 = vmatmul.mubr.bf16.gmra.mrb[0].mxu0 %v2005
    %v2977 = vpop.f32.mrb[0].mxu0
    %v2978 = vadd.f32 0.0, %v2977
    %v2979 = vpop.f32.mrb[0].mxu0
    %v2980 = vadd.f32 0.0, %v2979
    %v2981 = vpop.f32.mrb[0].mxu0
    %v2982 = vadd.f32 0.0, %v2981
    %v2983 = vpop.f32.mrb[0].mxu0
    %v2984 = vadd.f32 0.0, %v2983
    %2985 = vdwg.mxu0
    %2986 = vmatprep.subr.bf16.mxu0 %v2720
    %2987 = vmatpush1.bf16.msra.mxu0 %v2719
    %2988 = vmatprep.subr.bf16.mxu0 %v2722
    %2989 = vmatpush1.bf16.msra.mxu0 %v2721
    %2990 = vmatprep.subr.bf16.mxu0 %v2724
    %2991 = vmatpush1.bf16.msra.mxu0 %v2723
    %2992 = vmatprep.subr.bf16.mxu0 %v2726
    %2993 = vmatpush1.bf16.msra.mxu0 %v2725
    %2994 = vmatprep.subr.bf16.mxu0 %v2728
    %2995 = vmatpush1.bf16.msra.mxu0 %v2727
    %2996 = vmatprep.subr.bf16.mxu0 %v2730
    %2997 = vmatpush1.bf16.msra.mxu0 %v2729
    %2998 = vmatprep.subr.bf16.mxu0 %v2732
    %2999 = vmatpush1.bf16.msra.mxu0 %v2731
    %3000 = vmatprep.subr.bf16.mxu0 %v2734
    %3001 = vmatpush1.bf16.msra.mxu0 %v2733
    %3002 = vmatprep.subr.bf16.mxu0 %v2736
    %3003 = vmatpush1.bf16.msra.mxu0 %v2735
    %3004 = vmatprep.subr.bf16.mxu0 %v2738
    %3005 = vmatpush1.bf16.msra.mxu0 %v2737
    %3006 = vmatprep.subr.bf16.mxu0 %v2740
    %3007 = vmatpush1.bf16.msra.mxu0 %v2739
    %3008 = vmatprep.subr.bf16.mxu0 %v2742
    %3009 = vmatpush1.bf16.msra.mxu0 %v2741
    %3010 = vmatprep.subr.bf16.mxu0 %v2744
    %3011 = vmatpush1.bf16.msra.mxu0 %v2743
    %3012 = vmatprep.subr.bf16.mxu0 %v2746
    %3013 = vmatpush1.bf16.msra.mxu0 %v2745
    %3014 = vmatprep.subr.bf16.mxu0 %v2748
    %3015 = vmatpush1.bf16.msra.mxu0 %v2747
    %3016 = vmatprep.subr.bf16.mxu0 %v2750
    %3017 = vmatpush1.bf16.msra.mxu0 %v2749
    %3018 = vmatprep.mubr.bf16.mxu0 %v2062
    %3019 = vmatmul.mubr.bf16.gmra.mrb[0].mxu0 %v2061
    %v3020 = vpop.f32.mrb[0].mxu0
    %v3021 = vadd.f32 %v2978, %v3020
    %v3022 = vpop.f32.mrb[0].mxu0
    %v3023 = vadd.f32 %v2980, %v3022
    %v3024 = vpop.f32.mrb[0].mxu0
    %v3025 = vadd.f32 %v2982, %v3024
    %v3026 = vpop.f32.mrb[0].mxu0
    %v3027 = vadd.f32 %v2984, %v3026
    %3028 = vdwg.mxu0
    %3029 = vmatprep.subr.bf16.mxu0 %v2752
    %3030 = vmatpush1.bf16.msra.mxu0 %v2751
    %3031 = vmatprep.subr.bf16.mxu0 %v2754
    %3032 = vmatpush1.bf16.msra.mxu0 %v2753
    %3033 = vmatprep.subr.bf16.mxu0 %v2756
    %3034 = vmatpush1.bf16.msra.mxu0 %v2755
    %3035 = vmatprep.subr.bf16.mxu0 %v2758
    %3036 = vmatpush1.bf16.msra.mxu0 %v2757
    %3037 = vmatprep.subr.bf16.mxu0 %v2760
    %3038 = vmatpush1.bf16.msra.mxu0 %v2759
    %3039 = vmatprep.subr.bf16.mxu0 %v2762
    %3040 = vmatpush1.bf16.msra.mxu0 %v2761
    %3041 = vmatprep.subr.bf16.mxu0 %v2764
    %3042 = vmatpush1.bf16.msra.mxu0 %v2763
    %3043 = vmatprep.subr.bf16.mxu0 %v2766
    %3044 = vmatpush1.bf16.msra.mxu0 %v2765
    %3045 = vmatprep.subr.bf16.mxu0 %v2768
    %3046 = vmatpush1.bf16.msra.mxu0 %v2767
    %3047 = vmatprep.subr.bf16.mxu0 %v2770
    %3048 = vmatpush1.bf16.msra.mxu0 %v2769
    %3049 = vmatprep.subr.bf16.mxu0 %v2772
    %3050 = vmatpush1.bf16.msra.mxu0 %v2771
    %3051 = vmatprep.subr.bf16.mxu0 %v2774
    %3052 = vmatpush1.bf16.msra.mxu0 %v2773
    %3053 = vmatprep.subr.bf16.mxu0 %v2776
    %3054 = vmatpush1.bf16.msra.mxu0 %v2775
    %3055 = vmatprep.subr.bf16.mxu0 %v2778
    %3056 = vmatpush1.bf16.msra.mxu0 %v2777
    %3057 = vmatprep.subr.bf16.mxu0 %v2780
    %3058 = vmatpush1.bf16.msra.mxu0 %v2779
    %3059 = vmatprep.subr.bf16.mxu0 %v2782
    %3060 = vmatpush1.bf16.msra.mxu0 %v2781
    %3061 = vmatprep.mubr.bf16.mxu0 %v2118
    %3062 = vmatmul.mubr.bf16.gmra.mrb[0].mxu0 %v2117
    %v3063 = vpop.f32.mrb[0].mxu0
    %v3064 = vadd.f32 %v3021, %v3063
    %v3065 = vpop.f32.mrb[0].mxu0
    %v3066 = vadd.f32 %v3023, %v3065
    %v3067 = vpop.f32.mrb[0].mxu0
    %v3068 = vadd.f32 %v3025, %v3067
    %v3069 = vpop.f32.mrb[0].mxu0
    %v3070 = vadd.f32 %v3027, %v3069
    %3071 = vdwg.mxu0
    %3072 = vmatprep.subr.bf16.mxu0 %v2784
    %3073 = vmatpush1.bf16.msra.mxu0 %v2783
    %3074 = vmatprep.subr.bf16.mxu0 %v2786
    %3075 = vmatpush1.bf16.msra.mxu0 %v2785
    %3076 = vmatprep.subr.bf16.mxu0 %v2788
    %3077 = vmatpush1.bf16.msra.mxu0 %v2787
    %3078 = vmatprep.subr.bf16.mxu0 %v2790
    %3079 = vmatpush1.bf16.msra.mxu0 %v2789
    %3080 = vmatprep.subr.bf16.mxu0 %v2792
    %3081 = vmatpush1.bf16.msra.mxu0 %v2791
    %3082 = vmatprep.subr.bf16.mxu0 %v2794
    %3083 = vmatpush1.bf16.msra.mxu0 %v2793
    %3084 = vmatprep.subr.bf16.mxu0 %v2796
    %3085 = vmatpush1.bf16.msra.mxu0 %v2795
    %3086 = vmatprep.subr.bf16.mxu0 %v2798
    %3087 = vmatpush1.bf16.msra.mxu0 %v2797
    %3088 = vmatprep.subr.bf16.mxu0 %v2800
    %3089 = vmatpush1.bf16.msra.mxu0 %v2799
    %3090 = vmatprep.subr.bf16.mxu0 %v2802
    %3091 = vmatpush1.bf16.msra.mxu0 %v2801
    %3092 = vmatprep.subr.bf16.mxu0 %v2804
    %3093 = vmatpush1.bf16.msra.mxu0 %v2803
    %3094 = vmatprep.subr.bf16.mxu0 %v2806
    %3095 = vmatpush1.bf16.msra.mxu0 %v2805
    %3096 = vmatprep.subr.bf16.mxu0 %v2808
    %3097 = vmatpush1.bf16.msra.mxu0 %v2807
    %3098 = vmatprep.subr.bf16.mxu0 %v2810
    %3099 = vmatpush1.bf16.msra.mxu0 %v2809
    %3100 = vmatprep.subr.bf16.mxu0 %v2812
    %3101 = vmatpush1.bf16.msra.mxu0 %v2811
    %3102 = vmatprep.subr.bf16.mxu0 %v2814
    %3103 = vmatpush1.bf16.msra.mxu0 %v2813
    %3104 = vmatprep.mubr.bf16.mxu0 %v2174
    %3105 = vmatmul.mubr.bf16.gmra.mrb[0].mxu0 %v2173
    %v3106 = vpop.f32.mrb[0].mxu0
    %v3107 = vadd.f32 %v3064, %v3106
    %v3108 = vpop.f32.mrb[0].mxu0
    %v3109 = vadd.f32 %v3066, %v3108
    %v3110 = vpop.f32.mrb[0].mxu0
    %v3111 = vadd.f32 %v3068, %v3110
    %v3112 = vpop.f32.mrb[0].mxu0
    %v3113 = vadd.f32 %v3070, %v3112
    %3114 = vdwg.mxu0
    %v3115 = vadd.f32 %v3107, %v3111
    %v3116 = vrot.slane %v3115, 4
    %v3117 = vadd.f32 %v3115, %v3116
    %v3118 = vrot.slane %v3117, 2
    %v3119 = vadd.f32 %v3117, %v3118
    %v3120 = vrot.slane %v3119, 1
    %v3121 = vadd.f32 %v3119, %v3120
    %v3122 = vadd.f32 %v3109, %v3113
    %v3123 = vrot.slane %v3122, 4
    %v3124 = vadd.f32 %v3122, %v3123
    %v3125 = vrot.slane %v3124, 2
    %v3126 = vadd.f32 %v3124, %v3125
    %v3127 = vrot.slane %v3126, 1
    %v3128 = vadd.f32 %v3126, %v3127
    %v3129 = vmul.f32 %v3107, %v3107
    %v3130 = vmul.f32 %v3109, %v3109
    %v3131 = vmul.f32 %v3111, %v3111
    %v3132 = vmul.f32 %v3113, %v3113
    %v3133 = vadd.f32 %v3129, %v3131
    %v3134 = vrot.slane %v3133, 4
    %v3135 = vadd.f32 %v3133, %v3134
    %v3136 = vrot.slane %v3135, 2
    %v3137 = vadd.f32 %v3135, %v3136
    %v3138 = vrot.slane %v3137, 1
    %v3139 = vadd.f32 %v3137, %v3138
    %v3140 = vadd.f32 %v3130, %v3132
    %v3141 = vrot.slane %v3140, 4
    %v3142 = vadd.f32 %v3140, %v3141
    %v3143 = vrot.slane %v3142, 2
    %v3144 = vadd.f32 %v3142, %v3143
    %v3145 = vrot.slane %v3144, 1
    %v3146 = vadd.f32 %v3144, %v3145
    %v3147 = vsel %vm1693, %v3121, %v3139
    %v3148 = vsel %vm1693, %v3128, %v3146
    %v3149 = vld [vmem:[#allocation6] sm:$0xff]
    %v3150 = vld [vmem:[#allocation6 + $0x8] sm:$0xff]
    %v3151 = vld [vmem:[#allocation6 + $0x10] sm:$0xff]
    %v3152 = vld [vmem:[#allocation6 + $0x18] sm:$0xff]
    %v3153 = vld [vmem:[#allocation6 + $0x20] sm:$0xff]
    %v3154 = vld [vmem:[#allocation6 + $0x28] sm:$0xff]
    %v3155 = vld [vmem:[#allocation6 + $0x30] sm:$0xff]
    %v3156 = vld [vmem:[#allocation6 + $0x38] sm:$0xff]
    %v3157 = vld [vmem:[#allocation6 + $0x40] sm:$0xff]
    %v3158 = vld [vmem:[#allocation6 + $0x48] sm:$0xff]
    %v3159 = vld [vmem:[#allocation6 + $0x50] sm:$0xff]
    %v3160 = vld [vmem:[#allocation6 + $0x58] sm:$0xff]
    %v3161 = vld [vmem:[#allocation6 + $0x60] sm:$0xff]
    %v3162 = vld [vmem:[#allocation6 + $0x68] sm:$0xff]
    %v3163 = vld [vmem:[#allocation6 + $0x70] sm:$0xff]
    %v3164 = vld [vmem:[#allocation6 + $0x78] sm:$0xff]
    %v3165 = vld [vmem:[#allocation6 + $0x80] sm:$0xff]
    %v3166 = vld [vmem:[#allocation6 + $0x88] sm:$0xff]
    %v3167 = vld [vmem:[#allocation6 + $0x90] sm:$0xff]
    %v3168 = vld [vmem:[#allocation6 + $0x98] sm:$0xff]
    %v3169 = vld [vmem:[#allocation6 + $0xa0] sm:$0xff]
    %v3170 = vld [vmem:[#allocation6 + $0xa8] sm:$0xff]
    %v3171 = vld [vmem:[#allocation6 + $0xb0] sm:$0xff]
    %v3172 = vld [vmem:[#allocation6 + $0xb8] sm:$0xff]
    %v3173 = vld [vmem:[#allocation6 + $0xc0] sm:$0xff]
    %v3174 = vld [vmem:[#allocation6 + $0xc8] sm:$0xff]
    %v3175 = vld [vmem:[#allocation6 + $0xd0] sm:$0xff]
    %v3176 = vld [vmem:[#allocation6 + $0xd8] sm:$0xff]
    %v3177 = vld [vmem:[#allocation6 + $0xe0] sm:$0xff]
    %v3178 = vld [vmem:[#allocation6 + $0xe8] sm:$0xff]
    %v3179 = vld [vmem:[#allocation6 + $0xf0] sm:$0xff]
    %v3180 = vld [vmem:[#allocation6 + $0xf8] sm:$0xff]
    %v3181 = vld [vmem:[#allocation6 + $0x100] sm:$0xff]
    %v3182 = vld [vmem:[#allocation6 + $0x108] sm:$0xff]
    %v3183 = vld [vmem:[#allocation6 + $0x110] sm:$0xff]
    %v3184 = vld [vmem:[#allocation6 + $0x118] sm:$0xff]
    %v3185 = vld [vmem:[#allocation6 + $0x120] sm:$0xff]
    %v3186 = vld [vmem:[#allocation6 + $0x128] sm:$0xff]
    %v3187 = vld [vmem:[#allocation6 + $0x130] sm:$0xff]
    %v3188 = vld [vmem:[#allocation6 + $0x138] sm:$0xff]
    %v3189 = vld [vmem:[#allocation6 + $0x140] sm:$0xff]
    %v3190 = vld [vmem:[#allocation6 + $0x148] sm:$0xff]
    %v3191 = vld [vmem:[#allocation6 + $0x150] sm:$0xff]
    %v3192 = vld [vmem:[#allocation6 + $0x158] sm:$0xff]
    %v3193 = vld [vmem:[#allocation6 + $0x160] sm:$0xff]
    %v3194 = vld [vmem:[#allocation6 + $0x168] sm:$0xff]
    %v3195 = vld [vmem:[#allocation6 + $0x170] sm:$0xff]
    %v3196 = vld [vmem:[#allocation6 + $0x178] sm:$0xff]
    %v3197 = vld [vmem:[#allocation6 + $0x180] sm:$0xff]
    %v3198 = vld [vmem:[#allocation6 + $0x188] sm:$0xff]
    %v3199 = vld [vmem:[#allocation6 + $0x190] sm:$0xff]
    %v3200 = vld [vmem:[#allocation6 + $0x198] sm:$0xff]
    %v3201 = vld [vmem:[#allocation6 + $0x1a0] sm:$0xff]
    %v3202 = vld [vmem:[#allocation6 + $0x1a8] sm:$0xff]
    %v3203 = vld [vmem:[#allocation6 + $0x1b0] sm:$0xff]
    %v3204 = vld [vmem:[#allocation6 + $0x1b8] sm:$0xff]
    %v3205 = vld [vmem:[#allocation6 + $0x1c0] sm:$0xff]
    %v3206 = vld [vmem:[#allocation6 + $0x1c8] sm:$0xff]
    %v3207 = vld [vmem:[#allocation6 + $0x1d0] sm:$0xff]
    %v3208 = vld [vmem:[#allocation6 + $0x1d8] sm:$0xff]
    %v3209 = vld [vmem:[#allocation6 + $0x1e0] sm:$0xff]
    %v3210 = vld [vmem:[#allocation6 + $0x1e8] sm:$0xff]
    %v3211 = vld [vmem:[#allocation6 + $0x1f0] sm:$0xff]
    %v3212 = vld [vmem:[#allocation6 + $0x1f8] sm:$0xff]
    %3213 = vmatprep.subr.mxu0 %v3150
    %3214 = vmatpush1.msra.mxu0 %v3149
    %3215 = vmatprep.subr.mxu0 %v3152
    %3216 = vmatpush1.msra.mxu0 %v3151
    %3217 = vmatprep.subr.mxu0 %v3154
    %3218 = vmatpush1.msra.mxu0 %v3153
    %3219 = vmatprep.subr.mxu0 %v3156
    %3220 = vmatpush1.msra.mxu0 %v3155
    %3221 = vmatprep.subr.mxu0 %v3158
    %3222 = vmatpush1.msra.mxu0 %v3157
    %3223 = vmatprep.subr.mxu0 %v3160
    %3224 = vmatpush1.msra.mxu0 %v3159
    %3225 = vmatprep.subr.mxu0 %v3162
    %3226 = vmatpush1.msra.mxu0 %v3161
    %3227 = vmatprep.subr.mxu0 %v3164
    %3228 = vmatpush1.msra.mxu0 %v3163
    %3229 = vmatprep.subr.mxu0 %v3166
    %3230 = vmatpush1.msra.mxu0 %v3165
    %3231 = vmatprep.subr.mxu0 %v3168
    %3232 = vmatpush1.msra.mxu0 %v3167
    %3233 = vmatprep.subr.mxu0 %v3170
    %3234 = vmatpush1.msra.mxu0 %v3169
    %3235 = vmatprep.subr.mxu0 %v3172
    %3236 = vmatpush1.msra.mxu0 %v3171
    %3237 = vmatprep.subr.mxu0 %v3174
    %3238 = vmatpush1.msra.mxu0 %v3173
    %3239 = vmatprep.subr.mxu0 %v3176
    %3240 = vmatpush1.msra.mxu0 %v3175
    %3241 = vmatprep.subr.mxu0 %v3178
    %3242 = vmatpush1.msra.mxu0 %v3177
    %3243 = vmatprep.subr.mxu0 %v3180
    %3244 = vmatpush1.msra.mxu0 %v3179
    %3245 = vmatprep.subr.mxu0 %v3182
    %3246 = vmatpush1.msra.mxu0 %v3181
    %3247 = vmatprep.subr.mxu0 %v3184
    %3248 = vmatpush1.msra.mxu0 %v3183
    %3249 = vmatprep.subr.mxu0 %v3186
    %3250 = vmatpush1.msra.mxu0 %v3185
    %3251 = vmatprep.subr.mxu0 %v3188
    %3252 = vmatpush1.msra.mxu0 %v3187
    %3253 = vmatprep.subr.mxu0 %v3190
    %3254 = vmatpush1.msra.mxu0 %v3189
    %3255 = vmatprep.subr.mxu0 %v3192
    %3256 = vmatpush1.msra.mxu0 %v3191
    %3257 = vmatprep.subr.mxu0 %v3194
    %3258 = vmatpush1.msra.mxu0 %v3193
    %3259 = vmatprep.subr.mxu0 %v3196
    %3260 = vmatpush1.msra.mxu0 %v3195
    %3261 = vmatprep.subr.mxu0 %v3198
    %3262 = vmatpush1.msra.mxu0 %v3197
    %3263 = vmatprep.subr.mxu0 %v3200
    %3264 = vmatpush1.msra.mxu0 %v3199
    %3265 = vmatprep.subr.mxu0 %v3202
    %3266 = vmatpush1.msra.mxu0 %v3201
    %3267 = vmatprep.subr.mxu0 %v3204
    %3268 = vmatpush1.msra.mxu0 %v3203
    %3269 = vmatprep.subr.mxu0 %v3206
    %3270 = vmatpush1.msra.mxu0 %v3205
    %3271 = vmatprep.subr.mxu0 %v3208
    %3272 = vmatpush1.msra.mxu0 %v3207
    %3273 = vmatprep.subr.mxu0 %v3210
    %3274 = vmatpush1.msra.mxu0 %v3209
    %3275 = vmatprep.subr.mxu0 %v3212
    %3276 = vmatpush1.msra.mxu0 %v3211
    %3277 = vmatprep.mubr.f32.mxu0 %v3148
    %3278 = vmatmul.mubr.f32.gmra.mrb[0].mxu0 %v3147
    %v3279 = vpop.f32.mrb[0].mxu0
    %v3280 = vadd.f32 0.0, %v3279
    %v3281 = vpop.f32.mrb[0].mxu0
    %v3282 = vadd.f32 0.0, %v3281
    %3283 = vdwg.mxu0
    %v3284 = vmul.f32 %v3280, %v3280
    %v3285 = vmul.f32 %v3282, %v3282
    %v3288 = vrot.slane %v3284, 7
    %v3289 = vrot.slane %v3285, 7
    %v3292 = vsub.f32 %v3280, %v3288
    %v3293 = vsub.f32 %v3282, %v3289
    %v3294 = vmax.f32 %v3292, 0.0
    %v3295 = vmax.f32 %v3293, 0.0
    %v3296 = vadd.f32 %v3294, 1e-05
    %v3297 = vadd.f32 %v3295, 1e-05
    %v3298 = vrsqrt.pop %v3296
    %v3299 = vrsqrt.pop %v3297
    %v3300 = vlaneseq
    %v3301 = vshrl.u32 %v3300, 7
    %v3302 = vsub.s32 0, %v3301
    %v3303 = vrot.slane %v3280, %v3302
    %v3304 = vlaneseq
    %v3305 = vshrl.u32 %v3304, 7
    %v3306 = vsub.s32 0, %v3305
    %v3307 = vrot.slane %v3282, %v3306
    %v3308 = vsub.f32 %v3107, %v3303
    %v3309 = vsub.f32 %v3109, %v3307
    %v3310 = vsub.f32 %v3111, %v3303
    %v3311 = vsub.f32 %v3113, %v3307
    %v3312 = vld [vmem:[%s10] sm:$0x3]
    %v3315 = vcombine.low %v3298, %v3299
    %v3317 = vunpack.c.l.s4 1966171168
    %v3318 = vunpack.c.0.s8 %v3317
    %v3319 = vlaneseq
    %v3320 = vshrl.u32 %v3319, 7
    %v3321 = vsub.s32 %v3318, %v3320
    %v3322 = vrot.slane %v3315, %v3321
    %v3323 = vcombine.high %v3322, %v3322
    %v3325 = vunpack.c.l.s4 1966171168
    %v3326 = vunpack.c.0.s8 %v3325
    %v3327 = vlaneseq
    %v3328 = vshrl.u32 %v3327, 7
    %v3329 = vsub.s32 %v3326, %v3328
    %v3330 = vrot.slane %v3323, %v3329
    %v3332 = vmul.f32 %v3312, %v3330
    %v3334 = vlaneseq
    %v3335 = vshrl.u32 %v3334, 7
    %v3336 = vsub.s32 0, %v3335
    %v3337 = vrot.slane %v3332, %v3336
    %v3338 = vlaneseq
    %v3339 = vshrl.u32 %v3338, 7
    %v3340 = vsub.s32 1, %v3339
    %v3341 = vrot.slane %v3332, %v3340
    %v3344 = vmul.f32 %v3308, %v3337
    %v3345 = vmul.f32 %v3309, %v3341
    %v3346 = vmul.f32 %v3310, %v3337
    %v3347 = vmul.f32 %v3311, %v3341
    %v3348 = vld [vmem:[%s11] sm:$0x3]
    %v3350 = vlaneseq
    %v3351 = vshrl.u32 %v3350, 7
    %v3352 = vsub.s32 0, %v3351
    %v3353 = vrot.slane %v3348, %v3352
    %v3354 = vlaneseq
    %v3355 = vshrl.u32 %v3354, 7
    %v3356 = vsub.s32 1, %v3355
    %v3357 = vrot.slane %v3348, %v3356
    %v3360 = vadd.f32 %v3344, %v3353
    %v3361 = vadd.f32 %v3345, %v3357
    %v3362 = vadd.f32 %v3346, %v3353
    %v3363 = vadd.f32 %v3347, %v3357
    %vm3364 = vcmp.gt.f32.partialorder %v3360, 0.0
    %vm3365 = vcmp.gt.f32.partialorder %v3361, 0.0
    %vm3366 = vcmp.gt.f32.partialorder %v3362, 0.0
    %vm3367 = vcmp.gt.f32.partialorder %v3363, 0.0
    %v3368 = vmul.f32 %v3360, 0.2
    %v3369 = vmul.f32 %v3361, 0.2
    %v3370 = vmul.f32 %v3362, 0.2
    %v3371 = vmul.f32 %v3363, 0.2
    %v3372 = vsel %vm3364, %v3360, %v3368
    %v3373 = vsel %vm3365, %v3361, %v3369
    %v3374 = vsel %vm3366, %v3362, %v3370
    %v3375 = vsel %vm3367, %v3363, %v3371
    %v3376 = vpack.c.bf16 %v3374, %v3372
    %v3377 = vpack.c.bf16 %v3375, %v3373
    %v3378 = vld [vmem:[%s12] sm:$0xf]
    %vm3379 = vcmask 130048
    %v3381 = vsel %vm3379, %v3378, 0
    %3383 = vmatprep.subr.bf16.mxu0 %v3377
    %3384 = vmatpush1.bf16.msra.mxu0 %v3376
    %3385 = vmatprep.subr.bf16.mxu0 0
    %3386 = vmatpush1.bf16.msra.mxu0 0
    %3387 = vmatprep.subr.bf16.mxu0 0
    %3388 = vmatpush1.bf16.msra.mxu0 0
    %3389 = vmatprep.subr.bf16.mxu0 0
    %3390 = vmatpush1.bf16.msra.mxu0 0
    %3391 = vmatprep.subr.bf16.mxu0 0
    %3392 = vmatpush1.bf16.msra.mxu0 0
    %3393 = vmatprep.subr.bf16.mxu0 0
    %3394 = vmatpush1.bf16.msra.mxu0 0
    %3395 = vmatprep.subr.bf16.mxu0 0
    %3396 = vmatpush1.bf16.msra.mxu0 0
    %3397 = vmatprep.subr.bf16.mxu0 0
    %3398 = vmatpush1.bf16.msra.mxu0 0
    %3399 = vmatprep.subr.bf16.mxu0 0
    %3400 = vmatpush1.bf16.msra.mxu0 0
    %3401 = vmatprep.subr.bf16.mxu0 0
    %3402 = vmatpush1.bf16.msra.mxu0 0
    %3403 = vmatprep.subr.bf16.mxu0 0
    %3404 = vmatpush1.bf16.msra.mxu0 0
    %3405 = vmatprep.subr.bf16.mxu0 0
    %3406 = vmatpush1.bf16.msra.mxu0 0
    %3407 = vmatprep.subr.bf16.mxu0 0
    %3408 = vmatpush1.bf16.msra.mxu0 0
    %3409 = vmatprep.subr.bf16.mxu0 0
    %3410 = vmatpush1.bf16.msra.mxu0 0
    %3411 = vmatprep.subr.bf16.mxu0 0
    %3412 = vmatpush1.bf16.msra.mxu0 0
    %3413 = vmatprep.subr.bf16.mxu0 0
    %3414 = vmatpush1.bf16.msra.mxu0 0
    %3415 = vmatprep.mubr.bf16.mxu0 0
    %3416 = vmatmul.mubr.bf16.gmra.mrb[0].mxu0 %v3381
    %v3417 = vpop.f32.mrb[0].mxu0
    %v3418 = vadd.f32 0.0, %v3417
    %v3419 = vpop.f32.mrb[0].mxu0
    %v3420 = vadd.f32 0.0, %v3419
    %v3421 = vpop.f32.mrb[0].mxu0
    %v3422 = vpop.f32.mrb[0].mxu0
    %3423 = vdwg.mxu0
    %v3424 = vpack.c.bf16 %v3418, %v3418
    %v3425 = vpack.c.bf16 %v3420, %v3420
    %s3426 = scalar_lea.vmem %s12, 4
    %v3427 = vld [vmem:[%s3426] sm:$0xf]
    %v3429 = vsel %vm3379, %v3427, 0
    %3431 = vmatprep.subr.bf16.mxu0 %v3377
    %3432 = vmatpush1.bf16.msra.mxu0 %v3376
    %3433 = vmatprep.subr.bf16.mxu0 0
    %3434 = vmatpush1.bf16.msra.mxu0 0
    %3435 = vmatprep.subr.bf16.mxu0 0
    %3436 = vmatpush1.bf16.msra.mxu0 0
    %3437 = vmatprep.subr.bf16.mxu0 0
    %3438 = vmatpush1.bf16.msra.mxu0 0
    %3439 = vmatprep.subr.bf16.mxu0 0
    %3440 = vmatpush1.bf16.msra.mxu0 0
    %3441 = vmatprep.subr.bf16.mxu0 0
    %3442 = vmatpush1.bf16.msra.mxu0 0
    %3443 = vmatprep.subr.bf16.mxu0 0
    %3444 = vmatpush1.bf16.msra.mxu0 0
    %3445 = vmatprep.subr.bf16.mxu0 0
    %3446 = vmatpush1.bf16.msra.mxu0 0
    %3447 = vmatprep.subr.bf16.mxu0 0
    %3448 = vmatpush1.bf16.msra.mxu0 0
    %3449 = vmatprep.subr.bf16.mxu0 0
    %3450 = vmatpush1.bf16.msra.mxu0 0
    %3451 = vmatprep.subr.bf16.mxu0 0
    %3452 = vmatpush1.bf16.msra.mxu0 0
    %3453 = vmatprep.subr.bf16.mxu0 0
    %3454 = vmatpush1.bf16.msra.mxu0 0
    %3455 = vmatprep.subr.bf16.mxu0 0
    %3456 = vmatpush1.bf16.msra.mxu0 0
    %3457 = vmatprep.subr.bf16.mxu0 0
    %3458 = vmatpush1.bf16.msra.mxu0 0
    %3459 = vmatprep.subr.bf16.mxu0 0
    %3460 = vmatpush1.bf16.msra.mxu0 0
    %3461 = vmatprep.subr.bf16.mxu0 0
    %3462 = vmatpush1.bf16.msra.mxu0 0
    %3463 = vmatprep.mubr.bf16.mxu0 0
    %3464 = vmatmul.mubr.bf16.gmra.mrb[0].mxu0 %v3429
    %v3465 = vpop.f32.mrb[0].mxu0
    %v3466 = vadd.f32 0.0, %v3465
    %v3467 = vpop.f32.mrb[0].mxu0
    %v3468 = vadd.f32 0.0, %v3467
    %v3469 = vpop.f32.mrb[0].mxu0
    %v3470 = vpop.f32.mrb[0].mxu0
    %3471 = vdwg.mxu0
    %v3472 = vpack.c.bf16 %v3466, %v3466
    %v3473 = vpack.c.bf16 %v3468, %v3468
    %s3474 = scalar_lea.vmem %s12, 8
    %v3475 = vld [vmem:[%s3474] sm:$0xf]
    %v3477 = vsel %vm3379, %v3475, 0
    %3479 = vmatprep.subr.bf16.mxu0 %v3377
    %3480 = vmatpush1.bf16.msra.mxu0 %v3376
    %3481 = vmatprep.subr.bf16.mxu0 0
    %3482 = vmatpush1.bf16.msra.mxu0 0
    %3483 = vmatprep.subr.bf16.mxu0 0
    %3484 = vmatpush1.bf16.msra.mxu0 0
    %3485 = vmatprep.subr.bf16.mxu0 0
    %3486 = vmatpush1.bf16.msra.mxu0 0
    %3487 = vmatprep.subr.bf16.mxu0 0
    %3488 = vmatpush1.bf16.msra.mxu0 0
    %3489 = vmatprep.subr.bf16.mxu0 0
    %3490 = vmatpush1.bf16.msra.mxu0 0
    %3491 = vmatprep.subr.bf16.mxu0 0
    %3492 = vmatpush1.bf16.msra.mxu0 0
    %3493 = vmatprep.subr.bf16.mxu0 0
    %3494 = vmatpush1.bf16.msra.mxu0 0
    %3495 = vmatprep.subr.bf16.mxu0 0
    %3496 = vmatpush1.bf16.msra.mxu0 0
    %3497 = vmatprep.subr.bf16.mxu0 0
    %3498 = vmatpush1.bf16.msra.mxu0 0
    %3499 = vmatprep.subr.bf16.mxu0 0
    %3500 = vmatpush1.bf16.msra.mxu0 0
    %3501 = vmatprep.subr.bf16.mxu0 0
    %3502 = vmatpush1.bf16.msra.mxu0 0
    %3503 = vmatprep.subr.bf16.mxu0 0
    %3504 = vmatpush1.bf16.msra.mxu0 0
    %3505 = vmatprep.subr.bf16.mxu0 0
    %3506 = vmatpush1.bf16.msra.mxu0 0
    %3507 = vmatprep.subr.bf16.mxu0 0
    %3508 = vmatpush1.bf16.msra.mxu0 0
    %3509 = vmatprep.subr.bf16.mxu0 0
    %3510 = vmatpush1.bf16.msra.mxu0 0
    %3511 = vmatprep.mubr.bf16.mxu0 0
    %3512 = vmatmul.mubr.bf16.gmra.mrb[0].mxu0 %v3477
    %v3513 = vpop.f32.mrb[0].mxu0
    %v3514 = vadd.f32 0.0, %v3513
    %v3515 = vpop.f32.mrb[0].mxu0
    %v3516 = vadd.f32 0.0, %v3515
    %v3517 = vpop.f32.mrb[0].mxu0
    %v3518 = vpop.f32.mrb[0].mxu0
    %3519 = vdwg.mxu0
    %v3520 = vpack.c.bf16 %v3514, %v3514
    %v3521 = vpack.c.bf16 %v3516, %v3516
    %s3522 = scalar_lea.vmem %s12, 12
    %v3523 = vld [vmem:[%s3522] sm:$0xf]
    %v3525 = vsel %vm3379, %v3523, 0
    %3527 = vmatprep.subr.bf16.mxu0 %v3377
    %3528 = vmatpush1.bf16.msra.mxu0 %v3376
    %3529 = vmatprep.subr.bf16.mxu0 0
    %3530 = vmatpush1.bf16.msra.mxu0 0
    %3531 = vmatprep.subr.bf16.mxu0 0
    %3532 = vmatpush1.bf16.msra.mxu0 0
    %3533 = vmatprep.subr.bf16.mxu0 0
    %3534 = vmatpush1.bf16.msra.mxu0 0
    %3535 = vmatprep.subr.bf16.mxu0 0
    %3536 = vmatpush1.bf16.msra.mxu0 0
    %3537 = vmatprep.subr.bf16.mxu0 0
    %3538 = vmatpush1.bf16.msra.mxu0 0
    %3539 = vmatprep.subr.bf16.mxu0 0
    %3540 = vmatpush1.bf16.msra.mxu0 0
    %3541 = vmatprep.subr.bf16.mxu0 0
    %3542 = vmatpush1.bf16.msra.mxu0 0
    %3543 = vmatprep.subr.bf16.mxu0 0
    %3544 = vmatpush1.bf16.msra.mxu0 0
    %3545 = vmatprep.subr.bf16.mxu0 0
    %3546 = vmatpush1.bf16.msra.mxu0 0
    %3547 = vmatprep.subr.bf16.mxu0 0
    %3548 = vmatpush1.bf16.msra.mxu0 0
    %3549 = vmatprep.subr.bf16.mxu0 0
    %3550 = vmatpush1.bf16.msra.mxu0 0
    %3551 = vmatprep.subr.bf16.mxu0 0
    %3552 = vmatpush1.bf16.msra.mxu0 0
    %3553 = vmatprep.subr.bf16.mxu0 0
    %3554 = vmatpush1.bf16.msra.mxu0 0
    %3555 = vmatprep.subr.bf16.mxu0 0
    %3556 = vmatpush1.bf16.msra.mxu0 0
    %3557 = vmatprep.subr.bf16.mxu0 0
    %3558 = vmatpush1.bf16.msra.mxu0 0
    %3559 = vmatprep.mubr.bf16.mxu0 0
    %3560 = vmatmul.mubr.bf16.gmra.mrb[0].mxu0 %v3525
    %v3561 = vpop.f32.mrb[0].mxu0
    %v3562 = vadd.f32 0.0, %v3561
    %v3563 = vpop.f32.mrb[0].mxu0
    %v3564 = vadd.f32 0.0, %v3563
    %v3565 = vpop.f32.mrb[0].mxu0
    %v3566 = vpop.f32.mrb[0].mxu0
    %3567 = vdwg.mxu0
    %v3568 = vpack.c.bf16 %v3562, %v3562
    %v3569 = vpack.c.bf16 %v3564, %v3564
    %v3570 = vld [vmem:[#allocation7] sm:$0xff]
    %v3571 = vld [vmem:[#allocation7 + $0x8] sm:$0xff]
    %v3572 = vld [vmem:[#allocation7 + $0x10] sm:$0xff]
    %v3573 = vld [vmem:[#allocation7 + $0x18] sm:$0xff]
    %v3574 = vld [vmem:[#allocation7 + $0x20] sm:$0xff]
    %v3575 = vld [vmem:[#allocation7 + $0x28] sm:$0xff]
    %v3576 = vld [vmem:[#allocation7 + $0x30] sm:$0xff]
    %v3577 = vld [vmem:[#allocation7 + $0x38] sm:$0xff]
    %v3578 = vld [vmem:[#allocation7 + $0x40] sm:$0xff]
    %v3579 = vld [vmem:[#allocation7 + $0x48] sm:$0xff]
    %v3580 = vld [vmem:[#allocation7 + $0x50] sm:$0xff]
    %v3581 = vld [vmem:[#allocation7 + $0x58] sm:$0xff]
    %v3582 = vld [vmem:[#allocation7 + $0x60] sm:$0xff]
    %v3583 = vld [vmem:[#allocation7 + $0x68] sm:$0xff]
    %v3584 = vld [vmem:[#allocation7 + $0x70] sm:$0xff]
    %v3585 = vld [vmem:[#allocation7 + $0x78] sm:$0xff]
    %v3586 = vld [vmem:[#allocation7 + $0x80] sm:$0xff]
    %v3587 = vld [vmem:[#allocation7 + $0x88] sm:$0xff]
    %v3588 = vld [vmem:[#allocation7 + $0x90] sm:$0xff]
    %v3589 = vld [vmem:[#allocation7 + $0x98] sm:$0xff]
    %v3590 = vld [vmem:[#allocation7 + $0xa0] sm:$0xff]
    %v3591 = vld [vmem:[#allocation7 + $0xa8] sm:$0xff]
    %v3592 = vld [vmem:[#allocation7 + $0xb0] sm:$0xff]
    %v3593 = vld [vmem:[#allocation7 + $0xb8] sm:$0xff]
    %v3594 = vld [vmem:[#allocation7 + $0xc0] sm:$0xff]
    %v3595 = vld [vmem:[#allocation7 + $0xc8] sm:$0xff]
    %v3596 = vld [vmem:[#allocation7 + $0xd0] sm:$0xff]
    %v3597 = vld [vmem:[#allocation7 + $0xd8] sm:$0xff]
    %v3598 = vld [vmem:[#allocation7 + $0xe0] sm:$0xff]
    %v3599 = vld [vmem:[#allocation7 + $0xe8] sm:$0xff]
    %v3600 = vld [vmem:[#allocation7 + $0xf0] sm:$0xff]
    %v3601 = vld [vmem:[#allocation7 + $0xf8] sm:$0xff]
    %v3602 = vld [vmem:[#allocation7 + $0x100] sm:$0xff]
    %v3603 = vld [vmem:[#allocation7 + $0x108] sm:$0xff]
    %v3604 = vld [vmem:[#allocation7 + $0x110] sm:$0xff]
    %v3605 = vld [vmem:[#allocation7 + $0x118] sm:$0xff]
    %v3606 = vld [vmem:[#allocation7 + $0x120] sm:$0xff]
    %v3607 = vld [vmem:[#allocation7 + $0x128] sm:$0xff]
    %v3608 = vld [vmem:[#allocation7 + $0x130] sm:$0xff]
    %v3609 = vld [vmem:[#allocation7 + $0x138] sm:$0xff]
    %v3610 = vld [vmem:[#allocation7 + $0x140] sm:$0xff]
    %v3611 = vld [vmem:[#allocation7 + $0x148] sm:$0xff]
    %v3612 = vld [vmem:[#allocation7 + $0x150] sm:$0xff]
    %v3613 = vld [vmem:[#allocation7 + $0x158] sm:$0xff]
    %v3614 = vld [vmem:[#allocation7 + $0x160] sm:$0xff]
    %v3615 = vld [vmem:[#allocation7 + $0x168] sm:$0xff]
    %v3616 = vld [vmem:[#allocation7 + $0x170] sm:$0xff]
    %v3617 = vld [vmem:[#allocation7 + $0x178] sm:$0xff]
    %v3618 = vld [vmem:[#allocation7 + $0x180] sm:$0xff]
    %v3619 = vld [vmem:[#allocation7 + $0x188] sm:$0xff]
    %v3620 = vld [vmem:[#allocation7 + $0x190] sm:$0xff]
    %v3621 = vld [vmem:[#allocation7 + $0x198] sm:$0xff]
    %v3622 = vld [vmem:[#allocation7 + $0x1a0] sm:$0xff]
    %v3623 = vld [vmem:[#allocation7 + $0x1a8] sm:$0xff]
    %v3624 = vld [vmem:[#allocation7 + $0x1b0] sm:$0xff]
    %v3625 = vld [vmem:[#allocation7 + $0x1b8] sm:$0xff]
    %v3626 = vld [vmem:[#allocation7 + $0x1c0] sm:$0xff]
    %v3627 = vld [vmem:[#allocation7 + $0x1c8] sm:$0xff]
    %v3628 = vld [vmem:[#allocation7 + $0x1d0] sm:$0xff]
    %v3629 = vld [vmem:[#allocation7 + $0x1d8] sm:$0xff]
    %v3630 = vld [vmem:[#allocation7 + $0x1e0] sm:$0xff]
    %v3631 = vld [vmem:[#allocation7 + $0x1e8] sm:$0xff]
    %v3632 = vld [vmem:[#allocation7 + $0x1f0] sm:$0xff]
    %v3633 = vld [vmem:[#allocation7 + $0x1f8] sm:$0xff]
    %v3634 = vld [vmem:[#allocation7 + $0x200] sm:$0xff]
    %v3635 = vld [vmem:[#allocation7 + $0x208] sm:$0xff]
    %v3636 = vld [vmem:[#allocation7 + $0x210] sm:$0xff]
    %v3637 = vld [vmem:[#allocation7 + $0x218] sm:$0xff]
    %v3638 = vld [vmem:[#allocation7 + $0x220] sm:$0xff]
    %v3639 = vld [vmem:[#allocation7 + $0x228] sm:$0xff]
    %v3640 = vld [vmem:[#allocation7 + $0x230] sm:$0xff]
    %v3641 = vld [vmem:[#allocation7 + $0x238] sm:$0xff]
    %v3642 = vld [vmem:[#allocation7 + $0x240] sm:$0xff]
    %v3643 = vld [vmem:[#allocation7 + $0x248] sm:$0xff]
    %v3644 = vld [vmem:[#allocation7 + $0x250] sm:$0xff]
    %v3645 = vld [vmem:[#allocation7 + $0x258] sm:$0xff]
    %v3646 = vld [vmem:[#allocation7 + $0x260] sm:$0xff]
    %v3647 = vld [vmem:[#allocation7 + $0x268] sm:$0xff]
    %v3648 = vld [vmem:[#allocation7 + $0x270] sm:$0xff]
    %v3649 = vld [vmem:[#allocation7 + $0x278] sm:$0xff]
    %v3650 = vld [vmem:[#allocation7 + $0x280] sm:$0xff]
    %v3651 = vld [vmem:[#allocation7 + $0x288] sm:$0xff]
    %v3652 = vld [vmem:[#allocation7 + $0x290] sm:$0xff]
    %v3653 = vld [vmem:[#allocation7 + $0x298] sm:$0xff]
    %v3654 = vld [vmem:[#allocation7 + $0x2a0] sm:$0xff]
    %v3655 = vld [vmem:[#allocation7 + $0x2a8] sm:$0xff]
    %v3656 = vld [vmem:[#allocation7 + $0x2b0] sm:$0xff]
    %v3657 = vld [vmem:[#allocation7 + $0x2b8] sm:$0xff]
    %v3658 = vld [vmem:[#allocation7 + $0x2c0] sm:$0xff]
    %v3659 = vld [vmem:[#allocation7 + $0x2c8] sm:$0xff]
    %v3660 = vld [vmem:[#allocation7 + $0x2d0] sm:$0xff]
    %v3661 = vld [vmem:[#allocation7 + $0x2d8] sm:$0xff]
    %v3662 = vld [vmem:[#allocation7 + $0x2e0] sm:$0xff]
    %v3663 = vld [vmem:[#allocation7 + $0x2e8] sm:$0xff]
    %v3664 = vld [vmem:[#allocation7 + $0x2f0] sm:$0xff]
    %v3665 = vld [vmem:[#allocation7 + $0x2f8] sm:$0xff]
    %v3666 = vld [vmem:[#allocation7 + $0x300] sm:$0xff]
    %v3667 = vld [vmem:[#allocation7 + $0x308] sm:$0xff]
    %v3668 = vld [vmem:[#allocation7 + $0x310] sm:$0xff]
    %v3669 = vld [vmem:[#allocation7 + $0x318] sm:$0xff]
    %v3670 = vld [vmem:[#allocation7 + $0x320] sm:$0xff]
    %v3671 = vld [vmem:[#allocation7 + $0x328] sm:$0xff]
    %v3672 = vld [vmem:[#allocation7 + $0x330] sm:$0xff]
    %v3673 = vld [vmem:[#allocation7 + $0x338] sm:$0xff]
    %v3674 = vld [vmem:[#allocation7 + $0x340] sm:$0xff]
    %v3675 = vld [vmem:[#allocation7 + $0x348] sm:$0xff]
    %v3676 = vld [vmem:[#allocation7 + $0x350] sm:$0xff]
    %v3677 = vld [vmem:[#allocation7 + $0x358] sm:$0xff]
    %v3678 = vld [vmem:[#allocation7 + $0x360] sm:$0xff]
    %v3679 = vld [vmem:[#allocation7 + $0x368] sm:$0xff]
    %v3680 = vld [vmem:[#allocation7 + $0x370] sm:$0xff]
    %v3681 = vld [vmem:[#allocation7 + $0x378] sm:$0xff]
    %v3682 = vld [vmem:[#allocation7 + $0x380] sm:$0xff]
    %v3683 = vld [vmem:[#allocation7 + $0x388] sm:$0xff]
    %v3684 = vld [vmem:[#allocation7 + $0x390] sm:$0xff]
    %v3685 = vld [vmem:[#allocation7 + $0x398] sm:$0xff]
    %v3686 = vld [vmem:[#allocation7 + $0x3a0] sm:$0xff]
    %v3687 = vld [vmem:[#allocation7 + $0x3a8] sm:$0xff]
    %v3688 = vld [vmem:[#allocation7 + $0x3b0] sm:$0xff]
    %v3689 = vld [vmem:[#allocation7 + $0x3b8] sm:$0xff]
    %v3690 = vld [vmem:[#allocation7 + $0x3c0] sm:$0xff]
    %v3691 = vld [vmem:[#allocation7 + $0x3c8] sm:$0xff]
    %v3692 = vld [vmem:[#allocation7 + $0x3d0] sm:$0xff]
    %v3693 = vld [vmem:[#allocation7 + $0x3d8] sm:$0xff]
    %v3694 = vld [vmem:[#allocation7 + $0x3e0] sm:$0xff]
    %v3695 = vld [vmem:[#allocation7 + $0x3e8] sm:$0xff]
    %v3696 = vld [vmem:[#allocation7 + $0x3f0] sm:$0xff]
    %v3697 = vld [vmem:[#allocation7 + $0x3f8] sm:$0xff]
    %v3826 = vunpack.c.l.b16 %v3570
    %v3827 = vunpack.c.h.b16 %v3570
    %v3828 = vunpack.c.l.b16 %v3571
    %v3829 = vunpack.c.h.b16 %v3571
    %v3830 = vunpack.c.l.b16 %v3572
    %v3831 = vunpack.c.h.b16 %v3572
    %v3832 = vunpack.c.l.b16 %v3573
    %v3833 = vunpack.c.h.b16 %v3573
    %v3834 = vunpack.c.l.b16 %v3574
    %v3835 = vunpack.c.h.b16 %v3574
    %v3836 = vunpack.c.l.b16 %v3575
    %v3837 = vunpack.c.h.b16 %v3575
    %v3838 = vunpack.c.l.b16 %v3576
    %v3839 = vunpack.c.h.b16 %v3576
    %v3840 = vunpack.c.l.b16 %v3577
    %v3841 = vunpack.c.h.b16 %v3577
    %v3842 = vunpack.c.l.b16 %v3578
    %v3843 = vunpack.c.h.b16 %v3578
    %v3844 = vunpack.c.l.b16 %v3579
    %v3845 = vunpack.c.h.b16 %v3579
    %v3846 = vunpack.c.l.b16 %v3580
    %v3847 = vunpack.c.h.b16 %v3580
    %v3848 = vunpack.c.l.b16 %v3581
    %v3849 = vunpack.c.h.b16 %v3581
    %v3850 = vunpack.c.l.b16 %v3582
    %v3851 = vunpack.c.h.b16 %v3582
    %v3852 = vunpack.c.l.b16 %v3583
    %v3853 = vunpack.c.h.b16 %v3583
    %v3854 = vunpack.c.l.b16 %v3584
    %v3855 = vunpack.c.h.b16 %v3584
    %v3856 = vunpack.c.l.b16 %v3585
    %v3857 = vunpack.c.h.b16 %v3585
    %v3858 = vunpack.c.l.b16 %v3586
    %v3859 = vunpack.c.h.b16 %v3586
    %v3860 = vunpack.c.l.b16 %v3587
    %v3861 = vunpack.c.h.b16 %v3587
    %v3862 = vunpack.c.l.b16 %v3588
    %v3863 = vunpack.c.h.b16 %v3588
    %v3864 = vunpack.c.l.b16 %v3589
    %v3865 = vunpack.c.h.b16 %v3589
    %v3866 = vunpack.c.l.b16 %v3590
    %v3867 = vunpack.c.h.b16 %v3590
    %v3868 = vunpack.c.l.b16 %v3591
    %v3869 = vunpack.c.h.b16 %v3591
    %v3870 = vunpack.c.l.b16 %v3592
    %v3871 = vunpack.c.h.b16 %v3592
    %v3872 = vunpack.c.l.b16 %v3593
    %v3873 = vunpack.c.h.b16 %v3593
    %v3874 = vunpack.c.l.b16 %v3594
    %v3875 = vunpack.c.h.b16 %v3594
    %v3876 = vunpack.c.l.b16 %v3595
    %v3877 = vunpack.c.h.b16 %v3595
    %v3878 = vunpack.c.l.b16 %v3596
    %v3879 = vunpack.c.h.b16 %v3596
    %v3880 = vunpack.c.l.b16 %v3597
    %v3881 = vunpack.c.h.b16 %v3597
    %v3882 = vunpack.c.l.b16 %v3598
    %v3883 = vunpack.c.h.b16 %v3598
    %v3884 = vunpack.c.l.b16 %v3599
    %v3885 = vunpack.c.h.b16 %v3599
    %v3886 = vunpack.c.l.b16 %v3600
    %v3887 = vunpack.c.h.b16 %v3600
    %v3888 = vunpack.c.l.b16 %v3601
    %v3889 = vunpack.c.h.b16 %v3601
    %v3890 = vunpack.c.l.b16 %v3602
    %v3891 = vunpack.c.h.b16 %v3602
    %v3892 = vunpack.c.l.b16 %v3603
    %v3893 = vunpack.c.h.b16 %v3603
    %v3894 = vunpack.c.l.b16 %v3604
    %v3895 = vunpack.c.h.b16 %v3604
    %v3896 = vunpack.c.l.b16 %v3605
    %v3897 = vunpack.c.h.b16 %v3605
    %v3898 = vunpack.c.l.b16 %v3606
    %v3899 = vunpack.c.h.b16 %v3606
    %v3900 = vunpack.c.l.b16 %v3607
    %v3901 = vunpack.c.h.b16 %v3607
    %v3902 = vunpack.c.l.b16 %v3608
    %v3903 = vunpack.c.h.b16 %v3608
    %v3904 = vunpack.c.l.b16 %v3609
    %v3905 = vunpack.c.h.b16 %v3609
    %v3906 = vunpack.c.l.b16 %v3610
    %v3907 = vunpack.c.h.b16 %v3610
    %v3908 = vunpack.c.l.b16 %v3611
    %v3909 = vunpack.c.h.b16 %v3611
    %v3910 = vunpack.c.l.b16 %v3612
    %v3911 = vunpack.c.h.b16 %v3612
    %v3912 = vunpack.c.l.b16 %v3613
    %v3913 = vunpack.c.h.b16 %v3613
    %v3914 = vunpack.c.l.b16 %v3614
    %v3915 = vunpack.c.h.b16 %v3614
    %v3916 = vunpack.c.l.b16 %v3615
    %v3917 = vunpack.c.h.b16 %v3615
    %v3918 = vunpack.c.l.b16 %v3616
    %v3919 = vunpack.c.h.b16 %v3616
    %v3920 = vunpack.c.l.b16 %v3617
    %v3921 = vunpack.c.h.b16 %v3617
    %v3922 = vunpack.c.l.b16 %v3618
    %v3923 = vunpack.c.h.b16 %v3618
    %v3924 = vunpack.c.l.b16 %v3619
    %v3925 = vunpack.c.h.b16 %v3619
    %v3926 = vunpack.c.l.b16 %v3620
    %v3927 = vunpack.c.h.b16 %v3620
    %v3928 = vunpack.c.l.b16 %v3621
    %v3929 = vunpack.c.h.b16 %v3621
    %v3930 = vunpack.c.l.b16 %v3622
    %v3931 = vunpack.c.h.b16 %v3622
    %v3932 = vunpack.c.l.b16 %v3623
    %v3933 = vunpack.c.h.b16 %v3623
    %v3934 = vunpack.c.l.b16 %v3624
    %v3935 = vunpack.c.h.b16 %v3624
    %v3936 = vunpack.c.l.b16 %v3625
    %v3937 = vunpack.c.h.b16 %v3625
    %v3938 = vunpack.c.l.b16 %v3626
    %v3939 = vunpack.c.h.b16 %v3626
    %v3940 = vunpack.c.l.b16 %v3627
    %v3941 = vunpack.c.h.b16 %v3627
    %v3942 = vunpack.c.l.b16 %v3628
    %v3943 = vunpack.c.h.b16 %v3628
    %v3944 = vunpack.c.l.b16 %v3629
    %v3945 = vunpack.c.h.b16 %v3629
    %v3946 = vunpack.c.l.b16 %v3630
    %v3947 = vunpack.c.h.b16 %v3630
    %v3948 = vunpack.c.l.b16 %v3631
    %v3949 = vunpack.c.h.b16 %v3631
    %v3950 = vunpack.c.l.b16 %v3632
    %v3951 = vunpack.c.h.b16 %v3632
    %v3952 = vunpack.c.l.b16 %v3633
    %v3953 = vunpack.c.h.b16 %v3633
    %v3954 = vunpack.c.l.b16 %v3634
    %v3955 = vunpack.c.h.b16 %v3634
    %v3956 = vunpack.c.l.b16 %v3635
    %v3957 = vunpack.c.h.b16 %v3635
    %v3958 = vunpack.c.l.b16 %v3636
    %v3959 = vunpack.c.h.b16 %v3636
    %v3960 = vunpack.c.l.b16 %v3637
    %v3961 = vunpack.c.h.b16 %v3637
    %v3962 = vunpack.c.l.b16 %v3638
    %v3963 = vunpack.c.h.b16 %v3638
    %v3964 = vunpack.c.l.b16 %v3639
    %v3965 = vunpack.c.h.b16 %v3639
    %v3966 = vunpack.c.l.b16 %v3640
    %v3967 = vunpack.c.h.b16 %v3640
    %v3968 = vunpack.c.l.b16 %v3641
    %v3969 = vunpack.c.h.b16 %v3641
    %v3970 = vunpack.c.l.b16 %v3642
    %v3971 = vunpack.c.h.b16 %v3642
    %v3972 = vunpack.c.l.b16 %v3643
    %v3973 = vunpack.c.h.b16 %v3643
    %v3974 = vunpack.c.l.b16 %v3644
    %v3975 = vunpack.c.h.b16 %v3644
    %v3976 = vunpack.c.l.b16 %v3645
    %v3977 = vunpack.c.h.b16 %v3645
    %v3978 = vunpack.c.l.b16 %v3646
    %v3979 = vunpack.c.h.b16 %v3646
    %v3980 = vunpack.c.l.b16 %v3647
    %v3981 = vunpack.c.h.b16 %v3647
    %v3982 = vunpack.c.l.b16 %v3648
    %v3983 = vunpack.c.h.b16 %v3648
    %v3984 = vunpack.c.l.b16 %v3649
    %v3985 = vunpack.c.h.b16 %v3649
    %v3986 = vunpack.c.l.b16 %v3650
    %v3987 = vunpack.c.h.b16 %v3650
    %v3988 = vunpack.c.l.b16 %v3651
    %v3989 = vunpack.c.h.b16 %v3651
    %v3990 = vunpack.c.l.b16 %v3652
    %v3991 = vunpack.c.h.b16 %v3652
    %v3992 = vunpack.c.l.b16 %v3653
    %v3993 = vunpack.c.h.b16 %v3653
    %v3994 = vunpack.c.l.b16 %v3654
    %v3995 = vunpack.c.h.b16 %v3654
    %v3996 = vunpack.c.l.b16 %v3655
    %v3997 = vunpack.c.h.b16 %v3655
    %v3998 = vunpack.c.l.b16 %v3656
    %v3999 = vunpack.c.h.b16 %v3656
    %v4000 = vunpack.c.l.b16 %v3657
    %v4001 = vunpack.c.h.b16 %v3657
    %v4002 = vunpack.c.l.b16 %v3658
    %v4003 = vunpack.c.h.b16 %v3658
    %v4004 = vunpack.c.l.b16 %v3659
    %v4005 = vunpack.c.h.b16 %v3659
    %v4006 = vunpack.c.l.b16 %v3660
    %v4007 = vunpack.c.h.b16 %v3660
    %v4008 = vunpack.c.l.b16 %v3661
    %v4009 = vunpack.c.h.b16 %v3661
    %v4010 = vunpack.c.l.b16 %v3662
    %v4011 = vunpack.c.h.b16 %v3662
    %v4012 = vunpack.c.l.b16 %v3663
    %v4013 = vunpack.c.h.b16 %v3663
    %v4014 = vunpack.c.l.b16 %v3664
    %v4015 = vunpack.c.h.b16 %v3664
    %v4016 = vunpack.c.l.b16 %v3665
    %v4017 = vunpack.c.h.b16 %v3665
    %v4018 = vunpack.c.l.b16 %v3666
    %v4019 = vunpack.c.h.b16 %v3666
    %v4020 = vunpack.c.l.b16 %v3667
    %v4021 = vunpack.c.h.b16 %v3667
    %v4022 = vunpack.c.l.b16 %v3668
    %v4023 = vunpack.c.h.b16 %v3668
    %v4024 = vunpack.c.l.b16 %v3669
    %v4025 = vunpack.c.h.b16 %v3669
    %v4026 = vunpack.c.l.b16 %v3670
    %v4027 = vunpack.c.h.b16 %v3670
    %v4028 = vunpack.c.l.b16 %v3671
    %v4029 = vunpack.c.h.b16 %v3671
    %v4030 = vunpack.c.l.b16 %v3672
    %v4031 = vunpack.c.h.b16 %v3672
    %v4032 = vunpack.c.l.b16 %v3673
    %v4033 = vunpack.c.h.b16 %v3673
    %v4034 = vunpack.c.l.b16 %v3674
    %v4035 = vunpack.c.h.b16 %v3674
    %v4036 = vunpack.c.l.b16 %v3675
    %v4037 = vunpack.c.h.b16 %v3675
    %v4038 = vunpack.c.l.b16 %v3676
    %v4039 = vunpack.c.h.b16 %v3676
    %v4040 = vunpack.c.l.b16 %v3677
    %v4041 = vunpack.c.h.b16 %v3677
    %v4042 = vunpack.c.l.b16 %v3678
    %v4043 = vunpack.c.h.b16 %v3678
    %v4044 = vunpack.c.l.b16 %v3679
    %v4045 = vunpack.c.h.b16 %v3679
    %v4046 = vunpack.c.l.b16 %v3680
    %v4047 = vunpack.c.h.b16 %v3680
    %v4048 = vunpack.c.l.b16 %v3681
    %v4049 = vunpack.c.h.b16 %v3681
    %v4050 = vunpack.c.l.b16 %v3682
    %v4051 = vunpack.c.h.b16 %v3682
    %v4052 = vunpack.c.l.b16 %v3683
    %v4053 = vunpack.c.h.b16 %v3683
    %v4054 = vunpack.c.l.b16 %v3684
    %v4055 = vunpack.c.h.b16 %v3684
    %v4056 = vunpack.c.l.b16 %v3685
    %v4057 = vunpack.c.h.b16 %v3685
    %v4058 = vunpack.c.l.b16 %v3686
    %v4059 = vunpack.c.h.b16 %v3686
    %v4060 = vunpack.c.l.b16 %v3687
    %v4061 = vunpack.c.h.b16 %v3687
    %v4062 = vunpack.c.l.b16 %v3688
    %v4063 = vunpack.c.h.b16 %v3688
    %v4064 = vunpack.c.l.b16 %v3689
    %v4065 = vunpack.c.h.b16 %v3689
    %v4066 = vunpack.c.l.b16 %v3690
    %v4067 = vunpack.c.h.b16 %v3690
    %v4068 = vunpack.c.l.b16 %v3691
    %v4069 = vunpack.c.h.b16 %v3691
    %v4070 = vunpack.c.l.b16 %v3692
    %v4071 = vunpack.c.h.b16 %v3692
    %v4072 = vunpack.c.l.b16 %v3693
    %v4073 = vunpack.c.h.b16 %v3693
    %v4074 = vunpack.c.l.b16 %v3694
    %v4075 = vunpack.c.h.b16 %v3694
    %v4076 = vunpack.c.l.b16 %v3695
    %v4077 = vunpack.c.h.b16 %v3695
    %v4078 = vunpack.c.l.b16 %v3696
    %v4079 = vunpack.c.h.b16 %v3696
    %v4080 = vunpack.c.l.b16 %v3697
    %v4081 = vunpack.c.h.b16 %v3697
    %v4082 = vpack.c.b16 %v3828, %v3826
    %v4083 = vpack.c.b16 %v3829, %v3827
    %v4084 = vpack.c.b16 %v3832, %v3830
    %v4085 = vpack.c.b16 %v3833, %v3831
    %v4086 = vpack.c.b16 %v3836, %v3834
    %v4087 = vpack.c.b16 %v3837, %v3835
    %v4088 = vpack.c.b16 %v3840, %v3838
    %v4089 = vpack.c.b16 %v3841, %v3839
    %v4090 = vpack.c.b16 %v3844, %v3842
    %v4091 = vpack.c.b16 %v3845, %v3843
    %v4092 = vpack.c.b16 %v3848, %v3846
    %v4093 = vpack.c.b16 %v3849, %v3847
    %v4094 = vpack.c.b16 %v3852, %v3850
    %v4095 = vpack.c.b16 %v3853, %v3851
    %v4096 = vpack.c.b16 %v3856, %v3854
    %v4097 = vpack.c.b16 %v3857, %v3855
    %v4098 = vpack.c.b16 %v3860, %v3858
    %v4099 = vpack.c.b16 %v3861, %v3859
    %v4100 = vpack.c.b16 %v3864, %v3862
    %v4101 = vpack.c.b16 %v3865, %v3863
    %v4102 = vpack.c.b16 %v3868, %v3866
    %v4103 = vpack.c.b16 %v3869, %v3867
    %v4104 = vpack.c.b16 %v3872, %v3870
    %v4105 = vpack.c.b16 %v3873, %v3871
    %v4106 = vpack.c.b16 %v3876, %v3874
    %v4107 = vpack.c.b16 %v3877, %v3875
    %v4108 = vpack.c.b16 %v3880, %v3878
    %v4109 = vpack.c.b16 %v3881, %v3879
    %v4110 = vpack.c.b16 %v3884, %v3882
    %v4111 = vpack.c.b16 %v3885, %v3883
    %v4112 = vpack.c.b16 %v3888, %v3886
    %v4113 = vpack.c.b16 %v3889, %v3887
    %v4114 = vpack.c.b16 %v3892, %v3890
    %v4115 = vpack.c.b16 %v3893, %v3891
    %v4116 = vpack.c.b16 %v3896, %v3894
    %v4117 = vpack.c.b16 %v3897, %v3895
    %v4118 = vpack.c.b16 %v3900, %v3898
    %v4119 = vpack.c.b16 %v3901, %v3899
    %v4120 = vpack.c.b16 %v3904, %v3902
    %v4121 = vpack.c.b16 %v3905, %v3903
    %v4122 = vpack.c.b16 %v3908, %v3906
    %v4123 = vpack.c.b16 %v3909, %v3907
    %v4124 = vpack.c.b16 %v3912, %v3910
    %v4125 = vpack.c.b16 %v3913, %v3911
    %v4126 = vpack.c.b16 %v3916, %v3914
    %v4127 = vpack.c.b16 %v3917, %v3915
    %v4128 = vpack.c.b16 %v3920, %v3918
    %v4129 = vpack.c.b16 %v3921, %v3919
    %v4130 = vpack.c.b16 %v3924, %v3922
    %v4131 = vpack.c.b16 %v3925, %v3923
    %v4132 = vpack.c.b16 %v3928, %v3926
    %v4133 = vpack.c.b16 %v3929, %v3927
    %v4134 = vpack.c.b16 %v3932, %v3930
    %v4135 = vpack.c.b16 %v3933, %v3931
    %v4136 = vpack.c.b16 %v3936, %v3934
    %v4137 = vpack.c.b16 %v3937, %v3935
    %v4138 = vpack.c.b16 %v3940, %v3938
    %v4139 = vpack.c.b16 %v3941, %v3939
    %v4140 = vpack.c.b16 %v3944, %v3942
    %v4141 = vpack.c.b16 %v3945, %v3943
    %v4142 = vpack.c.b16 %v3948, %v3946
    %v4143 = vpack.c.b16 %v3949, %v3947
    %v4144 = vpack.c.b16 %v3952, %v3950
    %v4145 = vpack.c.b16 %v3953, %v3951
    %v4146 = vpack.c.b16 %v3956, %v3954
    %v4147 = vpack.c.b16 %v3957, %v3955
    %v4148 = vpack.c.b16 %v3960, %v3958
    %v4149 = vpack.c.b16 %v3961, %v3959
    %v4150 = vpack.c.b16 %v3964, %v3962
    %v4151 = vpack.c.b16 %v3965, %v3963
    %v4152 = vpack.c.b16 %v3968, %v3966
    %v4153 = vpack.c.b16 %v3969, %v3967
    %v4154 = vpack.c.b16 %v3972, %v3970
    %v4155 = vpack.c.b16 %v3973, %v3971
    %v4156 = vpack.c.b16 %v3976, %v3974
    %v4157 = vpack.c.b16 %v3977, %v3975
    %v4158 = vpack.c.b16 %v3980, %v3978
    %v4159 = vpack.c.b16 %v3981, %v3979
    %v4160 = vpack.c.b16 %v3984, %v3982
    %v4161 = vpack.c.b16 %v3985, %v3983
    %v4162 = vpack.c.b16 %v3988, %v3986
    %v4163 = vpack.c.b16 %v3989, %v3987
    %v4164 = vpack.c.b16 %v3992, %v3990
    %v4165 = vpack.c.b16 %v3993, %v3991
    %v4166 = vpack.c.b16 %v3996, %v3994
    %v4167 = vpack.c.b16 %v3997, %v3995
    %v4168 = vpack.c.b16 %v4000, %v3998
    %v4169 = vpack.c.b16 %v4001, %v3999
    %v4170 = vpack.c.b16 %v4004, %v4002
    %v4171 = vpack.c.b16 %v4005, %v4003
    %v4172 = vpack.c.b16 %v4008, %v4006
    %v4173 = vpack.c.b16 %v4009, %v4007
    %v4174 = vpack.c.b16 %v4012, %v4010
    %v4175 = vpack.c.b16 %v4013, %v4011
    %v4176 = vpack.c.b16 %v4016, %v4014
    %v4177 = vpack.c.b16 %v4017, %v4015
    %v4178 = vpack.c.b16 %v4020, %v4018
    %v4179 = vpack.c.b16 %v4021, %v4019
    %v4180 = vpack.c.b16 %v4024, %v4022
    %v4181 = vpack.c.b16 %v4025, %v4023
    %v4182 = vpack.c.b16 %v4028, %v4026
    %v4183 = vpack.c.b16 %v4029, %v4027
    %v4184 = vpack.c.b16 %v4032, %v4030
    %v4185 = vpack.c.b16 %v4033, %v4031
    %v4186 = vpack.c.b16 %v4036, %v4034
    %v4187 = vpack.c.b16 %v4037, %v4035
    %v4188 = vpack.c.b16 %v4040, %v4038
    %v4189 = vpack.c.b16 %v4041, %v4039
    %v4190 = vpack.c.b16 %v4044, %v4042
    %v4191 = vpack.c.b16 %v4045, %v4043
    %v4192 = vpack.c.b16 %v4048, %v4046
    %v4193 = vpack.c.b16 %v4049, %v4047
    %v4194 = vpack.c.b16 %v4052, %v4050
    %v4195 = vpack.c.b16 %v4053, %v4051
    %v4196 = vpack.c.b16 %v4056, %v4054
    %v4197 = vpack.c.b16 %v4057, %v4055
    %v4198 = vpack.c.b16 %v4060, %v4058
    %v4199 = vpack.c.b16 %v4061, %v4059
    %v4200 = vpack.c.b16 %v4064, %v4062
    %v4201 = vpack.c.b16 %v4065, %v4063
    %v4202 = vpack.c.b16 %v4068, %v4066
    %v4203 = vpack.c.b16 %v4069, %v4067
    %v4204 = vpack.c.b16 %v4072, %v4070
    %v4205 = vpack.c.b16 %v4073, %v4071
    %v4206 = vpack.c.b16 %v4076, %v4074
    %v4207 = vpack.c.b16 %v4077, %v4075
    %v4208 = vpack.c.b16 %v4080, %v4078
    %v4209 = vpack.c.b16 %v4081, %v4079
    %4338 = vmatprep.subr.bf16.mxu0 %v4083
    %4339 = vmatpush1.bf16.msra.mxu0 %v4082
    %4340 = vmatprep.subr.bf16.mxu0 %v4085
    %4341 = vmatpush1.bf16.msra.mxu0 %v4084
    %4342 = vmatprep.subr.bf16.mxu0 %v4087
    %4343 = vmatpush1.bf16.msra.mxu0 %v4086
    %4344 = vmatprep.subr.bf16.mxu0 %v4089
    %4345 = vmatpush1.bf16.msra.mxu0 %v4088
    %4346 = vmatprep.subr.bf16.mxu0 %v4091
    %4347 = vmatpush1.bf16.msra.mxu0 %v4090
    %4348 = vmatprep.subr.bf16.mxu0 %v4093
    %4349 = vmatpush1.bf16.msra.mxu0 %v4092
    %4350 = vmatprep.subr.bf16.mxu0 %v4095
    %4351 = vmatpush1.bf16.msra.mxu0 %v4094
    %4352 = vmatprep.subr.bf16.mxu0 %v4097
    %4353 = vmatpush1.bf16.msra.mxu0 %v4096
    %4354 = vmatprep.subr.bf16.mxu0 %v4099
    %4355 = vmatpush1.bf16.msra.mxu0 %v4098
    %4356 = vmatprep.subr.bf16.mxu0 %v4101
    %4357 = vmatpush1.bf16.msra.mxu0 %v4100
    %4358 = vmatprep.subr.bf16.mxu0 %v4103
    %4359 = vmatpush1.bf16.msra.mxu0 %v4102
    %4360 = vmatprep.subr.bf16.mxu0 %v4105
    %4361 = vmatpush1.bf16.msra.mxu0 %v4104
    %4362 = vmatprep.subr.bf16.mxu0 %v4107
    %4363 = vmatpush1.bf16.msra.mxu0 %v4106
    %4364 = vmatprep.subr.bf16.mxu0 %v4109
    %4365 = vmatpush1.bf16.msra.mxu0 %v4108
    %4366 = vmatprep.subr.bf16.mxu0 %v4111
    %4367 = vmatpush1.bf16.msra.mxu0 %v4110
    %4368 = vmatprep.subr.bf16.mxu0 %v4113
    %4369 = vmatpush1.bf16.msra.mxu0 %v4112
    %4370 = vmatprep.mubr.bf16.mxu0 %v3425
    %4371 = vmatmul.mubr.bf16.gmra.mrb[0].mxu0 %v3424
    %v4372 = vpop.f32.mrb[0].mxu0
    %v4373 = vadd.f32 0.0, %v4372
    %v4374 = vpop.f32.mrb[0].mxu0
    %v4375 = vadd.f32 0.0, %v4374
    %v4376 = vpop.f32.mrb[0].mxu0
    %v4377 = vpop.f32.mrb[0].mxu0
    %4378 = vdwg.mxu0
    %4379 = vmatprep.subr.bf16.mxu0 %v4115
    %4380 = vmatpush1.bf16.msra.mxu0 %v4114
    %4381 = vmatprep.subr.bf16.mxu0 %v4117
    %4382 = vmatpush1.bf16.msra.mxu0 %v4116
    %4383 = vmatprep.subr.bf16.mxu0 %v4119
    %4384 = vmatpush1.bf16.msra.mxu0 %v4118
    %4385 = vmatprep.subr.bf16.mxu0 %v4121
    %4386 = vmatpush1.bf16.msra.mxu0 %v4120
    %4387 = vmatprep.subr.bf16.mxu0 %v4123
    %4388 = vmatpush1.bf16.msra.mxu0 %v4122
    %4389 = vmatprep.subr.bf16.mxu0 %v4125
    %4390 = vmatpush1.bf16.msra.mxu0 %v4124
    %4391 = vmatprep.subr.bf16.mxu0 %v4127
    %4392 = vmatpush1.bf16.msra.mxu0 %v4126
    %4393 = vmatprep.subr.bf16.mxu0 %v4129
    %4394 = vmatpush1.bf16.msra.mxu0 %v4128
    %4395 = vmatprep.subr.bf16.mxu0 %v4131
    %4396 = vmatpush1.bf16.msra.mxu0 %v4130
    %4397 = vmatprep.subr.bf16.mxu0 %v4133
    %4398 = vmatpush1.bf16.msra.mxu0 %v4132
    %4399 = vmatprep.subr.bf16.mxu0 %v4135
    %4400 = vmatpush1.bf16.msra.mxu0 %v4134
    %4401 = vmatprep.subr.bf16.mxu0 %v4137
    %4402 = vmatpush1.bf16.msra.mxu0 %v4136
    %4403 = vmatprep.subr.bf16.mxu0 %v4139
    %4404 = vmatpush1.bf16.msra.mxu0 %v4138
    %4405 = vmatprep.subr.bf16.mxu0 %v4141
    %4406 = vmatpush1.bf16.msra.mxu0 %v4140
    %4407 = vmatprep.subr.bf16.mxu0 %v4143
    %4408 = vmatpush1.bf16.msra.mxu0 %v4142
    %4409 = vmatprep.subr.bf16.mxu0 %v4145
    %4410 = vmatpush1.bf16.msra.mxu0 %v4144
    %4411 = vmatprep.mubr.bf16.mxu0 %v3473
    %4412 = vmatmul.mubr.bf16.gmra.mrb[0].mxu0 %v3472
    %v4413 = vpop.f32.mrb[0].mxu0
    %v4414 = vadd.f32 %v4373, %v4413
    %v4415 = vpop.f32.mrb[0].mxu0
    %v4416 = vadd.f32 %v4375, %v4415
    %v4417 = vpop.f32.mrb[0].mxu0
    %v4418 = vpop.f32.mrb[0].mxu0
    %4419 = vdwg.mxu0
    %4420 = vmatprep.subr.bf16.mxu0 %v4147
    %4421 = vmatpush1.bf16.msra.mxu0 %v4146
    %4422 = vmatprep.subr.bf16.mxu0 %v4149
    %4423 = vmatpush1.bf16.msra.mxu0 %v4148
    %4424 = vmatprep.subr.bf16.mxu0 %v4151
    %4425 = vmatpush1.bf16.msra.mxu0 %v4150
    %4426 = vmatprep.subr.bf16.mxu0 %v4153
    %4427 = vmatpush1.bf16.msra.mxu0 %v4152
    %4428 = vmatprep.subr.bf16.mxu0 %v4155
    %4429 = vmatpush1.bf16.msra.mxu0 %v4154
    %4430 = vmatprep.subr.bf16.mxu0 %v4157
    %4431 = vmatpush1.bf16.msra.mxu0 %v4156
    %4432 = vmatprep.subr.bf16.mxu0 %v4159
    %4433 = vmatpush1.bf16.msra.mxu0 %v4158
    %4434 = vmatprep.subr.bf16.mxu0 %v4161
    %4435 = vmatpush1.bf16.msra.mxu0 %v4160
    %4436 = vmatprep.subr.bf16.mxu0 %v4163
    %4437 = vmatpush1.bf16.msra.mxu0 %v4162
    %4438 = vmatprep.subr.bf16.mxu0 %v4165
    %4439 = vmatpush1.bf16.msra.mxu0 %v4164
    %4440 = vmatprep.subr.bf16.mxu0 %v4167
    %4441 = vmatpush1.bf16.msra.mxu0 %v4166
    %4442 = vmatprep.subr.bf16.mxu0 %v4169
    %4443 = vmatpush1.bf16.msra.mxu0 %v4168
    %4444 = vmatprep.subr.bf16.mxu0 %v4171
    %4445 = vmatpush1.bf16.msra.mxu0 %v4170
    %4446 = vmatprep.subr.bf16.mxu0 %v4173
    %4447 = vmatpush1.bf16.msra.mxu0 %v4172
    %4448 = vmatprep.subr.bf16.mxu0 %v4175
    %4449 = vmatpush1.bf16.msra.mxu0 %v4174
    %4450 = vmatprep.subr.bf16.mxu0 %v4177
    %4451 = vmatpush1.bf16.msra.mxu0 %v4176
    %4452 = vmatprep.mubr.bf16.mxu0 %v3521
    %4453 = vmatmul.mubr.bf16.gmra.mrb[0].mxu0 %v3520
    %v4454 = vpop.f32.mrb[0].mxu0
    %v4455 = vadd.f32 %v4414, %v4454
    %v4456 = vpop.f32.mrb[0].mxu0
    %v4457 = vadd.f32 %v4416, %v4456
    %v4458 = vpop.f32.mrb[0].mxu0
    %v4459 = vpop.f32.mrb[0].mxu0
    %4460 = vdwg.mxu0
    %4461 = vmatprep.subr.bf16.mxu0 %v4179
    %4462 = vmatpush1.bf16.msra.mxu0 %v4178
    %4463 = vmatprep.subr.bf16.mxu0 %v4181
    %4464 = vmatpush1.bf16.msra.mxu0 %v4180
    %4465 = vmatprep.subr.bf16.mxu0 %v4183
    %4466 = vmatpush1.bf16.msra.mxu0 %v4182
    %4467 = vmatprep.subr.bf16.mxu0 %v4185
    %4468 = vmatpush1.bf16.msra.mxu0 %v4184
    %4469 = vmatprep.subr.bf16.mxu0 %v4187
    %4470 = vmatpush1.bf16.msra.mxu0 %v4186
    %4471 = vmatprep.subr.bf16.mxu0 %v4189
    %4472 = vmatpush1.bf16.msra.mxu0 %v4188
    %4473 = vmatprep.subr.bf16.mxu0 %v4191
    %4474 = vmatpush1.bf16.msra.mxu0 %v4190
    %4475 = vmatprep.subr.bf16.mxu0 %v4193
    %4476 = vmatpush1.bf16.msra.mxu0 %v4192
    %4477 = vmatprep.subr.bf16.mxu0 %v4195
    %4478 = vmatpush1.bf16.msra.mxu0 %v4194
    %4479 = vmatprep.subr.bf16.mxu0 %v4197
    %4480 = vmatpush1.bf16.msra.mxu0 %v4196
    %4481 = vmatprep.subr.bf16.mxu0 %v4199
    %4482 = vmatpush1.bf16.msra.mxu0 %v4198
    %4483 = vmatprep.subr.bf16.mxu0 %v4201
    %4484 = vmatpush1.bf16.msra.mxu0 %v4200
    %4485 = vmatprep.subr.bf16.mxu0 %v4203
    %4486 = vmatpush1.bf16.msra.mxu0 %v4202
    %4487 = vmatprep.subr.bf16.mxu0 %v4205
    %4488 = vmatpush1.bf16.msra.mxu0 %v4204
    %4489 = vmatprep.subr.bf16.mxu0 %v4207
    %4490 = vmatpush1.bf16.msra.mxu0 %v4206
    %4491 = vmatprep.subr.bf16.mxu0 %v4209
    %4492 = vmatpush1.bf16.msra.mxu0 %v4208
    %4493 = vmatprep.mubr.bf16.mxu0 %v3569
    %4494 = vmatmul.mubr.bf16.gmra.mrb[0].mxu0 %v3568
    %v4495 = vpop.f32.mrb[0].mxu0
    %v4496 = vadd.f32 %v4455, %v4495
    %v4497 = vpop.f32.mrb[0].mxu0
    %v4498 = vadd.f32 %v4457, %v4497
    %v4499 = vpop.f32.mrb[0].mxu0
    %v4500 = vpop.f32.mrb[0].mxu0
    %4501 = vdwg.mxu0
    %v4502 = vrot.slane %v4496, 4
    %v4503 = vadd.f32 %v4496, %v4502
    %v4504 = vrot.slane %v4503, 2
    %v4505 = vadd.f32 %v4503, %v4504
    %v4506 = vrot.slane %v4505, 1
    %v4507 = vadd.f32 %v4505, %v4506
    %v4508 = vrot.slane %v4498, 4
    %v4509 = vadd.f32 %v4498, %v4508
    %v4510 = vrot.slane %v4509, 2
    %v4511 = vadd.f32 %v4509, %v4510
    %v4512 = vrot.slane %v4511, 1
    %v4513 = vadd.f32 %v4511, %v4512
    %v4514 = vmul.f32 %v4496, %v4496
    %v4515 = vmul.f32 %v4498, %v4498
    %v4516 = vrot.slane %v4514, 4
    %v4517 = vadd.f32 %v4514, %v4516
    %v4518 = vrot.slane %v4517, 2
    %v4519 = vadd.f32 %v4517, %v4518
    %v4520 = vrot.slane %v4519, 1
    %v4521 = vadd.f32 %v4519, %v4520
    %v4522 = vrot.slane %v4515, 4
    %v4523 = vadd.f32 %v4515, %v4522
    %v4524 = vrot.slane %v4523, 2
    %v4525 = vadd.f32 %v4523, %v4524
    %v4526 = vrot.slane %v4525, 1
    %v4527 = vadd.f32 %v4525, %v4526
    %v4528 = vsel %vm1693, %v4507, %v4521
    %v4529 = vsel %vm1693, %v4513, %v4527
    %v4530 = vld [vmem:[#allocation9] sm:$0xff]
    %v4531 = vld [vmem:[#allocation9 + $0x8] sm:$0xff]
    %v4532 = vld [vmem:[#allocation9 + $0x10] sm:$0xff]
    %v4533 = vld [vmem:[#allocation9 + $0x18] sm:$0xff]
    %v4534 = vld [vmem:[#allocation9 + $0x20] sm:$0xff]
    %v4535 = vld [vmem:[#allocation9 + $0x28] sm:$0xff]
    %v4536 = vld [vmem:[#allocation9 + $0x30] sm:$0xff]
    %v4537 = vld [vmem:[#allocation9 + $0x38] sm:$0xff]
    %v4538 = vld [vmem:[#allocation9 + $0x40] sm:$0xff]
    %v4539 = vld [vmem:[#allocation9 + $0x48] sm:$0xff]
    %v4540 = vld [vmem:[#allocation9 + $0x50] sm:$0xff]
    %v4541 = vld [vmem:[#allocation9 + $0x58] sm:$0xff]
    %v4542 = vld [vmem:[#allocation9 + $0x60] sm:$0xff]
    %v4543 = vld [vmem:[#allocation9 + $0x68] sm:$0xff]
    %v4544 = vld [vmem:[#allocation9 + $0x70] sm:$0xff]
    %v4545 = vld [vmem:[#allocation9 + $0x78] sm:$0xff]
    %v4546 = vld [vmem:[#allocation9 + $0x80] sm:$0xff]
    %v4547 = vld [vmem:[#allocation9 + $0x88] sm:$0xff]
    %v4548 = vld [vmem:[#allocation9 + $0x90] sm:$0xff]
    %v4549 = vld [vmem:[#allocation9 + $0x98] sm:$0xff]
    %v4550 = vld [vmem:[#allocation9 + $0xa0] sm:$0xff]
    %v4551 = vld [vmem:[#allocation9 + $0xa8] sm:$0xff]
    %v4552 = vld [vmem:[#allocation9 + $0xb0] sm:$0xff]
    %v4553 = vld [vmem:[#allocation9 + $0xb8] sm:$0xff]
    %v4554 = vld [vmem:[#allocation9 + $0xc0] sm:$0xff]
    %v4555 = vld [vmem:[#allocation9 + $0xc8] sm:$0xff]
    %v4556 = vld [vmem:[#allocation9 + $0xd0] sm:$0xff]
    %v4557 = vld [vmem:[#allocation9 + $0xd8] sm:$0xff]
    %v4558 = vld [vmem:[#allocation9 + $0xe0] sm:$0xff]
    %v4559 = vld [vmem:[#allocation9 + $0xe8] sm:$0xff]
    %v4560 = vld [vmem:[#allocation9 + $0xf0] sm:$0xff]
    %v4561 = vld [vmem:[#allocation9 + $0xf8] sm:$0xff]
    %v4562 = vld [vmem:[#allocation9 + $0x100] sm:$0xff]
    %v4563 = vld [vmem:[#allocation9 + $0x108] sm:$0xff]
    %v4564 = vld [vmem:[#allocation9 + $0x110] sm:$0xff]
    %v4565 = vld [vmem:[#allocation9 + $0x118] sm:$0xff]
    %v4566 = vld [vmem:[#allocation9 + $0x120] sm:$0xff]
    %v4567 = vld [vmem:[#allocation9 + $0x128] sm:$0xff]
    %v4568 = vld [vmem:[#allocation9 + $0x130] sm:$0xff]
    %v4569 = vld [vmem:[#allocation9 + $0x138] sm:$0xff]
    %v4570 = vld [vmem:[#allocation9 + $0x140] sm:$0xff]
    %v4571 = vld [vmem:[#allocation9 + $0x148] sm:$0xff]
    %v4572 = vld [vmem:[#allocation9 + $0x150] sm:$0xff]
    %v4573 = vld [vmem:[#allocation9 + $0x158] sm:$0xff]
    %v4574 = vld [vmem:[#allocation9 + $0x160] sm:$0xff]
    %v4575 = vld [vmem:[#allocation9 + $0x168] sm:$0xff]
    %v4576 = vld [vmem:[#allocation9 + $0x170] sm:$0xff]
    %v4577 = vld [vmem:[#allocation9 + $0x178] sm:$0xff]
    %v4578 = vld [vmem:[#allocation9 + $0x180] sm:$0xff]
    %v4579 = vld [vmem:[#allocation9 + $0x188] sm:$0xff]
    %v4580 = vld [vmem:[#allocation9 + $0x190] sm:$0xff]
    %v4581 = vld [vmem:[#allocation9 + $0x198] sm:$0xff]
    %v4582 = vld [vmem:[#allocation9 + $0x1a0] sm:$0xff]
    %v4583 = vld [vmem:[#allocation9 + $0x1a8] sm:$0xff]
    %v4584 = vld [vmem:[#allocation9 + $0x1b0] sm:$0xff]
    %v4585 = vld [vmem:[#allocation9 + $0x1b8] sm:$0xff]
    %v4586 = vld [vmem:[#allocation9 + $0x1c0] sm:$0xff]
    %v4587 = vld [vmem:[#allocation9 + $0x1c8] sm:$0xff]
    %v4588 = vld [vmem:[#allocation9 + $0x1d0] sm:$0xff]
    %v4589 = vld [vmem:[#allocation9 + $0x1d8] sm:$0xff]
    %v4590 = vld [vmem:[#allocation9 + $0x1e0] sm:$0xff]
    %v4591 = vld [vmem:[#allocation9 + $0x1e8] sm:$0xff]
    %v4592 = vld [vmem:[#allocation9 + $0x1f0] sm:$0xff]
    %v4593 = vld [vmem:[#allocation9 + $0x1f8] sm:$0xff]
    %4594 = vmatprep.subr.mxu0 %v4531
    %4595 = vmatpush1.msra.mxu0 %v4530
    %4596 = vmatprep.subr.mxu0 %v4533
    %4597 = vmatpush1.msra.mxu0 %v4532
    %4598 = vmatprep.subr.mxu0 %v4535
    %4599 = vmatpush1.msra.mxu0 %v4534
    %4600 = vmatprep.subr.mxu0 %v4537
    %4601 = vmatpush1.msra.mxu0 %v4536
    %4602 = vmatprep.subr.mxu0 %v4539
    %4603 = vmatpush1.msra.mxu0 %v4538
    %4604 = vmatprep.subr.mxu0 %v4541
    %4605 = vmatpush1.msra.mxu0 %v4540
    %4606 = vmatprep.subr.mxu0 %v4543
    %4607 = vmatpush1.msra.mxu0 %v4542
    %4608 = vmatprep.subr.mxu0 %v4545
    %4609 = vmatpush1.msra.mxu0 %v4544
    %4610 = vmatprep.subr.mxu0 %v4547
    %4611 = vmatpush1.msra.mxu0 %v4546
    %4612 = vmatprep.subr.mxu0 %v4549
    %4613 = vmatpush1.msra.mxu0 %v4548
    %4614 = vmatprep.subr.mxu0 %v4551
    %4615 = vmatpush1.msra.mxu0 %v4550
    %4616 = vmatprep.subr.mxu0 %v4553
    %4617 = vmatpush1.msra.mxu0 %v4552
    %4618 = vmatprep.subr.mxu0 %v4555
    %4619 = vmatpush1.msra.mxu0 %v4554
    %4620 = vmatprep.subr.mxu0 %v4557
    %4621 = vmatpush1.msra.mxu0 %v4556
    %4622 = vmatprep.subr.mxu0 %v4559
    %4623 = vmatpush1.msra.mxu0 %v4558
    %4624 = vmatprep.subr.mxu0 %v4561
    %4625 = vmatpush1.msra.mxu0 %v4560
    %4626 = vmatprep.subr.mxu0 %v4563
    %4627 = vmatpush1.msra.mxu0 %v4562
    %4628 = vmatprep.subr.mxu0 %v4565
    %4629 = vmatpush1.msra.mxu0 %v4564
    %4630 = vmatprep.subr.mxu0 %v4567
    %4631 = vmatpush1.msra.mxu0 %v4566
    %4632 = vmatprep.subr.mxu0 %v4569
    %4633 = vmatpush1.msra.mxu0 %v4568
    %4634 = vmatprep.subr.mxu0 %v4571
    %4635 = vmatpush1.msra.mxu0 %v4570
    %4636 = vmatprep.subr.mxu0 %v4573
    %4637 = vmatpush1.msra.mxu0 %v4572
    %4638 = vmatprep.subr.mxu0 %v4575
    %4639 = vmatpush1.msra.mxu0 %v4574
    %4640 = vmatprep.subr.mxu0 %v4577
    %4641 = vmatpush1.msra.mxu0 %v4576
    %4642 = vmatprep.subr.mxu0 %v4579
    %4643 = vmatpush1.msra.mxu0 %v4578
    %4644 = vmatprep.subr.mxu0 %v4581
    %4645 = vmatpush1.msra.mxu0 %v4580
    %4646 = vmatprep.subr.mxu0 %v4583
    %4647 = vmatpush1.msra.mxu0 %v4582
    %4648 = vmatprep.subr.mxu0 %v4585
    %4649 = vmatpush1.msra.mxu0 %v4584
    %4650 = vmatprep.subr.mxu0 %v4587
    %4651 = vmatpush1.msra.mxu0 %v4586
    %4652 = vmatprep.subr.mxu0 %v4589
    %4653 = vmatpush1.msra.mxu0 %v4588
    %4654 = vmatprep.subr.mxu0 %v4591
    %4655 = vmatpush1.msra.mxu0 %v4590
    %4656 = vmatprep.subr.mxu0 %v4593
    %4657 = vmatpush1.msra.mxu0 %v4592
    %4658 = vmatprep.mubr.f32.mxu0 %v4529
    %4659 = vmatmul.mubr.f32.gmra.mrb[0].mxu0 %v4528
    %v4660 = vpop.f32.mrb[0].mxu0
    %v4661 = vadd.f32 0.0, %v4660
    %v4662 = vpop.f32.mrb[0].mxu0
    %v4663 = vadd.f32 0.0, %v4662
    %4664 = vdwg.mxu0
    %v4665 = vmul.f32 %v4661, %v4661
    %v4666 = vmul.f32 %v4663, %v4663
    %v4669 = vrot.slane %v4665, 7
    %v4670 = vrot.slane %v4666, 7
    %v4673 = vsub.f32 %v4661, %v4669
    %v4674 = vsub.f32 %v4663, %v4670
    %v4675 = vmax.f32 %v4673, 0.0
    %v4676 = vmax.f32 %v4674, 0.0
    %v4677 = vadd.f32 %v4675, 1e-05
    %v4678 = vadd.f32 %v4676, 1e-05
    %v4679 = vrsqrt.pop %v4677
    %v4680 = vrsqrt.pop %v4678
    %v4681 = vlaneseq
    %v4682 = vshrl.u32 %v4681, 7
    %v4683 = vsub.s32 0, %v4682
    %v4684 = vrot.slane %v4661, %v4683
    %v4685 = vlaneseq
    %v4686 = vshrl.u32 %v4685, 7
    %v4687 = vsub.s32 0, %v4686
    %v4688 = vrot.slane %v4663, %v4687
    %v4689 = vsub.f32 %v4496, %v4684
    %v4690 = vsub.f32 %v4498, %v4688
    %v4691 = vld [vmem:[%s15] sm:$0x3]
    %v4694 = vcombine.low %v4679, %v4680
    %v4696 = vunpack.c.l.s4 1966171168
    %v4697 = vunpack.c.0.s8 %v4696
    %v4698 = vlaneseq
    %v4699 = vshrl.u32 %v4698, 7
    %v4700 = vsub.s32 %v4697, %v4699
    %v4701 = vrot.slane %v4694, %v4700
    %v4702 = vcombine.high %v4701, %v4701
    %v4704 = vunpack.c.l.s4 1966171168
    %v4705 = vunpack.c.0.s8 %v4704
    %v4706 = vlaneseq
    %v4707 = vshrl.u32 %v4706, 7
    %v4708 = vsub.s32 %v4705, %v4707
    %v4709 = vrot.slane %v4702, %v4708
    %v4711 = vmul.f32 %v4691, %v4709
    %v4713 = vlaneseq
    %v4714 = vshrl.u32 %v4713, 7
    %v4715 = vsub.s32 0, %v4714
    %v4716 = vrot.slane %v4711, %v4715
    %v4717 = vlaneseq
    %v4718 = vshrl.u32 %v4717, 7
    %v4719 = vsub.s32 1, %v4718
    %v4720 = vrot.slane %v4711, %v4719
    %v4723 = vmul.f32 %v4689, %v4716
    %v4724 = vmul.f32 %v4690, %v4720
    %v4725 = vld [vmem:[%s16] sm:$0x3]
    %v4727 = vlaneseq
    %v4728 = vshrl.u32 %v4727, 7
    %v4729 = vsub.s32 0, %v4728
    %v4730 = vrot.slane %v4725, %v4729
    %v4731 = vlaneseq
    %v4732 = vshrl.u32 %v4731, 7
    %v4733 = vsub.s32 1, %v4732
    %v4734 = vrot.slane %v4725, %v4733
    %v4737 = vadd.f32 %v4723, %v4730
    %v4738 = vadd.f32 %v4724, %v4734
    %vm4739 = vcmp.gt.f32.partialorder %v4737, 0.0
    %vm4740 = vcmp.gt.f32.partialorder %v4738, 0.0
    %v4741 = vmul.f32 %v4737, 0.2
    %v4742 = vmul.f32 %v4738, 0.2
    %v4743 = vsel %vm4739, %v4737, %v4741
    %v4744 = vsel %vm4740, %v4738, %v4742
    %v4745 = vpack.c.bf16 %v4743, %v4743
    %v4746 = vpack.c.bf16 %v4744, %v4744
    %v4747 = vld [vmem:[%s17] sm:$0x1]
    %vm4748 = vcmask 64512
    %v4750 = vsel %vm4748, %v4747, 0
    %vm4752 = vcmask 1043456
    %v4754 = vsel %vm4752, %v4745, 0
    %v4757 = vsel %vm4752, %v4746, 0
    %4759 = vmatprep.subr.bf16.mxu0 %v4757
    %4760 = vmatpush1.bf16.msra.mxu0 %v4754
    %4761 = vmatprep.subr.bf16.mxu0 0
    %4762 = vmatpush1.bf16.msra.mxu0 0
    %4763 = vmatprep.subr.bf16.mxu0 0
    %4764 = vmatpush1.bf16.msra.mxu0 0
    %4765 = vmatprep.subr.bf16.mxu0 0
    %4766 = vmatpush1.bf16.msra.mxu0 0
    %4767 = vmatprep.subr.bf16.mxu0 0
    %4768 = vmatpush1.bf16.msra.mxu0 0
    %4769 = vmatprep.subr.bf16.mxu0 0
    %4770 = vmatpush1.bf16.msra.mxu0 0
    %4771 = vmatprep.subr.bf16.mxu0 0
    %4772 = vmatpush1.bf16.msra.mxu0 0
    %4773 = vmatprep.subr.bf16.mxu0 0
    %4774 = vmatpush1.bf16.msra.mxu0 0
    %4775 = vmatprep.subr.bf16.mxu0 0
    %4776 = vmatpush1.bf16.msra.mxu0 0
    %4777 = vmatprep.subr.bf16.mxu0 0
    %4778 = vmatpush1.bf16.msra.mxu0 0
    %4779 = vmatprep.subr.bf16.mxu0 0
    %4780 = vmatpush1.bf16.msra.mxu0 0
    %4781 = vmatprep.subr.bf16.mxu0 0
    %4782 = vmatpush1.bf16.msra.mxu0 0
    %4783 = vmatprep.subr.bf16.mxu0 0
    %4784 = vmatpush1.bf16.msra.mxu0 0
    %4785 = vmatprep.subr.bf16.mxu0 0
    %4786 = vmatpush1.bf16.msra.mxu0 0
    %4787 = vmatprep.subr.bf16.mxu0 0
    %4788 = vmatpush1.bf16.msra.mxu0 0
    %4789 = vmatprep.subr.bf16.mxu0 0
    %4790 = vmatpush1.bf16.msra.mxu0 0
    %4791 = vmatprep.mubr.bf16.mxu0 0
    %4792 = vmatmul.mubr.bf16.gmra.mrb[0].mxu0 %v4750
    %v4793 = vpop.f32.mrb[0].mxu0
    %v4794 = vadd.f32 0.0, %v4793
    %v4795 = vpop.f32.mrb[0].mxu0
    %v4796 = vadd.f32 0.0, %v4795
    %v4797 = vpop.f32.mrb[0].mxu0
    %v4798 = vpop.f32.mrb[0].mxu0
    %4799 = vdwg.mxu0
    %v4800 = vpack.c.bf16 %v4794, %v4794
    %v4801 = vpack.c.bf16 %v4796, %v4796
    %s4802 = scalar_lea.vmem %s17, 1
    %v4803 = vld [vmem:[%s4802] sm:$0x1]
    %v4805 = vsel %vm4748, %v4803, 0
    %4807 = vmatprep.subr.bf16.mxu0 %v4757
    %4808 = vmatpush1.bf16.msra.mxu0 %v4754
    %4809 = vmatprep.subr.bf16.mxu0 0
    %4810 = vmatpush1.bf16.msra.mxu0 0
    %4811 = vmatprep.subr.bf16.mxu0 0
    %4812 = vmatpush1.bf16.msra.mxu0 0
    %4813 = vmatprep.subr.bf16.mxu0 0
    %4814 = vmatpush1.bf16.msra.mxu0 0
    %4815 = vmatprep.subr.bf16.mxu0 0
    %4816 = vmatpush1.bf16.msra.mxu0 0
    %4817 = vmatprep.subr.bf16.mxu0 0
    %4818 = vmatpush1.bf16.msra.mxu0 0
    %4819 = vmatprep.subr.bf16.mxu0 0
    %4820 = vmatpush1.bf16.msra.mxu0 0
    %4821 = vmatprep.subr.bf16.mxu0 0
    %4822 = vmatpush1.bf16.msra.mxu0 0
    %4823 = vmatprep.subr.bf16.mxu0 0
    %4824 = vmatpush1.bf16.msra.mxu0 0
    %4825 = vmatprep.subr.bf16.mxu0 0
    %4826 = vmatpush1.bf16.msra.mxu0 0
    %4827 = vmatprep.subr.bf16.mxu0 0
    %4828 = vmatpush1.bf16.msra.mxu0 0
    %4829 = vmatprep.subr.bf16.mxu0 0
    %4830 = vmatpush1.bf16.msra.mxu0 0
    %4831 = vmatprep.subr.bf16.mxu0 0
    %4832 = vmatpush1.bf16.msra.mxu0 0
    %4833 = vmatprep.subr.bf16.mxu0 0
    %4834 = vmatpush1.bf16.msra.mxu0 0
    %4835 = vmatprep.subr.bf16.mxu0 0
    %4836 = vmatpush1.bf16.msra.mxu0 0
    %4837 = vmatprep.subr.bf16.mxu0 0
    %4838 = vmatpush1.bf16.msra.mxu0 0
    %4839 = vmatprep.mubr.bf16.mxu0 0
    %4840 = vmatmul.mubr.bf16.gmra.mrb[0].mxu0 %v4805
    %v4841 = vpop.f32.mrb[0].mxu0
    %v4842 = vadd.f32 0.0, %v4841
    %v4843 = vpop.f32.mrb[0].mxu0
    %v4844 = vadd.f32 0.0, %v4843
    %v4845 = vpop.f32.mrb[0].mxu0
    %v4846 = vpop.f32.mrb[0].mxu0
    %4847 = vdwg.mxu0
    %v4848 = vpack.c.bf16 %v4842, %v4842
    %v4849 = vpack.c.bf16 %v4844, %v4844
    %s4850 = scalar_lea.vmem %s17, 2
    %v4851 = vld [vmem:[%s4850] sm:$0x1]
    %v4853 = vsel %vm4748, %v4851, 0
    %4855 = vmatprep.subr.bf16.mxu0 %v4757
    %4856 = vmatpush1.bf16.msra.mxu0 %v4754
    %4857 = vmatprep.subr.bf16.mxu0 0
    %4858 = vmatpush1.bf16.msra.mxu0 0
    %4859 = vmatprep.subr.bf16.mxu0 0
    %4860 = vmatpush1.bf16.msra.mxu0 0
    %4861 = vmatprep.subr.bf16.mxu0 0
    %4862 = vmatpush1.bf16.msra.mxu0 0
    %4863 = vmatprep.subr.bf16.mxu0 0
    %4864 = vmatpush1.bf16.msra.mxu0 0
    %4865 = vmatprep.subr.bf16.mxu0 0
    %4866 = vmatpush1.bf16.msra.mxu0 0
    %4867 = vmatprep.subr.bf16.mxu0 0
    %4868 = vmatpush1.bf16.msra.mxu0 0
    %4869 = vmatprep.subr.bf16.mxu0 0
    %4870 = vmatpush1.bf16.msra.mxu0 0
    %4871 = vmatprep.subr.bf16.mxu0 0
    %4872 = vmatpush1.bf16.msra.mxu0 0
    %4873 = vmatprep.subr.bf16.mxu0 0
    %4874 = vmatpush1.bf16.msra.mxu0 0
    %4875 = vmatprep.subr.bf16.mxu0 0
    %4876 = vmatpush1.bf16.msra.mxu0 0
    %4877 = vmatprep.subr.bf16.mxu0 0
    %4878 = vmatpush1.bf16.msra.mxu0 0
    %4879 = vmatprep.subr.bf16.mxu0 0
    %4880 = vmatpush1.bf16.msra.mxu0 0
    %4881 = vmatprep.subr.bf16.mxu0 0
    %4882 = vmatpush1.bf16.msra.mxu0 0
    %4883 = vmatprep.subr.bf16.mxu0 0
    %4884 = vmatpush1.bf16.msra.mxu0 0
    %4885 = vmatprep.subr.bf16.mxu0 0
    %4886 = vmatpush1.bf16.msra.mxu0 0
    %4887 = vmatprep.mubr.bf16.mxu0 0
    %4888 = vmatmul.mubr.bf16.gmra.mrb[0].mxu0 %v4853
    %v4889 = vpop.f32.mrb[0].mxu0
    %v4890 = vadd.f32 0.0, %v4889
    %v4891 = vpop.f32.mrb[0].mxu0
    %v4892 = vadd.f32 0.0, %v4891
    %v4893 = vpop.f32.mrb[0].mxu0
    %v4894 = vpop.f32.mrb[0].mxu0
    %4895 = vdwg.mxu0
    %v4896 = vpack.c.bf16 %v4890, %v4890
    %v4897 = vpack.c.bf16 %v4892, %v4892
    %s4898 = scalar_lea.vmem %s17, 3
    %v4899 = vld [vmem:[%s4898] sm:$0x1]
    %v4901 = vsel %vm4748, %v4899, 0
    %4903 = vmatprep.subr.bf16.mxu0 %v4757
    %4904 = vmatpush1.bf16.msra.mxu0 %v4754
    %4905 = vmatprep.subr.bf16.mxu0 0
    %4906 = vmatpush1.bf16.msra.mxu0 0
    %4907 = vmatprep.subr.bf16.mxu0 0
    %4908 = vmatpush1.bf16.msra.mxu0 0
    %4909 = vmatprep.subr.bf16.mxu0 0
    %4910 = vmatpush1.bf16.msra.mxu0 0
    %4911 = vmatprep.subr.bf16.mxu0 0
    %4912 = vmatpush1.bf16.msra.mxu0 0
    %4913 = vmatprep.subr.bf16.mxu0 0
    %4914 = vmatpush1.bf16.msra.mxu0 0
    %4915 = vmatprep.subr.bf16.mxu0 0
    %4916 = vmatpush1.bf16.msra.mxu0 0
    %4917 = vmatprep.subr.bf16.mxu0 0
    %4918 = vmatpush1.bf16.msra.mxu0 0
    %4919 = vmatprep.subr.bf16.mxu0 0
    %4920 = vmatpush1.bf16.msra.mxu0 0
    %4921 = vmatprep.subr.bf16.mxu0 0
    %4922 = vmatpush1.bf16.msra.mxu0 0
    %4923 = vmatprep.subr.bf16.mxu0 0
    %4924 = vmatpush1.bf16.msra.mxu0 0
    %4925 = vmatprep.subr.bf16.mxu0 0
    %4926 = vmatpush1.bf16.msra.mxu0 0
    %4927 = vmatprep.subr.bf16.mxu0 0
    %4928 = vmatpush1.bf16.msra.mxu0 0
    %4929 = vmatprep.subr.bf16.mxu0 0
    %4930 = vmatpush1.bf16.msra.mxu0 0
    %4931 = vmatprep.subr.bf16.mxu0 0
    %4932 = vmatpush1.bf16.msra.mxu0 0
    %4933 = vmatprep.subr.bf16.mxu0 0
    %4934 = vmatpush1.bf16.msra.mxu0 0
    %4935 = vmatprep.mubr.bf16.mxu0 0
    %4936 = vmatmul.mubr.bf16.gmra.mrb[0].mxu0 %v4901
    %v4937 = vpop.f32.mrb[0].mxu0
    %v4938 = vadd.f32 0.0, %v4937
    %v4939 = vpop.f32.mrb[0].mxu0
    %v4940 = vadd.f32 0.0, %v4939
    %v4941 = vpop.f32.mrb[0].mxu0
    %v4942 = vpop.f32.mrb[0].mxu0
    %4943 = vdwg.mxu0
    %v4944 = vpack.c.bf16 %v4938, %v4938
    %v4945 = vpack.c.bf16 %v4940, %v4940
    %v4946 = vld [vmem:[%s18] sm:$0xf]
    %v4947 = vld [vmem:[%s18 + $0x4] sm:$0xf]
    %v4948 = vld [vmem:[%s18 + $0x8] sm:$0xf]
    %v4949 = vld [vmem:[%s18 + $0xc] sm:$0xf]
    %v4950 = vld [vmem:[%s18 + $0x10] sm:$0xf]
    %v4951 = vld [vmem:[%s18 + $0x14] sm:$0xf]
    %v4952 = vld [vmem:[%s18 + $0x18] sm:$0xf]
    %v4953 = vld [vmem:[%s18 + $0x1c] sm:$0xf]
    %v4954 = vld [vmem:[%s18 + $0x20] sm:$0xf]
    %v4955 = vld [vmem:[%s18 + $0x24] sm:$0xf]
    %v4956 = vld [vmem:[%s18 + $0x28] sm:$0xf]
    %v4957 = vld [vmem:[%s18 + $0x2c] sm:$0xf]
    %v4958 = vld [vmem:[%s18 + $0x30] sm:$0xf]
    %v4959 = vld [vmem:[%s18 + $0x34] sm:$0xf]
    %v4960 = vld [vmem:[%s18 + $0x38] sm:$0xf]
    %v4961 = vld [vmem:[%s18 + $0x3c] sm:$0xf]
    %v4962 = vld [vmem:[%s18 + $0x40] sm:$0xf]
    %v4963 = vld [vmem:[%s18 + $0x44] sm:$0xf]
    %v4964 = vld [vmem:[%s18 + $0x48] sm:$0xf]
    %v4965 = vld [vmem:[%s18 + $0x4c] sm:$0xf]
    %v4966 = vld [vmem:[%s18 + $0x50] sm:$0xf]
    %v4967 = vld [vmem:[%s18 + $0x54] sm:$0xf]
    %v4968 = vld [vmem:[%s18 + $0x58] sm:$0xf]
    %v4969 = vld [vmem:[%s18 + $0x5c] sm:$0xf]
    %v4970 = vld [vmem:[%s18 + $0x60] sm:$0xf]
    %v4971 = vld [vmem:[%s18 + $0x64] sm:$0xf]
    %v4972 = vld [vmem:[%s18 + $0x68] sm:$0xf]
    %v4973 = vld [vmem:[%s18 + $0x6c] sm:$0xf]
    %v4974 = vld [vmem:[%s18 + $0x70] sm:$0xf]
    %v4975 = vld [vmem:[%s18 + $0x74] sm:$0xf]
    %v4976 = vld [vmem:[%s18 + $0x78] sm:$0xf]
    %v4977 = vld [vmem:[%s18 + $0x7c] sm:$0xf]
    %v4978 = vld [vmem:[%s18 + $0x80] sm:$0xf]
    %v4979 = vld [vmem:[%s18 + $0x84] sm:$0xf]
    %v4980 = vld [vmem:[%s18 + $0x88] sm:$0xf]
    %v4981 = vld [vmem:[%s18 + $0x8c] sm:$0xf]
    %v4982 = vld [vmem:[%s18 + $0x90] sm:$0xf]
    %v4983 = vld [vmem:[%s18 + $0x94] sm:$0xf]
    %v4984 = vld [vmem:[%s18 + $0x98] sm:$0xf]
    %v4985 = vld [vmem:[%s18 + $0x9c] sm:$0xf]
    %v4986 = vld [vmem:[%s18 + $0xa0] sm:$0xf]
    %v4987 = vld [vmem:[%s18 + $0xa4] sm:$0xf]
    %v4988 = vld [vmem:[%s18 + $0xa8] sm:$0xf]
    %v4989 = vld [vmem:[%s18 + $0xac] sm:$0xf]
    %v4990 = vld [vmem:[%s18 + $0xb0] sm:$0xf]
    %v4991 = vld [vmem:[%s18 + $0xb4] sm:$0xf]
    %v4992 = vld [vmem:[%s18 + $0xb8] sm:$0xf]
    %v4993 = vld [vmem:[%s18 + $0xbc] sm:$0xf]
    %v4994 = vld [vmem:[%s18 + $0xc0] sm:$0xf]
    %v4995 = vld [vmem:[%s18 + $0xc4] sm:$0xf]
    %v4996 = vld [vmem:[%s18 + $0xc8] sm:$0xf]
    %v4997 = vld [vmem:[%s18 + $0xcc] sm:$0xf]
    %v4998 = vld [vmem:[%s18 + $0xd0] sm:$0xf]
    %v4999 = vld [vmem:[%s18 + $0xd4] sm:$0xf]
    %v5000 = vld [vmem:[%s18 + $0xd8] sm:$0xf]
    %v5001 = vld [vmem:[%s18 + $0xdc] sm:$0xf]
    %v5002 = vld [vmem:[%s18 + $0xe0] sm:$0xf]
    %v5003 = vld [vmem:[%s18 + $0xe4] sm:$0xf]
    %v5004 = vld [vmem:[%s18 + $0xe8] sm:$0xf]
    %v5005 = vld [vmem:[%s18 + $0xec] sm:$0xf]
    %v5006 = vld [vmem:[%s18 + $0xf0] sm:$0xf]
    %v5007 = vld [vmem:[%s18 + $0xf4] sm:$0xf]
    %v5008 = vld [vmem:[%s18 + $0xf8] sm:$0xf]
    %v5009 = vld [vmem:[%s18 + $0xfc] sm:$0xf]
    %v5010 = vld [vmem:[%s18 + $0x100] sm:$0xf]
    %v5011 = vld [vmem:[%s18 + $0x104] sm:$0xf]
    %v5012 = vld [vmem:[%s18 + $0x108] sm:$0xf]
    %v5013 = vld [vmem:[%s18 + $0x10c] sm:$0xf]
    %v5014 = vld [vmem:[%s18 + $0x110] sm:$0xf]
    %v5015 = vld [vmem:[%s18 + $0x114] sm:$0xf]
    %v5016 = vld [vmem:[%s18 + $0x118] sm:$0xf]
    %v5017 = vld [vmem:[%s18 + $0x11c] sm:$0xf]
    %v5018 = vld [vmem:[%s18 + $0x120] sm:$0xf]
    %v5019 = vld [vmem:[%s18 + $0x124] sm:$0xf]
    %v5020 = vld [vmem:[%s18 + $0x128] sm:$0xf]
    %v5021 = vld [vmem:[%s18 + $0x12c] sm:$0xf]
    %v5022 = vld [vmem:[%s18 + $0x130] sm:$0xf]
    %v5023 = vld [vmem:[%s18 + $0x134] sm:$0xf]
    %v5024 = vld [vmem:[%s18 + $0x138] sm:$0xf]
    %v5025 = vld [vmem:[%s18 + $0x13c] sm:$0xf]
    %v5026 = vld [vmem:[%s18 + $0x140] sm:$0xf]
    %v5027 = vld [vmem:[%s18 + $0x144] sm:$0xf]
    %v5028 = vld [vmem:[%s18 + $0x148] sm:$0xf]
    %v5029 = vld [vmem:[%s18 + $0x14c] sm:$0xf]
    %v5030 = vld [vmem:[%s18 + $0x150] sm:$0xf]
    %v5031 = vld [vmem:[%s18 + $0x154] sm:$0xf]
    %v5032 = vld [vmem:[%s18 + $0x158] sm:$0xf]
    %v5033 = vld [vmem:[%s18 + $0x15c] sm:$0xf]
    %v5034 = vld [vmem:[%s18 + $0x160] sm:$0xf]
    %v5035 = vld [vmem:[%s18 + $0x164] sm:$0xf]
    %v5036 = vld [vmem:[%s18 + $0x168] sm:$0xf]
    %v5037 = vld [vmem:[%s18 + $0x16c] sm:$0xf]
    %v5038 = vld [vmem:[%s18 + $0x170] sm:$0xf]
    %v5039 = vld [vmem:[%s18 + $0x174] sm:$0xf]
    %v5040 = vld [vmem:[%s18 + $0x178] sm:$0xf]
    %v5041 = vld [vmem:[%s18 + $0x17c] sm:$0xf]
    %v5042 = vld [vmem:[%s18 + $0x180] sm:$0xf]
    %v5043 = vld [vmem:[%s18 + $0x184] sm:$0xf]
    %v5044 = vld [vmem:[%s18 + $0x188] sm:$0xf]
    %v5045 = vld [vmem:[%s18 + $0x18c] sm:$0xf]
    %v5046 = vld [vmem:[%s18 + $0x190] sm:$0xf]
    %v5047 = vld [vmem:[%s18 + $0x194] sm:$0xf]
    %v5048 = vld [vmem:[%s18 + $0x198] sm:$0xf]
    %v5049 = vld [vmem:[%s18 + $0x19c] sm:$0xf]
    %v5050 = vld [vmem:[%s18 + $0x1a0] sm:$0xf]
    %v5051 = vld [vmem:[%s18 + $0x1a4] sm:$0xf]
    %v5052 = vld [vmem:[%s18 + $0x1a8] sm:$0xf]
    %v5053 = vld [vmem:[%s18 + $0x1ac] sm:$0xf]
    %v5054 = vld [vmem:[%s18 + $0x1b0] sm:$0xf]
    %v5055 = vld [vmem:[%s18 + $0x1b4] sm:$0xf]
    %v5056 = vld [vmem:[%s18 + $0x1b8] sm:$0xf]
    %v5057 = vld [vmem:[%s18 + $0x1bc] sm:$0xf]
    %v5058 = vld [vmem:[%s18 + $0x1c0] sm:$0xf]
    %v5059 = vld [vmem:[%s18 + $0x1c4] sm:$0xf]
    %v5060 = vld [vmem:[%s18 + $0x1c8] sm:$0xf]
    %v5061 = vld [vmem:[%s18 + $0x1cc] sm:$0xf]
    %v5062 = vld [vmem:[%s18 + $0x1d0] sm:$0xf]
    %v5063 = vld [vmem:[%s18 + $0x1d4] sm:$0xf]
    %v5064 = vld [vmem:[%s18 + $0x1d8] sm:$0xf]
    %v5065 = vld [vmem:[%s18 + $0x1dc] sm:$0xf]
    %v5066 = vld [vmem:[%s18 + $0x1e0] sm:$0xf]
    %v5067 = vld [vmem:[%s18 + $0x1e4] sm:$0xf]
    %v5068 = vld [vmem:[%s18 + $0x1e8] sm:$0xf]
    %v5069 = vld [vmem:[%s18 + $0x1ec] sm:$0xf]
    %v5070 = vld [vmem:[%s18 + $0x1f0] sm:$0xf]
    %v5071 = vld [vmem:[%s18 + $0x1f4] sm:$0xf]
    %v5072 = vld [vmem:[%s18 + $0x1f8] sm:$0xf]
    %v5073 = vld [vmem:[%s18 + $0x1fc] sm:$0xf]
    %v5202 = vunpack.c.l.b16 %v4946
    %v5203 = vunpack.c.l.b16 %v4947
    %v5204 = vunpack.c.l.b16 %v4948
    %v5205 = vunpack.c.l.b16 %v4949
    %v5206 = vunpack.c.l.b16 %v4950
    %v5207 = vunpack.c.l.b16 %v4951
    %v5208 = vunpack.c.l.b16 %v4952
    %v5209 = vunpack.c.l.b16 %v4953
    %v5210 = vunpack.c.l.b16 %v4954
    %v5211 = vunpack.c.l.b16 %v4955
    %v5212 = vunpack.c.l.b16 %v4956
    %v5213 = vunpack.c.l.b16 %v4957
    %v5214 = vunpack.c.l.b16 %v4958
    %v5215 = vunpack.c.l.b16 %v4959
    %v5216 = vunpack.c.l.b16 %v4960
    %v5217 = vunpack.c.l.b16 %v4961
    %v5218 = vunpack.c.l.b16 %v4962
    %v5219 = vunpack.c.l.b16 %v4963
    %v5220 = vunpack.c.l.b16 %v4964
    %v5221 = vunpack.c.l.b16 %v4965
    %v5222 = vunpack.c.l.b16 %v4966
    %v5223 = vunpack.c.l.b16 %v4967
    %v5224 = vunpack.c.l.b16 %v4968
    %v5225 = vunpack.c.l.b16 %v4969
    %v5226 = vunpack.c.l.b16 %v4970
    %v5227 = vunpack.c.l.b16 %v4971
    %v5228 = vunpack.c.l.b16 %v4972
    %v5229 = vunpack.c.l.b16 %v4973
    %v5230 = vunpack.c.l.b16 %v4974
    %v5231 = vunpack.c.l.b16 %v4975
    %v5232 = vunpack.c.l.b16 %v4976
    %v5233 = vunpack.c.l.b16 %v4977
    %v5234 = vunpack.c.l.b16 %v4978
    %v5235 = vunpack.c.l.b16 %v4979
    %v5236 = vunpack.c.l.b16 %v4980
    %v5237 = vunpack.c.l.b16 %v4981
    %v5238 = vunpack.c.l.b16 %v4982
    %v5239 = vunpack.c.l.b16 %v4983
    %v5240 = vunpack.c.l.b16 %v4984
    %v5241 = vunpack.c.l.b16 %v4985
    %v5242 = vunpack.c.l.b16 %v4986
    %v5243 = vunpack.c.l.b16 %v4987
    %v5244 = vunpack.c.l.b16 %v4988
    %v5245 = vunpack.c.l.b16 %v4989
    %v5246 = vunpack.c.l.b16 %v4990
    %v5247 = vunpack.c.l.b16 %v4991
    %v5248 = vunpack.c.l.b16 %v4992
    %v5249 = vunpack.c.l.b16 %v4993
    %v5250 = vunpack.c.l.b16 %v4994
    %v5251 = vunpack.c.l.b16 %v4995
    %v5252 = vunpack.c.l.b16 %v4996
    %v5253 = vunpack.c.l.b16 %v4997
    %v5254 = vunpack.c.l.b16 %v4998
    %v5255 = vunpack.c.l.b16 %v4999
    %v5256 = vunpack.c.l.b16 %v5000
    %v5257 = vunpack.c.l.b16 %v5001
    %v5258 = vunpack.c.l.b16 %v5002
    %v5259 = vunpack.c.l.b16 %v5003
    %v5260 = vunpack.c.l.b16 %v5004
    %v5261 = vunpack.c.l.b16 %v5005
    %v5262 = vunpack.c.l.b16 %v5006
    %v5263 = vunpack.c.l.b16 %v5007
    %v5264 = vunpack.c.l.b16 %v5008
    %v5265 = vunpack.c.l.b16 %v5009
    %v5266 = vunpack.c.l.b16 %v5010
    %v5267 = vunpack.c.l.b16 %v5011
    %v5268 = vunpack.c.l.b16 %v5012
    %v5269 = vunpack.c.l.b16 %v5013
    %v5270 = vunpack.c.l.b16 %v5014
    %v5271 = vunpack.c.l.b16 %v5015
    %v5272 = vunpack.c.l.b16 %v5016
    %v5273 = vunpack.c.l.b16 %v5017
    %v5274 = vunpack.c.l.b16 %v5018
    %v5275 = vunpack.c.l.b16 %v5019
    %v5276 = vunpack.c.l.b16 %v5020
    %v5277 = vunpack.c.l.b16 %v5021
    %v5278 = vunpack.c.l.b16 %v5022
    %v5279 = vunpack.c.l.b16 %v5023
    %v5280 = vunpack.c.l.b16 %v5024
    %v5281 = vunpack.c.l.b16 %v5025
    %v5282 = vunpack.c.l.b16 %v5026
    %v5283 = vunpack.c.l.b16 %v5027
    %v5284 = vunpack.c.l.b16 %v5028
    %v5285 = vunpack.c.l.b16 %v5029
    %v5286 = vunpack.c.l.b16 %v5030
    %v5287 = vunpack.c.l.b16 %v5031
    %v5288 = vunpack.c.l.b16 %v5032
    %v5289 = vunpack.c.l.b16 %v5033
    %v5290 = vunpack.c.l.b16 %v5034
    %v5291 = vunpack.c.l.b16 %v5035
    %v5292 = vunpack.c.l.b16 %v5036
    %v5293 = vunpack.c.l.b16 %v5037
    %v5294 = vunpack.c.l.b16 %v5038
    %v5295 = vunpack.c.l.b16 %v5039
    %v5296 = vunpack.c.l.b16 %v5040
    %v5297 = vunpack.c.l.b16 %v5041
    %v5298 = vunpack.c.l.b16 %v5042
    %v5299 = vunpack.c.l.b16 %v5043
    %v5300 = vunpack.c.l.b16 %v5044
    %v5301 = vunpack.c.l.b16 %v5045
    %v5302 = vunpack.c.l.b16 %v5046
    %v5303 = vunpack.c.l.b16 %v5047
    %v5304 = vunpack.c.l.b16 %v5048
    %v5305 = vunpack.c.l.b16 %v5049
    %v5306 = vunpack.c.l.b16 %v5050
    %v5307 = vunpack.c.l.b16 %v5051
    %v5308 = vunpack.c.l.b16 %v5052
    %v5309 = vunpack.c.l.b16 %v5053
    %v5310 = vunpack.c.l.b16 %v5054
    %v5311 = vunpack.c.l.b16 %v5055
    %v5312 = vunpack.c.l.b16 %v5056
    %v5313 = vunpack.c.l.b16 %v5057
    %v5314 = vunpack.c.l.b16 %v5058
    %v5315 = vunpack.c.l.b16 %v5059
    %v5316 = vunpack.c.l.b16 %v5060
    %v5317 = vunpack.c.l.b16 %v5061
    %v5318 = vunpack.c.l.b16 %v5062
    %v5319 = vunpack.c.l.b16 %v5063
    %v5320 = vunpack.c.l.b16 %v5064
    %v5321 = vunpack.c.l.b16 %v5065
    %v5322 = vunpack.c.l.b16 %v5066
    %v5323 = vunpack.c.l.b16 %v5067
    %v5324 = vunpack.c.l.b16 %v5068
    %v5325 = vunpack.c.l.b16 %v5069
    %v5326 = vunpack.c.l.b16 %v5070
    %v5327 = vunpack.c.l.b16 %v5071
    %v5328 = vunpack.c.l.b16 %v5072
    %v5329 = vunpack.c.l.b16 %v5073
    %v5330 = vpack.c.b16 %v5203, %v5202
    %v5331 = vpack.c.b16 %v5205, %v5204
    %v5332 = vpack.c.b16 %v5207, %v5206
    %v5333 = vpack.c.b16 %v5209, %v5208
    %v5334 = vpack.c.b16 %v5211, %v5210
    %v5335 = vpack.c.b16 %v5213, %v5212
    %v5336 = vpack.c.b16 %v5215, %v5214
    %v5337 = vpack.c.b16 %v5217, %v5216
    %v5338 = vpack.c.b16 %v5219, %v5218
    %v5339 = vpack.c.b16 %v5221, %v5220
    %v5340 = vpack.c.b16 %v5223, %v5222
    %v5341 = vpack.c.b16 %v5225, %v5224
    %v5342 = vpack.c.b16 %v5227, %v5226
    %v5343 = vpack.c.b16 %v5229, %v5228
    %v5344 = vpack.c.b16 %v5231, %v5230
    %v5345 = vpack.c.b16 %v5233, %v5232
    %v5346 = vpack.c.b16 %v5235, %v5234
    %v5347 = vpack.c.b16 %v5237, %v5236
    %v5348 = vpack.c.b16 %v5239, %v5238
    %v5349 = vpack.c.b16 %v5241, %v5240
    %v5350 = vpack.c.b16 %v5243, %v5242
    %v5351 = vpack.c.b16 %v5245, %v5244
    %v5352 = vpack.c.b16 %v5247, %v5246
    %v5353 = vpack.c.b16 %v5249, %v5248
    %v5354 = vpack.c.b16 %v5251, %v5250
    %v5355 = vpack.c.b16 %v5253, %v5252
    %v5356 = vpack.c.b16 %v5255, %v5254
    %v5357 = vpack.c.b16 %v5257, %v5256
    %v5358 = vpack.c.b16 %v5259, %v5258
    %v5359 = vpack.c.b16 %v5261, %v5260
    %v5360 = vpack.c.b16 %v5263, %v5262
    %v5361 = vpack.c.b16 %v5265, %v5264
    %v5362 = vpack.c.b16 %v5267, %v5266
    %v5363 = vpack.c.b16 %v5269, %v5268
    %v5364 = vpack.c.b16 %v5271, %v5270
    %v5365 = vpack.c.b16 %v5273, %v5272
    %v5366 = vpack.c.b16 %v5275, %v5274
    %v5367 = vpack.c.b16 %v5277, %v5276
    %v5368 = vpack.c.b16 %v5279, %v5278
    %v5369 = vpack.c.b16 %v5281, %v5280
    %v5370 = vpack.c.b16 %v5283, %v5282
    %v5371 = vpack.c.b16 %v5285, %v5284
    %v5372 = vpack.c.b16 %v5287, %v5286
    %v5373 = vpack.c.b16 %v5289, %v5288
    %v5374 = vpack.c.b16 %v5291, %v5290
    %v5375 = vpack.c.b16 %v5293, %v5292
    %v5376 = vpack.c.b16 %v5295, %v5294
    %v5377 = vpack.c.b16 %v5297, %v5296
    %v5378 = vpack.c.b16 %v5299, %v5298
    %v5379 = vpack.c.b16 %v5301, %v5300
    %v5380 = vpack.c.b16 %v5303, %v5302
    %v5381 = vpack.c.b16 %v5305, %v5304
    %v5382 = vpack.c.b16 %v5307, %v5306
    %v5383 = vpack.c.b16 %v5309, %v5308
    %v5384 = vpack.c.b16 %v5311, %v5310
    %v5385 = vpack.c.b16 %v5313, %v5312
    %v5386 = vpack.c.b16 %v5315, %v5314
    %v5387 = vpack.c.b16 %v5317, %v5316
    %v5388 = vpack.c.b16 %v5319, %v5318
    %v5389 = vpack.c.b16 %v5321, %v5320
    %v5390 = vpack.c.b16 %v5323, %v5322
    %v5391 = vpack.c.b16 %v5325, %v5324
    %v5392 = vpack.c.b16 %v5327, %v5326
    %v5393 = vpack.c.b16 %v5329, %v5328
    %5458 = vmatprep.subr.bf16.mxu0 0
    %5459 = vmatpush1.bf16.msra.mxu0 %v5330
    %5460 = vmatprep.subr.bf16.mxu0 0
    %5461 = vmatpush1.bf16.msra.mxu0 %v5331
    %5462 = vmatprep.subr.bf16.mxu0 0
    %5463 = vmatpush1.bf16.msra.mxu0 %v5332
    %5464 = vmatprep.subr.bf16.mxu0 0
    %5465 = vmatpush1.bf16.msra.mxu0 %v5333
    %5466 = vmatprep.subr.bf16.mxu0 0
    %5467 = vmatpush1.bf16.msra.mxu0 %v5334
    %5468 = vmatprep.subr.bf16.mxu0 0
    %5469 = vmatpush1.bf16.msra.mxu0 %v5335
    %5470 = vmatprep.subr.bf16.mxu0 0
    %5471 = vmatpush1.bf16.msra.mxu0 %v5336
    %5472 = vmatprep.subr.bf16.mxu0 0
    %5473 = vmatpush1.bf16.msra.mxu0 %v5337
    %5474 = vmatprep.subr.bf16.mxu0 0
    %5475 = vmatpush1.bf16.msra.mxu0 %v5338
    %5476 = vmatprep.subr.bf16.mxu0 0
    %5477 = vmatpush1.bf16.msra.mxu0 %v5339
    %5478 = vmatprep.subr.bf16.mxu0 0
    %5479 = vmatpush1.bf16.msra.mxu0 %v5340
    %5480 = vmatprep.subr.bf16.mxu0 0
    %5481 = vmatpush1.bf16.msra.mxu0 %v5341
    %5482 = vmatprep.subr.bf16.mxu0 0
    %5483 = vmatpush1.bf16.msra.mxu0 %v5342
    %5484 = vmatprep.subr.bf16.mxu0 0
    %5485 = vmatpush1.bf16.msra.mxu0 %v5343
    %5486 = vmatprep.subr.bf16.mxu0 0
    %5487 = vmatpush1.bf16.msra.mxu0 %v5344
    %5488 = vmatprep.subr.bf16.mxu0 0
    %5489 = vmatpush1.bf16.msra.mxu0 %v5345
    %5490 = vmatprep.mubr.bf16.mxu0 %v4801
    %5491 = vmatmul.mubr.bf16.gmra.mrb[0].mxu0 %v4800
    %v5492 = vpop.f32.mrb[0].mxu0
    %v5493 = vadd.f32 0.0, %v5492
    %v5494 = vpop.f32.mrb[0].mxu0
    %v5495 = vpop.f32.mrb[0].mxu0
    %v5496 = vpop.f32.mrb[0].mxu0
    %5497 = vdwg.mxu0
    %5498 = vmatprep.subr.bf16.mxu0 0
    %5499 = vmatpush1.bf16.msra.mxu0 %v5346
    %5500 = vmatprep.subr.bf16.mxu0 0
    %5501 = vmatpush1.bf16.msra.mxu0 %v5347
    %5502 = vmatprep.subr.bf16.mxu0 0
    %5503 = vmatpush1.bf16.msra.mxu0 %v5348
    %5504 = vmatprep.subr.bf16.mxu0 0
    %5505 = vmatpush1.bf16.msra.mxu0 %v5349
    %5506 = vmatprep.subr.bf16.mxu0 0
    %5507 = vmatpush1.bf16.msra.mxu0 %v5350
    %5508 = vmatprep.subr.bf16.mxu0 0
    %5509 = vmatpush1.bf16.msra.mxu0 %v5351
    %5510 = vmatprep.subr.bf16.mxu0 0
    %5511 = vmatpush1.bf16.msra.mxu0 %v5352
    %5512 = vmatprep.subr.bf16.mxu0 0
    %5513 = vmatpush1.bf16.msra.mxu0 %v5353
    %5514 = vmatprep.subr.bf16.mxu0 0
    %5515 = vmatpush1.bf16.msra.mxu0 %v5354
    %5516 = vmatprep.subr.bf16.mxu0 0
    %5517 = vmatpush1.bf16.msra.mxu0 %v5355
    %5518 = vmatprep.subr.bf16.mxu0 0
    %5519 = vmatpush1.bf16.msra.mxu0 %v5356
    %5520 = vmatprep.subr.bf16.mxu0 0
    %5521 = vmatpush1.bf16.msra.mxu0 %v5357
    %5522 = vmatprep.subr.bf16.mxu0 0
    %5523 = vmatpush1.bf16.msra.mxu0 %v5358
    %5524 = vmatprep.subr.bf16.mxu0 0
    %5525 = vmatpush1.bf16.msra.mxu0 %v5359
    %5526 = vmatprep.subr.bf16.mxu0 0
    %5527 = vmatpush1.bf16.msra.mxu0 %v5360
    %5528 = vmatprep.subr.bf16.mxu0 0
    %5529 = vmatpush1.bf16.msra.mxu0 %v5361
    %5530 = vmatprep.mubr.bf16.mxu0 %v4849
    %5531 = vmatmul.mubr.bf16.gmra.mrb[0].mxu0 %v4848
    %v5532 = vpop.f32.mrb[0].mxu0
    %v5533 = vadd.f32 %v5493, %v5532
    %v5534 = vpop.f32.mrb[0].mxu0
    %v5535 = vpop.f32.mrb[0].mxu0
    %v5536 = vpop.f32.mrb[0].mxu0
    %5537 = vdwg.mxu0
    %5538 = vmatprep.subr.bf16.mxu0 0
    %5539 = vmatpush1.bf16.msra.mxu0 %v5362
    %5540 = vmatprep.subr.bf16.mxu0 0
    %5541 = vmatpush1.bf16.msra.mxu0 %v5363
    %5542 = vmatprep.subr.bf16.mxu0 0
    %5543 = vmatpush1.bf16.msra.mxu0 %v5364
    %5544 = vmatprep.subr.bf16.mxu0 0
    %5545 = vmatpush1.bf16.msra.mxu0 %v5365
    %5546 = vmatprep.subr.bf16.mxu0 0
    %5547 = vmatpush1.bf16.msra.mxu0 %v5366
    %5548 = vmatprep.subr.bf16.mxu0 0
    %5549 = vmatpush1.bf16.msra.mxu0 %v5367
    %5550 = vmatprep.subr.bf16.mxu0 0
    %5551 = vmatpush1.bf16.msra.mxu0 %v5368
    %5552 = vmatprep.subr.bf16.mxu0 0
    %5553 = vmatpush1.bf16.msra.mxu0 %v5369
    %5554 = vmatprep.subr.bf16.mxu0 0
    %5555 = vmatpush1.bf16.msra.mxu0 %v5370
    %5556 = vmatprep.subr.bf16.mxu0 0
    %5557 = vmatpush1.bf16.msra.mxu0 %v5371
    %5558 = vmatprep.subr.bf16.mxu0 0
    %5559 = vmatpush1.bf16.msra.mxu0 %v5372
    %5560 = vmatprep.subr.bf16.mxu0 0
    %5561 = vmatpush1.bf16.msra.mxu0 %v5373
    %5562 = vmatprep.subr.bf16.mxu0 0
    %5563 = vmatpush1.bf16.msra.mxu0 %v5374
    %5564 = vmatprep.subr.bf16.mxu0 0
    %5565 = vmatpush1.bf16.msra.mxu0 %v5375
    %5566 = vmatprep.subr.bf16.mxu0 0
    %5567 = vmatpush1.bf16.msra.mxu0 %v5376
    %5568 = vmatprep.subr.bf16.mxu0 0
    %5569 = vmatpush1.bf16.msra.mxu0 %v5377
    %5570 = vmatprep.mubr.bf16.mxu0 %v4897
    %5571 = vmatmul.mubr.bf16.gmra.mrb[0].mxu0 %v4896
    %v5572 = vpop.f32.mrb[0].mxu0
    %v5573 = vadd.f32 %v5533, %v5572
    %v5574 = vpop.f32.mrb[0].mxu0
    %v5575 = vpop.f32.mrb[0].mxu0
    %v5576 = vpop.f32.mrb[0].mxu0
    %5577 = vdwg.mxu0
    %5578 = vmatprep.subr.bf16.mxu0 0
    %5579 = vmatpush1.bf16.msra.mxu0 %v5378
    %5580 = vmatprep.subr.bf16.mxu0 0
    %5581 = vmatpush1.bf16.msra.mxu0 %v5379
    %5582 = vmatprep.subr.bf16.mxu0 0
    %5583 = vmatpush1.bf16.msra.mxu0 %v5380
    %5584 = vmatprep.subr.bf16.mxu0 0
    %5585 = vmatpush1.bf16.msra.mxu0 %v5381
    %5586 = vmatprep.subr.bf16.mxu0 0
    %5587 = vmatpush1.bf16.msra.mxu0 %v5382
    %5588 = vmatprep.subr.bf16.mxu0 0
    %5589 = vmatpush1.bf16.msra.mxu0 %v5383
    %5590 = vmatprep.subr.bf16.mxu0 0
    %5591 = vmatpush1.bf16.msra.mxu0 %v5384
    %5592 = vmatprep.subr.bf16.mxu0 0
    %5593 = vmatpush1.bf16.msra.mxu0 %v5385
    %5594 = vmatprep.subr.bf16.mxu0 0
    %5595 = vmatpush1.bf16.msra.mxu0 %v5386
    %5596 = vmatprep.subr.bf16.mxu0 0
    %5597 = vmatpush1.bf16.msra.mxu0 %v5387
    %5598 = vmatprep.subr.bf16.mxu0 0
    %5599 = vmatpush1.bf16.msra.mxu0 %v5388
    %5600 = vmatprep.subr.bf16.mxu0 0
    %5601 = vmatpush1.bf16.msra.mxu0 %v5389
    %5602 = vmatprep.subr.bf16.mxu0 0
    %5603 = vmatpush1.bf16.msra.mxu0 %v5390
    %5604 = vmatprep.subr.bf16.mxu0 0
    %5605 = vmatpush1.bf16.msra.mxu0 %v5391
    %5606 = vmatprep.subr.bf16.mxu0 0
    %5607 = vmatpush1.bf16.msra.mxu0 %v5392
    %5608 = vmatprep.subr.bf16.mxu0 0
    %5609 = vmatpush1.bf16.msra.mxu0 %v5393
    %5610 = vmatprep.mubr.bf16.mxu0 %v4945
    %5611 = vmatmul.mubr.bf16.gmra.mrb[0].mxu0 %v4944
    %v5612 = vpop.f32.mrb[0].mxu0
    %v5613 = vadd.f32 %v5573, %v5612
    %v5614 = vpop.f32.mrb[0].mxu0
    %v5615 = vpop.f32.mrb[0].mxu0
    %v5616 = vpop.f32.mrb[0].mxu0
    %5617 = vdwg.mxu0
    %v5618 = vxor.u32 %v5613, 2147483648
    %v5619 = vmul.f32 %v5618, 1.442695
    %v5620 = vpow.pop %v5619
    %v5621 = vadd.f32 %v5620, 1.0
    %v5622 = vrcp.pop %v5621
    %v5623 = vmul.f32 1.0, %v5622
    %vm5624 = vcmask 1024
    %5625 = vst.msk [vmem:[%s19] sm:$0x3] %vm5624, %v5623
    // Predicated region
    $region98: #{_lambda_.1} parent=1 // pred_check
      _
    $region99: #{_lambda_.1} parent=1 // pred_check_branch
      %5627 = sbr.rel (0) target = $region101
    $region100: #{_lambda_.1} parent=1 // pred_region
      _
    $region101: #{_lambda_.1} parent=1 // pred_fallthru
      _
    // Predicated region
    $region102: #{_lambda_.1} parent=1 // pred_check
      _
    $region103: #{_lambda_.1} parent=1 // pred_check_branch
      %5629 = sbr.rel (0) target = $region105
    $region104: #{_lambda_.1} parent=1 // pred_region
      _
    $region105: #{_lambda_.1} parent=1 // pred_fallthru
      _
    %5630 = vsyncpa [#allocation3], 1
    %5631 = vsyncpa [#allocation5], 1
    %5632 = vsyncpa [#allocation8], 1

</llo_original>
